<compile_context>
chip_gen: v7x
topology: tpu7x:2x2x1
jax: 0.10.0
libtpu: 0.0.40
codegen_flags: <defaults>
</compile_context>

<pallas_src>
import functools

import jax
import jax.numpy as jnp
from jax.experimental import pallas as pl
from jax.experimental.pallas import tpu as pltpu


_LANE = 128


def _ceil_to(x, m):
    return -(-x // m) * m


def _sublane(itemsize):
    # Sublane tile: 8 rows for 32-bit dtypes, 16 for 16-bit, 32 for 8-bit.
    return max(8, 32 // max(int(itemsize), 1))


def _vmem_capacity_bytes():
    """Physical VMEM per TensorCore (generation-aware, conservative fallback)."""
    getter = getattr(pltpu, "get_tpu_info", None)
    if getter is not None:
        try:
            cap = int(getattr(getter(), "vmem_capacity_bytes", 0) or 0)
            if cap > 0:
                return cap
        except Exception:
            pass
    try:
        kind = jax.devices()[0].device_kind.lower()
    except Exception:
        kind = ""
    if "v7" in kind:
        return 64 * 1024 * 1024        # v7x: 64 MiB per TensorCore
    if "v4" in kind or "v5" in kind or "v6" in kind:
        return 128 * 1024 * 1024       # v4 / v5e / v5p / v6e: 128 MiB
    return 64 * 1024 * 1024            # unknown: stay conservative


def _num_tensorcores():
    """TensorCores that share the 'parallel' grid axes (v7x exposes 2/chip)."""
    try:
        kind = jax.devices()[0].device_kind.lower()
    except Exception:
        return 1
    return 2 if "v7" in kind else 1


def _choose_bands(B, C, nH, nW, P, W, itemsize, budget_bytes, num_cores):
    """Largest divisor k of nH whose per-step working set fits the budget,
    clamped so multi-TensorCore parts keep >= num_cores parallel grid steps."""
    sub = _sublane(itemsize)
    cpp = C * P * P

    def padded2(rows, cols):  # VMEM bytes of one (rows, cols) minor-2 slab
        return _ceil_to(rows, sub) * _ceil_to(cols, _LANE) * itemsize

    def working_set(k):
        in_blk = C * padded2(k * P, W)           # (1, C, k*P, W) lane-dense input
        out_blk = k * padded2(nW, cpp)           # (1, k, nW, C*P*P) output block
        split = C * k * P * padded2(nW, P)       # W-split scratch (single-buffered)
        tmp = 2 * max(k * P * padded2(P, nW),    # compiler relayout temporaries
                      k * padded2(P * P, nW))
        return 2 * (in_blk + out_blk) + split + tmp  # 2x: pipeline double-buffering

    def valid(k):
        # second-minor input block dim (k*P) must be a sublane multiple or full H
        return nH % k == 0 and ((k * P) % sub == 0 or k == nH)

    cands = [k for k in range(1, nH + 1) if valid(k)]
    fits = [k for k in cands if working_set(k) <= budget_bytes]
    k = max(fits) if fits else min(cands)
    if num_cores > 1 and fits:
        # Keep at least num_cores total grid steps so no TensorCore idles (v7x).
        needed = -(-num_cores // B)              # steps needed per batch element
        balanced = [c for c in fits if nH // c >= needed]
        if balanced:
            k = max(balanced)
    return k


def _patchify_fast_kernel(x_ref, o_ref, split_ref, *, C, k, P, nW):
    # x_ref:     (1, C, k*P, nW*P)  lane-dense band   [b, c, (i,ph), (j,pw)]
    # split_ref: (C, k*P, nW, P)    VMEM scratch      [c, (i,ph), j, pw]
    # o_ref:     (1, k, nW, C*P*P)  lane-dense band   [b, i, j, (c,ph,pw)]
    pp = P * P

    # In-kernel W -> (nW, P) split (the HBM->VMEM DMA stays dense): nW static
    # slice copies per band.  nW is small/static for image models.
    for j in range(nW):
        split_ref[:, :, j, :] = x_ref[0, :, :, j * P:(j + 1) * P]

    for c in range(C):                       # C is small for images (3-4)
        xc = split_ref[c]                    # (k*P, nW, P)  [(i,ph), j, pw]
        xc = jnp.swapaxes(xc, -1, -2)        # (k*P, P, nW)  [(i,ph), pw, j]  XLU
        # Layout-preserving regroup (needs P % sublane == 0): rows stay in
        # (i, ph, pw) order and the lane dim (nW) is untouched.
        xc = xc.reshape(k, pp, nW)           # (k, P*P, nW)  [i, (ph,pw), j]
        xc = jnp.swapaxes(xc, -1, -2)        # (k, nW, P*P)  [i, j, (ph,pw)]  XLU
        # Per-channel store into the lane-dense VMEM output block.  For
        # P*P < 128 (e.g. P=8) this is a masked vst into VMEM only; the HBM
        # writeback is still a single dense (k, nW, C*P*P) DMA per band.
        o_ref[0, :, :, c * pp:(c + 1) * pp] = xc


def _patchify_fast(x, P):
    B, C, H, W = x.shape
    nH, nW = H // P, W // P
    itemsize = jnp.dtype(x.dtype).itemsize

    # PyTorch unfold drops the ragged edge; crop (no-op for divisible H/W).
    x = x[:, :, :nH * P, :nW * P]
    Wc = nW * P
    cpp = C * P * P

    cap = _vmem_capacity_bytes()
    vmem_limit = int(cap * 0.70)             # ~45 MiB on v7x, ~90 MiB on v5e/v6e
    budget = int(vmem_limit * 0.70)          # headroom for pipeline + temporaries
    num_cores = _num_tensorcores()
    k = _choose_bands(B, C, nH, nW, P, Wc, itemsize, budget, num_cores)

    kernel = functools.partial(_patchify_fast_kernel, C=C, k=k, P=P, nW=nW)

    out = pl.pallas_call(
        kernel,
        out_shape=jax.ShapeDtypeStruct((B, nH, nW, cpp), x.dtype),
        grid_spec=pltpu.PrefetchScalarGridSpec(
            num_scalar_prefetch=0,
            grid=(B, nH // k),
            in_specs=[
                # Lane-dense band: k patch-rows of full-width image rows.  The
                # lane dim (W) equals the full array dim and k*P is a sublane
                # multiple -> legal, unpadded tiling.
                pl.BlockSpec((1, C, k * P, Wc), lambda b, g: (b, 0, g, 0)),
            ],
            # Lane-dense output band; last two dims (nW, C*P*P) are full dims.
            out_specs=pl.BlockSpec((1, k, nW, cpp), lambda b, g: (b, g, 0, 0)),
            scratch_shapes=[pltpu.VMEM((C, k * P, nW, P), x.dtype)],
        ),
        compiler_params=pltpu.CompilerParams(
            dimension_semantics=("parallel", "parallel"),
            vmem_limit_bytes=vmem_limit,
        ),
        cost_estimate=pl.CostEstimate(
            flops=0, transcendentals=0,
            bytes_accessed=2 * B * C * nH * P * nW * P * itemsize),
    )(x)

    # Free reshape: (B, nH, nW, C*P*P) and (B, nH*nW, C, P, P) share memory order.
    return out.reshape(B, nH * nW, C, P, P)


def _patchify_basic(x, P):
    """Fallback for patch sizes that are not a sublane multiple (e.g. P=14).

    Uses always-legal full-image blocks (all block dims equal full array dims)
    and static in-kernel slicing; both kept deliberately simple."""
    B, C, H, W = x.shape
    nH, nW = H // P, W // P
    x = x[:, :, :nH * P, :nW * P]

    def kernel(x_ref, o_ref):
        for i in range(nH):
            for j in range(nW):
                o_ref[0, i * nW + j] = x_ref[0, :, i * P:(i + 1) * P,
                                             j * P:(j + 1) * P]

    return pl.pallas_call(
        kernel,
        out_shape=jax.ShapeDtypeStruct((B, nH * nW, C, P, P), x.dtype),
        grid_spec=pltpu.PrefetchScalarGridSpec(
            num_scalar_prefetch=0,
            grid=(B,),
            in_specs=[pl.BlockSpec((1, C, nH * P, nW * P),
                                   lambda b: (b, 0, 0, 0))],
            out_specs=pl.BlockSpec((1, nH * nW, C, P, P),
                                   lambda b: (b, 0, 0, 0, 0)),
        ),
        compiler_params=pltpu.CompilerParams(
            dimension_semantics=("parallel",),
            vmem_limit_bytes=int(_vmem_capacity_bytes() * 0.70),
        ),
    )(x)


def simple_patchify(x, patch_size=16):
    """Pallas implementation of SimplePatchifier.forward (NCHW -> patches).

    Dispatch is static on shape/dtype (no try/except, no host sync here)."""
    B, C, H, W = x.shape
    P = int(patch_size)
    nH, nW = H // P, W // P
    if nH == 0 or nW == 0:
        return jnp.zeros((B, 0, C, P, P), x.dtype)
    if P % _sublane(jnp.dtype(x.dtype).itemsize) == 0:
        return _patchify_fast(x, P)
    # TODO(synk): fold P % sublane != 0 (e.g. P=14, ViT-L/14) into the fast
    # path by padding band rows to the sublane multiple; for now these shapes
    # take the simple full-image kernel below.
    return _patchify_basic(x, P)


def patchify_ref(x, patch_size):
    """Pure-JAX reference matching the PyTorch semantics."""
    B, C, H, W = x.shape
    P = patch_size
    nH, nW = H // P, W // P
    xr = x[:, :, :nH * P, :nW * P].reshape(B, C, nH, P, nW, P)
    return jnp.transpose(xr, (0, 2, 4, 1, 3, 5)).reshape(B, nH * nW, C, P, P)


if __name__ == "__main__":
    key = jax.random.PRNGKey(0)
    B, C, H, W = 2, 4, 16, 16
    patch_size = 8  # constructor param; 8 gives a non-trivial 2x2 patch grid

    x = jax.random.normal(key, (B, C, H, W), dtype=jnp.float32)

    out = jax.block_until_ready(simple_patchify(x, patch_size=patch_size))

    ref = patchify_ref(x, patch_size)
    n_patches = (H // patch_size) * (W // patch_size)
    assert out.shape == (B, n_patches, C, patch_size, patch_size), out.shape
    assert jnp.allclose(out, ref), "mismatch vs reference"

    print("KERNEL_OK")
</pallas_src>

<mosaic_0001>
module attributes {stable_mosaic.version = 11 : i64} {
  func.func @_patchify_fast_kernel(%arg0: i32, %arg1: i32, %arg2: memref<1x4x16x16xf32, #tpu.memory_space<vmem>>, %arg3: memref<1x2x2x256xf32, #tpu.memory_space<vmem>>, %arg4: memref<4x16x2x8xf32, #tpu.memory_space<vmem>>) attributes {dimension_semantics = [#tpu.dimension_semantics<parallel>, #tpu.dimension_semantics<parallel>], iteration_bounds = array<i64: 2, 1>, scalar_prefetch = 0 : i64, scratch_operands = 1 : i64, tpu.core_type = #tpu.core_type<tc>, window_params = [{transform_indices = @transform_0, window_bounds = array<i64: 1, 4, 16, 16>}, {transform_indices = @transform_1, window_bounds = array<i64: 1, 2, 2, 256>}]} {
    %c0 = arith.constant 0 : index
    %c0_0 = arith.constant 0 : index
    %c0_1 = arith.constant 0 : index
    %c0_2 = arith.constant 0 : index
    %0 = vector.load %arg2[%c0, %c0_0, %c0_1, %c0_2] : memref<1x4x16x16xf32, #tpu.memory_space<vmem>>, vector<1x4x16x8xf32>
    %1 = vector.shape_cast %0 : vector<1x4x16x8xf32> to vector<4x16x8xf32>
    %c0_3 = arith.constant 0 : index
    %c0_4 = arith.constant 0 : index
    %c0_5 = arith.constant 0 : index
    %c0_6 = arith.constant 0 : index
    %2 = vector.load %arg4[%c0_3, %c0_4, %c0_5, %c0_6] : memref<4x16x2x8xf32, #tpu.memory_space<vmem>>, vector<4x16x1x8xf32>
    %3 = vector.shape_cast %2 : vector<4x16x1x8xf32> to vector<4x16x8xf32>
    %4 = vector.shape_cast %1 : vector<4x16x8xf32> to vector<4x16x1x8xf32>
    tpu.vector_store %arg4[%c0_3, %c0_4, %c0_5, %c0_6], %4 {strides = array<i32>} : memref<4x16x2x8xf32, #tpu.memory_space<vmem>>, vector<4x16x1x8xf32>,
    %c0_7 = arith.constant 0 : index
    %c0_8 = arith.constant 0 : index
    %c0_9 = arith.constant 0 : index
    %c8 = arith.constant 8 : index
    %5 = vector.load %arg2[%c0_7, %c0_8, %c0_9, %c8] : memref<1x4x16x16xf32, #tpu.memory_space<vmem>>, vector<1x4x16x8xf32>
    %6 = vector.shape_cast %5 : vector<1x4x16x8xf32> to vector<4x16x8xf32>
    %c0_10 = arith.constant 0 : index
    %c0_11 = arith.constant 0 : index
    %c1 = arith.constant 1 : index
    %c0_12 = arith.constant 0 : index
    %7 = vector.load %arg4[%c0_10, %c0_11, %c1, %c0_12] : memref<4x16x2x8xf32, #tpu.memory_space<vmem>>, vector<4x16x1x8xf32>
    %8 = vector.shape_cast %7 : vector<4x16x1x8xf32> to vector<4x16x8xf32>
    %9 = vector.shape_cast %6 : vector<4x16x8xf32> to vector<4x16x1x8xf32>
    tpu.vector_store %arg4[%c0_10, %c0_11, %c1, %c0_12], %9 {strides = array<i32>} : memref<4x16x2x8xf32, #tpu.memory_space<vmem>>, vector<4x16x1x8xf32>,
    %c0_13 = arith.constant 0 : index
    %c0_14 = arith.constant 0 : index
    %c0_15 = arith.constant 0 : index
    %c0_16 = arith.constant 0 : index
    %10 = vector.load %arg4[%c0_13, %c0_14, %c0_15, %c0_16] : memref<4x16x2x8xf32, #tpu.memory_space<vmem>>, vector<1x16x2x8xf32>
    %11 = vector.shape_cast %10 : vector<1x16x2x8xf32> to vector<16x2x8xf32>
    %12 = tpu.transpose %11, [0, 2, 1] : vector<16x2x8xf32> -> vector<16x8x2xf32>
    %13 = vector.shape_cast %12 : vector<16x8x2xf32> to vector<2x64x2xf32>
    %14 = tpu.transpose %13, [0, 2, 1] : vector<2x64x2xf32> -> vector<2x2x64xf32>
    %c0_17 = arith.constant 0 : index
    %c0_18 = arith.constant 0 : index
    %c0_19 = arith.constant 0 : index
    %c0_20 = arith.constant 0 : index
    %15 = vector.load %arg3[%c0_17, %c0_18, %c0_19, %c0_20] : memref<1x2x2x256xf32, #tpu.memory_space<vmem>>, vector<1x2x2x64xf32>
    %16 = vector.shape_cast %15 : vector<1x2x2x64xf32> to vector<2x2x64xf32>
    %17 = vector.shape_cast %14 : vector<2x2x64xf32> to vector<1x2x2x64xf32>
    tpu.vector_store %arg3[%c0_17, %c0_18, %c0_19, %c0_20], %17 {strides = array<i32>} : memref<1x2x2x256xf32, #tpu.memory_space<vmem>>, vector<1x2x2x64xf32>,
    %c1_21 = arith.constant 1 : index
    %c0_22 = arith.constant 0 : index
    %c0_23 = arith.constant 0 : index
    %c0_24 = arith.constant 0 : index
    %18 = vector.load %arg4[%c1_21, %c0_22, %c0_23, %c0_24] : memref<4x16x2x8xf32, #tpu.memory_space<vmem>>, vector<1x16x2x8xf32>
    %19 = vector.shape_cast %18 : vector<1x16x2x8xf32> to vector<16x2x8xf32>
    %20 = tpu.transpose %19, [0, 2, 1] : vector<16x2x8xf32> -> vector<16x8x2xf32>
    %21 = vector.shape_cast %20 : vector<16x8x2xf32> to vector<2x64x2xf32>
    %22 = tpu.transpose %21, [0, 2, 1] : vector<2x64x2xf32> -> vector<2x2x64xf32>
    %c0_25 = arith.constant 0 : index
    %c0_26 = arith.constant 0 : index
    %c0_27 = arith.constant 0 : index
    %c64 = arith.constant 64 : index
    %23 = vector.load %arg3[%c0_25, %c0_26, %c0_27, %c64] : memref<1x2x2x256xf32, #tpu.memory_space<vmem>>, vector<1x2x2x64xf32>
    %24 = vector.shape_cast %23 : vector<1x2x2x64xf32> to vector<2x2x64xf32>
    %25 = vector.shape_cast %22 : vector<2x2x64xf32> to vector<1x2x2x64xf32>
    tpu.vector_store %arg3[%c0_25, %c0_26, %c0_27, %c64], %25 {strides = array<i32>} : memref<1x2x2x256xf32, #tpu.memory_space<vmem>>, vector<1x2x2x64xf32>,
    %c2 = arith.constant 2 : index
    %c0_28 = arith.constant 0 : index
    %c0_29 = arith.constant 0 : index
    %c0_30 = arith.constant 0 : index
    %26 = vector.load %arg4[%c2, %c0_28, %c0_29, %c0_30] : memref<4x16x2x8xf32, #tpu.memory_space<vmem>>, vector<1x16x2x8xf32>
    %27 = vector.shape_cast %26 : vector<1x16x2x8xf32> to vector<16x2x8xf32>
    %28 = tpu.transpose %27, [0, 2, 1] : vector<16x2x8xf32> -> vector<16x8x2xf32>
    %29 = vector.shape_cast %28 : vector<16x8x2xf32> to vector<2x64x2xf32>
    %30 = tpu.transpose %29, [0, 2, 1] : vector<2x64x2xf32> -> vector<2x2x64xf32>
    %c0_31 = arith.constant 0 : index
    %c0_32 = arith.constant 0 : index
    %c0_33 = arith.constant 0 : index
    %c128 = arith.constant 128 : index
    %31 = vector.load %arg3[%c0_31, %c0_32, %c0_33, %c128] : memref<1x2x2x256xf32, #tpu.memory_space<vmem>>, vector<1x2x2x64xf32>
    %32 = vector.shape_cast %31 : vector<1x2x2x64xf32> to vector<2x2x64xf32>
    %33 = vector.shape_cast %30 : vector<2x2x64xf32> to vector<1x2x2x64xf32>
    tpu.vector_store %arg3[%c0_31, %c0_32, %c0_33, %c128], %33 {strides = array<i32>} : memref<1x2x2x256xf32, #tpu.memory_space<vmem>>, vector<1x2x2x64xf32>,
    %c3 = arith.constant 3 : index
    %c0_34 = arith.constant 0 : index
    %c0_35 = arith.constant 0 : index
    %c0_36 = arith.constant 0 : index
    %34 = vector.load %arg4[%c3, %c0_34, %c0_35, %c0_36] : memref<4x16x2x8xf32, #tpu.memory_space<vmem>>, vector<1x16x2x8xf32>
    %35 = vector.shape_cast %34 : vector<1x16x2x8xf32> to vector<16x2x8xf32>
    %36 = tpu.transpose %35, [0, 2, 1] : vector<16x2x8xf32> -> vector<16x8x2xf32>
    %37 = vector.shape_cast %36 : vector<16x8x2xf32> to vector<2x64x2xf32>
    %38 = tpu.transpose %37, [0, 2, 1] : vector<2x64x2xf32> -> vector<2x2x64xf32>
    %c0_37 = arith.constant 0 : index
    %c0_38 = arith.constant 0 : index
    %c0_39 = arith.constant 0 : index
    %c192 = arith.constant 192 : index
    %39 = vector.load %arg3[%c0_37, %c0_38, %c0_39, %c192] : memref<1x2x2x256xf32, #tpu.memory_space<vmem>>, vector<1x2x2x64xf32>
    %40 = vector.shape_cast %39 : vector<1x2x2x64xf32> to vector<2x2x64xf32>
    %41 = vector.shape_cast %38 : vector<2x2x64xf32> to vector<1x2x2x64xf32>
    tpu.vector_store %arg3[%c0_37, %c0_38, %c0_39, %c192], %41 {strides = array<i32>} : memref<1x2x2x256xf32, #tpu.memory_space<vmem>>, vector<1x2x2x64xf32>,
    return
  }
  func.func @transform_0(%arg0: i32, %arg1: i32) -> (i32, i32, i32, i32) {
    %c0_i32 = arith.constant 0 : i32
    %c0_i32_0 = arith.constant 0 : i32
    %c0_i32_1 = arith.constant 0 : i32
    return %arg0, %c0_i32, %arg1, %c0_i32_0 : i32, i32, i32, i32
  }
  func.func @transform_1(%arg0: i32, %arg1: i32) -> (i32, i32, i32, i32) {
    %c0_i32 = arith.constant 0 : i32
    %c0_i32_0 = arith.constant 0 : i32
    %c0_i32_1 = arith.constant 0 : i32
    return %arg0, %arg1, %c0_i32, %c0_i32_0 : i32, i32, i32, i32
  }
}

</mosaic_0001>

<llo_original>
// kernel: tpu_custom_call.1
$region0: #{tpu_custom_call.1}
  #allocation0 [shape = 'u32[]', space=smem, size = 0x4, offset = 0x4, fixed_abs, tag = 'smem constant byte address 0x4 - core index']
  #allocation1 [shape = 'u32[144,128]{1,0:T(1,128)}', space=vmem, size = 0x12000, scoped, tag = 'internal scratch']
  #allocation2 [shape = 'f32[4,16,2,8]{3,2,1,0:T(2,128)}', space=vmem, size = 0x10000, scoped, tag = 'scratch operand']
  %s0 = inlined_call_operand.hbm [shape: f32[2,4,16,16], index: 0, kind: input, shape index: {}]
  %s1 = inlined_call_operand.hbm [shape: f32[2,2,2,256], index: 1, kind: output, shape index: {}]
  %s2 = sld [smem:[#allocation0]]
  $region41: #{tpu_custom_call.1} parent=0
    _
  %s4 = ssub.s32 1, %s2
  %s5 = scalar_select 0, %s4, %s2
  $region1: #{tpu_custom_call.1} parent=0
    #allocation3 [shape = 'u8[65536]{0}', space=vmem, size = 0x10000, scoped, tag = 'input window, operand 0']
    #allocation4 [shape = 's32[2]{0}', space=sflag, size = 0x8, scoped, tag = 'scoped memory for tpu_custom_call.1']
    #allocation5 [shape = 's32[2]{0}', space=sflag, size = 0x8, scoped, tag = 'scoped memory for tpu_custom_call.1']
    #allocation6 [shape = 'u8[8192]{0}', space=vmem, size = 0x2000, scoped, tag = 'output window, operand 0']
    %6 = vsyncpa [#allocation4], 0
    %s7 = scalar_lea.sflag [#allocation4], 1
    %8 = vsyncpa %s7, 0
    %9 = vsyncpa [#allocation5], 0
    %s10 = scalar_lea.sflag [#allocation5], 1
    %11 = vsyncpa %s10, 0
    loop: start=0, step=1, limit=4
    $region2: #{tpu_custom_call.1} parent=1 // loop_pre_header
      _
    $region3: #{tpu_custom_call.1} parent=1 // loop_header
      %s13 = sphi 0, %s17
      %p14 = scmp.ge.s32.totalorder %s13, 4
      %s20 = sphi 0, %s32
      %s21 = sphi 0, %s28
      %s22 = sphi 0, %s20
      %s23 = sphi 0, %s21
      %s24 = sphi 0, %s22
      %s25 = sphi 0, %s23
      %s37 = sphi 0, %s39
      %s40 = sphi 0, %s37
      %s41 = sphi 0, %s40
      %s57 = sphi 0, %s41
      %s65 = sphi 0, %s67
      %s68 = sphi 0, %s65
      %s69 = sphi 0, %s68
      %s85 = sphi 0, %s69
    $region4: #{tpu_custom_call.1} parent=1 // loop_header_branch
      %16 = sbr.rel (%p14) target = $region8
    $region5: #{tpu_custom_call.1} parent=1 // loop_body
      %s18 = ssub.s32 %s13, 1
      %s19 = ssub.s32 %s13, 2
      %s26 = sadd.s32 1, %s21
      %p27 = scmp.ge.s32.totalorder %s26, 1
      %s28 = scalar_select %p27, 0, %s26
      %s29 = sadd.s32 1, %s20
      %s30 = scalar_select %p27, %s29, %s20
      %p31 = scmp.ge.s32.totalorder %s30, 2
      %s32 = scalar_select %p31, 0, %s30
      %s33 = ssub.s32 %s20, %s32
      %s34 = ssub.s32 %s21, %s28
      %s35 = sor.u32 %s33, %s34
      %p36 = scmp.eq.s32.totalorder %s35, 0
      %s38 = sadd.s32 %s37, 1
      %s39 = scalar_select %p36, %s37, %s38
      %p42 = pneg %p36
      %p43 = scmp.eq.s32.totalorder %s13, 1
      %p44 = por %p42, %p43
      %p45 = scmp.ne.s32.totalorder %s37, %s40
      %p46 = scmp.eq.s32.totalorder %s13, 0
      %p47 = por %p45, %p46
      %p48 = scmp.ne.s32.totalorder %s37, %s40
      %p49 = scmp.eq.s32.totalorder %s18, 1
      %p50 = por %p48, %p49
      %p51 = scmp.ne.s32.totalorder %s40, %s41
      %p52 = scmp.eq.s32.totalorder %s18, 0
      %p53 = por %p51, %p52
      %p54 = scmp.ne.s32.totalorder %s40, %s41
      %p55 = scmp.eq.s32.totalorder %s19, 1
      %p56 = por %p54, %p55
      %p58 = scmp.ne.s32.totalorder %s41, %s57
      %p59 = scmp.eq.s32.totalorder %s19, 0
      %p60 = por %p58, %p59
      %s61 = ssub.s32 %s20, %s32
      %s62 = ssub.s32 %s21, %s28
      %s63 = sor.u32 %s61, %s62
      %p64 = scmp.eq.s32.totalorder %s63, 0
      %s66 = sadd.s32 %s65, 1
      %s67 = scalar_select %p64, %s65, %s66
      %p70 = pneg %p64
      %p71 = scmp.eq.s32.totalorder %s13, 1
      %p72 = por %p70, %p71
      %p73 = scmp.ne.s32.totalorder %s65, %s68
      %p74 = scmp.eq.s32.totalorder %s13, 0
      %p75 = por %p73, %p74
      %p76 = scmp.ne.s32.totalorder %s65, %s68
      %p77 = scmp.eq.s32.totalorder %s18, 1
      %p78 = por %p76, %p77
      %p79 = scmp.ne.s32.totalorder %s68, %s69
      %p80 = scmp.eq.s32.totalorder %s18, 0
      %p81 = por %p79, %p80
      %p82 = scmp.ne.s32.totalorder %s68, %s69
      %p83 = scmp.eq.s32.totalorder %s19, 1
      %p84 = por %p82, %p83
      %p86 = scmp.ne.s32.totalorder %s69, %s85
      %p87 = scmp.eq.s32.totalorder %s19, 0
      %p88 = por %p86, %p87
      %p89 = scmp.le.s32.totalorder 1, %s13
      %p90 = scmp.lt.s32.totalorder %s13, 3
      %p91 = pnand %p89, %p90
      %p92 = pneg %p91
      // Predicated region
      $region9: #{tpu_custom_call.1} parent=5 // pred_check
        _
      $region10: #{tpu_custom_call.1} parent=5 // pred_check_branch
        %94 = sbr.rel (%p91) target = $region12
      $region11: #{tpu_custom_call.1} parent=5 // pred_region
        %s95 = ssub.s32 %s13, 1
      $region12: #{tpu_custom_call.1} parent=5 // pred_fallthru
        _
      %p96 = scmp.lt.s32.totalorder %s13, 2
      // Predicated region
      $region13: #{tpu_custom_call.1} parent=5 // pred_check
        %p97 = pneg %p96
      $region14: #{tpu_custom_call.1} parent=5 // pred_check_branch
        %99 = sbr.rel (%p97) target = $region16
      $region15: #{tpu_custom_call.1} parent=5 // pred_region
        // Predicated region
        $region17: #{tpu_custom_call.1} parent=15 // pred_check
          %p100 = pneg %p47
        $region18: #{tpu_custom_call.1} parent=15 // pred_check_branch
          %102 = sbr.rel (%p100) target = $region20
        $region19: #{tpu_custom_call.1} parent=15 // pred_region
          %s103 = sand.u32 %s37, 1
          %s104 = scalar_lea.sflag [#allocation4], %s103
          %s105 = sand.u32 %s37, 1
          %s106 = smul.addr %s105, 64
          %s107 = scalar_lea.vmem [#allocation3], %s106
          %s108 = smul.u32 2, %s21
          %s110 = ssub.s32 1024, 1024
          %111 = vsyncadd %s104, %s110
          %s112 = smul.addr %s20, 8
          %s113 = sadd.s32 %s108, %s112
          %s114 = smul.addr %s113, 128
          %s115 = scalar_lea.hbm %s0, %s114
          %s116 = sshll.u32 %s107, 4
          %s117 = int_to_ptr.vmem [resolvable:$true] %s116
          %122 = dma.hbm_to_vmem [thread:$0]  %s115, 1024, %s117, %s104, 128, 128, 8
        $region20: #{tpu_custom_call.1} parent=15 // pred_fallthru
          _
      $region16: #{tpu_custom_call.1} parent=5 // pred_fallthru
        _
      %p123 = scmp.le.s32.totalorder 1, %s13
      %p124 = scmp.lt.s32.totalorder %s13, 3
      %p125 = pnand %p123, %p124
      %p126 = pneg %p125
      // Predicated region
      $region21: #{tpu_custom_call.1} parent=5 // pred_check
        _
      $region22: #{tpu_custom_call.1} parent=5 // pred_check_branch
        %128 = sbr.rel (%p125) target = $region24
      $region23: #{tpu_custom_call.1} parent=5 // pred_region
        %s129 = ssub.s32 %s13, 1
        %s130 = sand.u32 %s40, 1
        %s131 = scalar_lea.sflag [#allocation4], %s130
        %s132 = sand.u32 %s40, 1
        %s133 = smul.addr %s132, 64
        %s134 = scalar_lea.vmem [#allocation3], %s133
        // Predicated region
        $region25: #{tpu_custom_call.1} parent=23 // pred_check
          %p135 = pneg %p53
        $region26: #{tpu_custom_call.1} parent=23 // pred_check_branch
          %137 = sbr.rel (%p135) target = $region28
        $region27: #{tpu_custom_call.1} parent=23 // pred_region
          %138 = dma.done %s131, 1024
        $region28: #{tpu_custom_call.1} parent=23 // pred_fallthru
          _
        %s139 = sand.u32 %s40, 1
        %s140 = scalar_lea.sflag [#allocation4], %s139
        %s141 = sand.u32 %s40, 1
        %s142 = smul.addr %s141, 64
        %s143 = scalar_lea.vmem [#allocation3], %s142
        %p144 = pneg %p53
        %p145 = pneg %p50
        %p146 = pneg %p81
        %p147 = pneg %p78
        %s148 = sand.u32 %s68, 1
        %s149 = scalar_lea.sflag [#allocation5], %s148
        %s150 = sand.u32 %s68, 1
        %s151 = smul.addr %s150, 8
        %s152 = scalar_lea.vmem [#allocation6], %s151
        %s153 = smul.u32 2, %s23
        %s154 = smul.u32 2, %s23
        %v155 = vld [vmem:[%s134] sm:$0xff]
        %v156 = vld [vmem:[%s134 + $0x8] sm:$0xff]
        %v157 = vld [vmem:[%s134 + $0x10] sm:$0xff]
        %v158 = vld [vmem:[%s134 + $0x18] sm:$0xff]
        %v159 = vld [vmem:[%s134 + $0x20] sm:$0xff]
        %v160 = vld [vmem:[%s134 + $0x28] sm:$0xff]
        %v161 = vld [vmem:[%s134 + $0x30] sm:$0xff]
        %v162 = vld [vmem:[%s134 + $0x38] sm:$0xff]
        %v171 = vcombine.high %v155, %v155
        %v173 = vunpack.c.l.s4 1966171168
        %v174 = vunpack.c.0.s8 %v173
        %v175 = vlaneseq
        %v176 = vshrl.u32 %v175, 7
        %v177 = vsub.s32 %v174, %v176
        %v178 = vrot.slane %v155, %v177
        %v180 = vunpack.c.l.s4 1966171168
        %v181 = vunpack.c.0.s8 %v180
        %v182 = vlaneseq
        %v183 = vshrl.u32 %v182, 7
        %v184 = vsub.s32 %v181, %v183
        %v185 = vrot.slane %v171, %v184
        %v186 = vcombine.high %v178, %v178
        %v187 = vcombine.high %v185, %v185
        %v189 = vunpack.c.l.s4 1966171168
        %v190 = vunpack.c.0.s8 %v189
        %v191 = vlaneseq
        %v192 = vshrl.u32 %v191, 7
        %v193 = vsub.s32 %v190, %v192
        %v194 = vrot.slane %v178, %v193
        %v196 = vunpack.c.l.s4 1966171168
        %v197 = vunpack.c.0.s8 %v196
        %v198 = vlaneseq
        %v199 = vshrl.u32 %v198, 7
        %v200 = vsub.s32 %v197, %v199
        %v201 = vrot.slane %v185, %v200
        %v203 = vunpack.c.l.s4 1966171168
        %v204 = vunpack.c.0.s8 %v203
        %v205 = vlaneseq
        %v206 = vshrl.u32 %v205, 7
        %v207 = vsub.s32 %v204, %v206
        %v208 = vrot.slane %v186, %v207
        %v210 = vunpack.c.l.s4 1966171168
        %v211 = vunpack.c.0.s8 %v210
        %v212 = vlaneseq
        %v213 = vshrl.u32 %v212, 7
        %v214 = vsub.s32 %v211, %v213
        %v215 = vrot.slane %v187, %v214
        %v216 = vcombine.high %v194, %v194
        %v217 = vcombine.high %v201, %v201
        %v218 = vcombine.high %v208, %v208
        %v219 = vcombine.high %v215, %v215
        %v220 = vcombine.high %v156, %v156
        %v222 = vunpack.c.l.s4 1966171168
        %v223 = vunpack.c.0.s8 %v222
        %v224 = vlaneseq
        %v225 = vshrl.u32 %v224, 7
        %v226 = vsub.s32 %v223, %v225
        %v227 = vrot.slane %v156, %v226
        %v229 = vunpack.c.l.s4 1966171168
        %v230 = vunpack.c.0.s8 %v229
        %v231 = vlaneseq
        %v232 = vshrl.u32 %v231, 7
        %v233 = vsub.s32 %v230, %v232
        %v234 = vrot.slane %v220, %v233
        %v235 = vcombine.high %v227, %v227
        %v236 = vcombine.high %v234, %v234
        %v238 = vunpack.c.l.s4 1966171168
        %v239 = vunpack.c.0.s8 %v238
        %v240 = vlaneseq
        %v241 = vshrl.u32 %v240, 7
        %v242 = vsub.s32 %v239, %v241
        %v243 = vrot.slane %v227, %v242
        %v245 = vunpack.c.l.s4 1966171168
        %v246 = vunpack.c.0.s8 %v245
        %v247 = vlaneseq
        %v248 = vshrl.u32 %v247, 7
        %v249 = vsub.s32 %v246, %v248
        %v250 = vrot.slane %v234, %v249
        %v252 = vunpack.c.l.s4 1966171168
        %v253 = vunpack.c.0.s8 %v252
        %v254 = vlaneseq
        %v255 = vshrl.u32 %v254, 7
        %v256 = vsub.s32 %v253, %v255
        %v257 = vrot.slane %v235, %v256
        %v259 = vunpack.c.l.s4 1966171168
        %v260 = vunpack.c.0.s8 %v259
        %v261 = vlaneseq
        %v262 = vshrl.u32 %v261, 7
        %v263 = vsub.s32 %v260, %v262
        %v264 = vrot.slane %v236, %v263
        %v265 = vcombine.high %v243, %v243
        %v266 = vcombine.high %v250, %v250
        %v267 = vcombine.high %v257, %v257
        %v268 = vcombine.high %v264, %v264
        %v269 = vcombine.high %v157, %v157
        %v271 = vunpack.c.l.s4 1966171168
        %v272 = vunpack.c.0.s8 %v271
        %v273 = vlaneseq
        %v274 = vshrl.u32 %v273, 7
        %v275 = vsub.s32 %v272, %v274
        %v276 = vrot.slane %v157, %v275
        %v278 = vunpack.c.l.s4 1966171168
        %v279 = vunpack.c.0.s8 %v278
        %v280 = vlaneseq
        %v281 = vshrl.u32 %v280, 7
        %v282 = vsub.s32 %v279, %v281
        %v283 = vrot.slane %v269, %v282
        %v284 = vcombine.high %v276, %v276
        %v285 = vcombine.high %v283, %v283
        %v287 = vunpack.c.l.s4 1966171168
        %v288 = vunpack.c.0.s8 %v287
        %v289 = vlaneseq
        %v290 = vshrl.u32 %v289, 7
        %v291 = vsub.s32 %v288, %v290
        %v292 = vrot.slane %v276, %v291
        %v294 = vunpack.c.l.s4 1966171168
        %v295 = vunpack.c.0.s8 %v294
        %v296 = vlaneseq
        %v297 = vshrl.u32 %v296, 7
        %v298 = vsub.s32 %v295, %v297
        %v299 = vrot.slane %v283, %v298
        %v301 = vunpack.c.l.s4 1966171168
        %v302 = vunpack.c.0.s8 %v301
        %v303 = vlaneseq
        %v304 = vshrl.u32 %v303, 7
        %v305 = vsub.s32 %v302, %v304
        %v306 = vrot.slane %v284, %v305
        %v308 = vunpack.c.l.s4 1966171168
        %v309 = vunpack.c.0.s8 %v308
        %v310 = vlaneseq
        %v311 = vshrl.u32 %v310, 7
        %v312 = vsub.s32 %v309, %v311
        %v313 = vrot.slane %v285, %v312
        %v314 = vcombine.high %v292, %v292
        %v315 = vcombine.high %v299, %v299
        %v316 = vcombine.high %v306, %v306
        %v317 = vcombine.high %v313, %v313
        %v318 = vcombine.high %v158, %v158
        %v320 = vunpack.c.l.s4 1966171168
        %v321 = vunpack.c.0.s8 %v320
        %v322 = vlaneseq
        %v323 = vshrl.u32 %v322, 7
        %v324 = vsub.s32 %v321, %v323
        %v325 = vrot.slane %v158, %v324
        %v327 = vunpack.c.l.s4 1966171168
        %v328 = vunpack.c.0.s8 %v327
        %v329 = vlaneseq
        %v330 = vshrl.u32 %v329, 7
        %v331 = vsub.s32 %v328, %v330
        %v332 = vrot.slane %v318, %v331
        %v333 = vcombine.high %v325, %v325
        %v334 = vcombine.high %v332, %v332
        %v336 = vunpack.c.l.s4 1966171168
        %v337 = vunpack.c.0.s8 %v336
        %v338 = vlaneseq
        %v339 = vshrl.u32 %v338, 7
        %v340 = vsub.s32 %v337, %v339
        %v341 = vrot.slane %v325, %v340
        %v343 = vunpack.c.l.s4 1966171168
        %v344 = vunpack.c.0.s8 %v343
        %v345 = vlaneseq
        %v346 = vshrl.u32 %v345, 7
        %v347 = vsub.s32 %v344, %v346
        %v348 = vrot.slane %v332, %v347
        %v350 = vunpack.c.l.s4 1966171168
        %v351 = vunpack.c.0.s8 %v350
        %v352 = vlaneseq
        %v353 = vshrl.u32 %v352, 7
        %v354 = vsub.s32 %v351, %v353
        %v355 = vrot.slane %v333, %v354
        %v357 = vunpack.c.l.s4 1966171168
        %v358 = vunpack.c.0.s8 %v357
        %v359 = vlaneseq
        %v360 = vshrl.u32 %v359, 7
        %v361 = vsub.s32 %v358, %v360
        %v362 = vrot.slane %v334, %v361
        %v363 = vcombine.high %v341, %v341
        %v364 = vcombine.high %v348, %v348
        %v365 = vcombine.high %v355, %v355
        %v366 = vcombine.high %v362, %v362
        %v367 = vcombine.high %v159, %v159
        %v369 = vunpack.c.l.s4 1966171168
        %v370 = vunpack.c.0.s8 %v369
        %v371 = vlaneseq
        %v372 = vshrl.u32 %v371, 7
        %v373 = vsub.s32 %v370, %v372
        %v374 = vrot.slane %v159, %v373
        %v376 = vunpack.c.l.s4 1966171168
        %v377 = vunpack.c.0.s8 %v376
        %v378 = vlaneseq
        %v379 = vshrl.u32 %v378, 7
        %v380 = vsub.s32 %v377, %v379
        %v381 = vrot.slane %v367, %v380
        %v382 = vcombine.high %v374, %v374
        %v383 = vcombine.high %v381, %v381
        %v385 = vunpack.c.l.s4 1966171168
        %v386 = vunpack.c.0.s8 %v385
        %v387 = vlaneseq
        %v388 = vshrl.u32 %v387, 7
        %v389 = vsub.s32 %v386, %v388
        %v390 = vrot.slane %v374, %v389
        %v392 = vunpack.c.l.s4 1966171168
        %v393 = vunpack.c.0.s8 %v392
        %v394 = vlaneseq
        %v395 = vshrl.u32 %v394, 7
        %v396 = vsub.s32 %v393, %v395
        %v397 = vrot.slane %v381, %v396
        %v399 = vunpack.c.l.s4 1966171168
        %v400 = vunpack.c.0.s8 %v399
        %v401 = vlaneseq
        %v402 = vshrl.u32 %v401, 7
        %v403 = vsub.s32 %v400, %v402
        %v404 = vrot.slane %v382, %v403
        %v406 = vunpack.c.l.s4 1966171168
        %v407 = vunpack.c.0.s8 %v406
        %v408 = vlaneseq
        %v409 = vshrl.u32 %v408, 7
        %v410 = vsub.s32 %v407, %v409
        %v411 = vrot.slane %v383, %v410
        %v412 = vcombine.high %v390, %v390
        %v413 = vcombine.high %v397, %v397
        %v414 = vcombine.high %v404, %v404
        %v415 = vcombine.high %v411, %v411
        %v416 = vcombine.high %v160, %v160
        %v418 = vunpack.c.l.s4 1966171168
        %v419 = vunpack.c.0.s8 %v418
        %v420 = vlaneseq
        %v421 = vshrl.u32 %v420, 7
        %v422 = vsub.s32 %v419, %v421
        %v423 = vrot.slane %v160, %v422
        %v425 = vunpack.c.l.s4 1966171168
        %v426 = vunpack.c.0.s8 %v425
        %v427 = vlaneseq
        %v428 = vshrl.u32 %v427, 7
        %v429 = vsub.s32 %v426, %v428
        %v430 = vrot.slane %v416, %v429
        %v431 = vcombine.high %v423, %v423
        %v432 = vcombine.high %v430, %v430
        %v434 = vunpack.c.l.s4 1966171168
        %v435 = vunpack.c.0.s8 %v434
        %v436 = vlaneseq
        %v437 = vshrl.u32 %v436, 7
        %v438 = vsub.s32 %v435, %v437
        %v439 = vrot.slane %v423, %v438
        %v441 = vunpack.c.l.s4 1966171168
        %v442 = vunpack.c.0.s8 %v441
        %v443 = vlaneseq
        %v444 = vshrl.u32 %v443, 7
        %v445 = vsub.s32 %v442, %v444
        %v446 = vrot.slane %v430, %v445
        %v448 = vunpack.c.l.s4 1966171168
        %v449 = vunpack.c.0.s8 %v448
        %v450 = vlaneseq
        %v451 = vshrl.u32 %v450, 7
        %v452 = vsub.s32 %v449, %v451
        %v453 = vrot.slane %v431, %v452
        %v455 = vunpack.c.l.s4 1966171168
        %v456 = vunpack.c.0.s8 %v455
        %v457 = vlaneseq
        %v458 = vshrl.u32 %v457, 7
        %v459 = vsub.s32 %v456, %v458
        %v460 = vrot.slane %v432, %v459
        %v461 = vcombine.high %v439, %v439
        %v462 = vcombine.high %v446, %v446
        %v463 = vcombine.high %v453, %v453
        %v464 = vcombine.high %v460, %v460
        %v465 = vcombine.high %v161, %v161
        %v467 = vunpack.c.l.s4 1966171168
        %v468 = vunpack.c.0.s8 %v467
        %v469 = vlaneseq
        %v470 = vshrl.u32 %v469, 7
        %v471 = vsub.s32 %v468, %v470
        %v472 = vrot.slane %v161, %v471
        %v474 = vunpack.c.l.s4 1966171168
        %v475 = vunpack.c.0.s8 %v474
        %v476 = vlaneseq
        %v477 = vshrl.u32 %v476, 7
        %v478 = vsub.s32 %v475, %v477
        %v479 = vrot.slane %v465, %v478
        %v480 = vcombine.high %v472, %v472
        %v481 = vcombine.high %v479, %v479
        %v483 = vunpack.c.l.s4 1966171168
        %v484 = vunpack.c.0.s8 %v483
        %v485 = vlaneseq
        %v486 = vshrl.u32 %v485, 7
        %v487 = vsub.s32 %v484, %v486
        %v488 = vrot.slane %v472, %v487
        %v490 = vunpack.c.l.s4 1966171168
        %v491 = vunpack.c.0.s8 %v490
        %v492 = vlaneseq
        %v493 = vshrl.u32 %v492, 7
        %v494 = vsub.s32 %v491, %v493
        %v495 = vrot.slane %v479, %v494
        %v497 = vunpack.c.l.s4 1966171168
        %v498 = vunpack.c.0.s8 %v497
        %v499 = vlaneseq
        %v500 = vshrl.u32 %v499, 7
        %v501 = vsub.s32 %v498, %v500
        %v502 = vrot.slane %v480, %v501
        %v504 = vunpack.c.l.s4 1966171168
        %v505 = vunpack.c.0.s8 %v504
        %v506 = vlaneseq
        %v507 = vshrl.u32 %v506, 7
        %v508 = vsub.s32 %v505, %v507
        %v509 = vrot.slane %v481, %v508
        %v510 = vcombine.high %v488, %v488
        %v511 = vcombine.high %v495, %v495
        %v512 = vcombine.high %v502, %v502
        %v513 = vcombine.high %v509, %v509
        %v514 = vcombine.high %v162, %v162
        %v516 = vunpack.c.l.s4 1966171168
        %v517 = vunpack.c.0.s8 %v516
        %v518 = vlaneseq
        %v519 = vshrl.u32 %v518, 7
        %v520 = vsub.s32 %v517, %v519
        %v521 = vrot.slane %v162, %v520
        %v523 = vunpack.c.l.s4 1966171168
        %v524 = vunpack.c.0.s8 %v523
        %v525 = vlaneseq
        %v526 = vshrl.u32 %v525, 7
        %v527 = vsub.s32 %v524, %v526
        %v528 = vrot.slane %v514, %v527
        %v529 = vcombine.high %v521, %v521
        %v530 = vcombine.high %v528, %v528
        %v532 = vunpack.c.l.s4 1966171168
        %v533 = vunpack.c.0.s8 %v532
        %v534 = vlaneseq
        %v535 = vshrl.u32 %v534, 7
        %v536 = vsub.s32 %v533, %v535
        %v537 = vrot.slane %v521, %v536
        %v539 = vunpack.c.l.s4 1966171168
        %v540 = vunpack.c.0.s8 %v539
        %v541 = vlaneseq
        %v542 = vshrl.u32 %v541, 7
        %v543 = vsub.s32 %v540, %v542
        %v544 = vrot.slane %v528, %v543
        %v546 = vunpack.c.l.s4 1966171168
        %v547 = vunpack.c.0.s8 %v546
        %v548 = vlaneseq
        %v549 = vshrl.u32 %v548, 7
        %v550 = vsub.s32 %v547, %v549
        %v551 = vrot.slane %v529, %v550
        %v553 = vunpack.c.l.s4 1966171168
        %v554 = vunpack.c.0.s8 %v553
        %v555 = vlaneseq
        %v556 = vshrl.u32 %v555, 7
        %v557 = vsub.s32 %v554, %v556
        %v558 = vrot.slane %v530, %v557
        %v559 = vcombine.high %v537, %v537
        %v560 = vcombine.high %v544, %v544
        %v561 = vcombine.high %v551, %v551
        %v562 = vcombine.high %v558, %v558
        %vm627 = vcmask 57344
        %628 = vst.msk [vmem:[#allocation2] sm:$0x1] %vm627, %v194
        %629 = vst.msk [vmem:[#allocation2 + $0x2] sm:$0x1] %vm627, %v208
        %630 = vst.msk [vmem:[#allocation2 + $0x4] sm:$0x1] %vm627, %v216
        %631 = vst.msk [vmem:[#allocation2 + $0x6] sm:$0x1] %vm627, %v218
        %632 = vst.msk [vmem:[#allocation2 + $0x8] sm:$0x1] %vm627, %v201
        %633 = vst.msk [vmem:[#allocation2 + $0xa] sm:$0x1] %vm627, %v215
        %634 = vst.msk [vmem:[#allocation2 + $0xc] sm:$0x1] %vm627, %v217
        %635 = vst.msk [vmem:[#allocation2 + $0xe] sm:$0x1] %vm627, %v219
        %636 = vst.msk [vmem:[#allocation2 + $0x10] sm:$0x1] %vm627, %v243
        %637 = vst.msk [vmem:[#allocation2 + $0x12] sm:$0x1] %vm627, %v257
        %638 = vst.msk [vmem:[#allocation2 + $0x14] sm:$0x1] %vm627, %v265
        %639 = vst.msk [vmem:[#allocation2 + $0x16] sm:$0x1] %vm627, %v267
        %640 = vst.msk [vmem:[#allocation2 + $0x18] sm:$0x1] %vm627, %v250
        %641 = vst.msk [vmem:[#allocation2 + $0x1a] sm:$0x1] %vm627, %v264
        %642 = vst.msk [vmem:[#allocation2 + $0x1c] sm:$0x1] %vm627, %v266
        %643 = vst.msk [vmem:[#allocation2 + $0x1e] sm:$0x1] %vm627, %v268
        %644 = vst.msk [vmem:[#allocation2 + $0x20] sm:$0x1] %vm627, %v292
        %645 = vst.msk [vmem:[#allocation2 + $0x22] sm:$0x1] %vm627, %v306
        %646 = vst.msk [vmem:[#allocation2 + $0x24] sm:$0x1] %vm627, %v314
        %647 = vst.msk [vmem:[#allocation2 + $0x26] sm:$0x1] %vm627, %v316
        %648 = vst.msk [vmem:[#allocation2 + $0x28] sm:$0x1] %vm627, %v299
        %649 = vst.msk [vmem:[#allocation2 + $0x2a] sm:$0x1] %vm627, %v313
        %650 = vst.msk [vmem:[#allocation2 + $0x2c] sm:$0x1] %vm627, %v315
        %651 = vst.msk [vmem:[#allocation2 + $0x2e] sm:$0x1] %vm627, %v317
        %652 = vst.msk [vmem:[#allocation2 + $0x30] sm:$0x1] %vm627, %v341
        %653 = vst.msk [vmem:[#allocation2 + $0x32] sm:$0x1] %vm627, %v355
        %654 = vst.msk [vmem:[#allocation2 + $0x34] sm:$0x1] %vm627, %v363
        %655 = vst.msk [vmem:[#allocation2 + $0x36] sm:$0x1] %vm627, %v365
        %656 = vst.msk [vmem:[#allocation2 + $0x38] sm:$0x1] %vm627, %v348
        %657 = vst.msk [vmem:[#allocation2 + $0x3a] sm:$0x1] %vm627, %v362
        %658 = vst.msk [vmem:[#allocation2 + $0x3c] sm:$0x1] %vm627, %v364
        %659 = vst.msk [vmem:[#allocation2 + $0x3e] sm:$0x1] %vm627, %v366
        %660 = vst.msk [vmem:[#allocation2 + $0x40] sm:$0x1] %vm627, %v390
        %661 = vst.msk [vmem:[#allocation2 + $0x42] sm:$0x1] %vm627, %v404
        %662 = vst.msk [vmem:[#allocation2 + $0x44] sm:$0x1] %vm627, %v412
        %663 = vst.msk [vmem:[#allocation2 + $0x46] sm:$0x1] %vm627, %v414
        %664 = vst.msk [vmem:[#allocation2 + $0x48] sm:$0x1] %vm627, %v397
        %665 = vst.msk [vmem:[#allocation2 + $0x4a] sm:$0x1] %vm627, %v411
        %666 = vst.msk [vmem:[#allocation2 + $0x4c] sm:$0x1] %vm627, %v413
        %667 = vst.msk [vmem:[#allocation2 + $0x4e] sm:$0x1] %vm627, %v415
        %668 = vst.msk [vmem:[#allocation2 + $0x50] sm:$0x1] %vm627, %v439
        %669 = vst.msk [vmem:[#allocation2 + $0x52] sm:$0x1] %vm627, %v453
        %670 = vst.msk [vmem:[#allocation2 + $0x54] sm:$0x1] %vm627, %v461
        %671 = vst.msk [vmem:[#allocation2 + $0x56] sm:$0x1] %vm627, %v463
        %672 = vst.msk [vmem:[#allocation2 + $0x58] sm:$0x1] %vm627, %v446
        %673 = vst.msk [vmem:[#allocation2 + $0x5a] sm:$0x1] %vm627, %v460
        %674 = vst.msk [vmem:[#allocation2 + $0x5c] sm:$0x1] %vm627, %v462
        %675 = vst.msk [vmem:[#allocation2 + $0x5e] sm:$0x1] %vm627, %v464
        %676 = vst.msk [vmem:[#allocation2 + $0x60] sm:$0x1] %vm627, %v488
        %677 = vst.msk [vmem:[#allocation2 + $0x62] sm:$0x1] %vm627, %v502
        %678 = vst.msk [vmem:[#allocation2 + $0x64] sm:$0x1] %vm627, %v510
        %679 = vst.msk [vmem:[#allocation2 + $0x66] sm:$0x1] %vm627, %v512
        %680 = vst.msk [vmem:[#allocation2 + $0x68] sm:$0x1] %vm627, %v495
        %681 = vst.msk [vmem:[#allocation2 + $0x6a] sm:$0x1] %vm627, %v509
        %682 = vst.msk [vmem:[#allocation2 + $0x6c] sm:$0x1] %vm627, %v511
        %683 = vst.msk [vmem:[#allocation2 + $0x6e] sm:$0x1] %vm627, %v513
        %684 = vst.msk [vmem:[#allocation2 + $0x70] sm:$0x1] %vm627, %v537
        %685 = vst.msk [vmem:[#allocation2 + $0x72] sm:$0x1] %vm627, %v551
        %686 = vst.msk [vmem:[#allocation2 + $0x74] sm:$0x1] %vm627, %v559
        %687 = vst.msk [vmem:[#allocation2 + $0x76] sm:$0x1] %vm627, %v561
        %688 = vst.msk [vmem:[#allocation2 + $0x78] sm:$0x1] %vm627, %v544
        %689 = vst.msk [vmem:[#allocation2 + $0x7a] sm:$0x1] %vm627, %v558
        %690 = vst.msk [vmem:[#allocation2 + $0x7c] sm:$0x1] %vm627, %v560
        %691 = vst.msk [vmem:[#allocation2 + $0x7e] sm:$0x1] %vm627, %v562
        %v692 = vld [vmem:[%s134] sm:$0xff]
        %v693 = vld [vmem:[%s134 + $0x8] sm:$0xff]
        %v694 = vld [vmem:[%s134 + $0x10] sm:$0xff]
        %v695 = vld [vmem:[%s134 + $0x18] sm:$0xff]
        %v696 = vld [vmem:[%s134 + $0x20] sm:$0xff]
        %v697 = vld [vmem:[%s134 + $0x28] sm:$0xff]
        %v698 = vld [vmem:[%s134 + $0x30] sm:$0xff]
        %v699 = vld [vmem:[%s134 + $0x38] sm:$0xff]
        %v708 = vcombine.high %v692, %v692
        %v710 = vunpack.c.l.s4 1966171168
        %v711 = vunpack.c.0.s8 %v710
        %v712 = vlaneseq
        %v713 = vshrl.u32 %v712, 7
        %v714 = vsub.s32 %v711, %v713
        %v715 = vrot.slane %v692, %v714
        %v717 = vunpack.c.l.s4 1966171168
        %v718 = vunpack.c.0.s8 %v717
        %v719 = vlaneseq
        %v720 = vshrl.u32 %v719, 7
        %v721 = vsub.s32 %v718, %v720
        %v722 = vrot.slane %v708, %v721
        %v723 = vcombine.high %v715, %v715
        %v724 = vcombine.high %v722, %v722
        %v726 = vunpack.c.l.s4 1966171168
        %v727 = vunpack.c.0.s8 %v726
        %v728 = vlaneseq
        %v729 = vshrl.u32 %v728, 7
        %v730 = vsub.s32 %v727, %v729
        %v731 = vrot.slane %v715, %v730
        %v733 = vunpack.c.l.s4 1966171168
        %v734 = vunpack.c.0.s8 %v733
        %v735 = vlaneseq
        %v736 = vshrl.u32 %v735, 7
        %v737 = vsub.s32 %v734, %v736
        %v738 = vrot.slane %v722, %v737
        %v740 = vunpack.c.l.s4 1966171168
        %v741 = vunpack.c.0.s8 %v740
        %v742 = vlaneseq
        %v743 = vshrl.u32 %v742, 7
        %v744 = vsub.s32 %v741, %v743
        %v745 = vrot.slane %v723, %v744
        %v747 = vunpack.c.l.s4 1966171168
        %v748 = vunpack.c.0.s8 %v747
        %v749 = vlaneseq
        %v750 = vshrl.u32 %v749, 7
        %v751 = vsub.s32 %v748, %v750
        %v752 = vrot.slane %v724, %v751
        %v753 = vcombine.high %v731, %v731
        %v754 = vcombine.high %v738, %v738
        %v755 = vcombine.high %v745, %v745
        %v756 = vcombine.high %v752, %v752
        %v757 = vcombine.high %v693, %v693
        %v759 = vunpack.c.l.s4 1966171168
        %v760 = vunpack.c.0.s8 %v759
        %v761 = vlaneseq
        %v762 = vshrl.u32 %v761, 7
        %v763 = vsub.s32 %v760, %v762
        %v764 = vrot.slane %v693, %v763
        %v766 = vunpack.c.l.s4 1966171168
        %v767 = vunpack.c.0.s8 %v766
        %v768 = vlaneseq
        %v769 = vshrl.u32 %v768, 7
        %v770 = vsub.s32 %v767, %v769
        %v771 = vrot.slane %v757, %v770
        %v772 = vcombine.high %v764, %v764
        %v773 = vcombine.high %v771, %v771
        %v775 = vunpack.c.l.s4 1966171168
        %v776 = vunpack.c.0.s8 %v775
        %v777 = vlaneseq
        %v778 = vshrl.u32 %v777, 7
        %v779 = vsub.s32 %v776, %v778
        %v780 = vrot.slane %v764, %v779
        %v782 = vunpack.c.l.s4 1966171168
        %v783 = vunpack.c.0.s8 %v782
        %v784 = vlaneseq
        %v785 = vshrl.u32 %v784, 7
        %v786 = vsub.s32 %v783, %v785
        %v787 = vrot.slane %v771, %v786
        %v789 = vunpack.c.l.s4 1966171168
        %v790 = vunpack.c.0.s8 %v789
        %v791 = vlaneseq
        %v792 = vshrl.u32 %v791, 7
        %v793 = vsub.s32 %v790, %v792
        %v794 = vrot.slane %v772, %v793
        %v796 = vunpack.c.l.s4 1966171168
        %v797 = vunpack.c.0.s8 %v796
        %v798 = vlaneseq
        %v799 = vshrl.u32 %v798, 7
        %v800 = vsub.s32 %v797, %v799
        %v801 = vrot.slane %v773, %v800
        %v802 = vcombine.high %v780, %v780
        %v803 = vcombine.high %v787, %v787
        %v804 = vcombine.high %v794, %v794
        %v805 = vcombine.high %v801, %v801
        %v806 = vcombine.high %v694, %v694
        %v808 = vunpack.c.l.s4 1966171168
        %v809 = vunpack.c.0.s8 %v808
        %v810 = vlaneseq
        %v811 = vshrl.u32 %v810, 7
        %v812 = vsub.s32 %v809, %v811
        %v813 = vrot.slane %v694, %v812
        %v815 = vunpack.c.l.s4 1966171168
        %v816 = vunpack.c.0.s8 %v815
        %v817 = vlaneseq
        %v818 = vshrl.u32 %v817, 7
        %v819 = vsub.s32 %v816, %v818
        %v820 = vrot.slane %v806, %v819
        %v821 = vcombine.high %v813, %v813
        %v822 = vcombine.high %v820, %v820
        %v824 = vunpack.c.l.s4 1966171168
        %v825 = vunpack.c.0.s8 %v824
        %v826 = vlaneseq
        %v827 = vshrl.u32 %v826, 7
        %v828 = vsub.s32 %v825, %v827
        %v829 = vrot.slane %v813, %v828
        %v831 = vunpack.c.l.s4 1966171168
        %v832 = vunpack.c.0.s8 %v831
        %v833 = vlaneseq
        %v834 = vshrl.u32 %v833, 7
        %v835 = vsub.s32 %v832, %v834
        %v836 = vrot.slane %v820, %v835
        %v838 = vunpack.c.l.s4 1966171168
        %v839 = vunpack.c.0.s8 %v838
        %v840 = vlaneseq
        %v841 = vshrl.u32 %v840, 7
        %v842 = vsub.s32 %v839, %v841
        %v843 = vrot.slane %v821, %v842
        %v845 = vunpack.c.l.s4 1966171168
        %v846 = vunpack.c.0.s8 %v845
        %v847 = vlaneseq
        %v848 = vshrl.u32 %v847, 7
        %v849 = vsub.s32 %v846, %v848
        %v850 = vrot.slane %v822, %v849
        %v851 = vcombine.high %v829, %v829
        %v852 = vcombine.high %v836, %v836
        %v853 = vcombine.high %v843, %v843
        %v854 = vcombine.high %v850, %v850
        %v855 = vcombine.high %v695, %v695
        %v857 = vunpack.c.l.s4 1966171168
        %v858 = vunpack.c.0.s8 %v857
        %v859 = vlaneseq
        %v860 = vshrl.u32 %v859, 7
        %v861 = vsub.s32 %v858, %v860
        %v862 = vrot.slane %v695, %v861
        %v864 = vunpack.c.l.s4 1966171168
        %v865 = vunpack.c.0.s8 %v864
        %v866 = vlaneseq
        %v867 = vshrl.u32 %v866, 7
        %v868 = vsub.s32 %v865, %v867
        %v869 = vrot.slane %v855, %v868
        %v870 = vcombine.high %v862, %v862
        %v871 = vcombine.high %v869, %v869
        %v873 = vunpack.c.l.s4 1966171168
        %v874 = vunpack.c.0.s8 %v873
        %v875 = vlaneseq
        %v876 = vshrl.u32 %v875, 7
        %v877 = vsub.s32 %v874, %v876
        %v878 = vrot.slane %v862, %v877
        %v880 = vunpack.c.l.s4 1966171168
        %v881 = vunpack.c.0.s8 %v880
        %v882 = vlaneseq
        %v883 = vshrl.u32 %v882, 7
        %v884 = vsub.s32 %v881, %v883
        %v885 = vrot.slane %v869, %v884
        %v887 = vunpack.c.l.s4 1966171168
        %v888 = vunpack.c.0.s8 %v887
        %v889 = vlaneseq
        %v890 = vshrl.u32 %v889, 7
        %v891 = vsub.s32 %v888, %v890
        %v892 = vrot.slane %v870, %v891
        %v894 = vunpack.c.l.s4 1966171168
        %v895 = vunpack.c.0.s8 %v894
        %v896 = vlaneseq
        %v897 = vshrl.u32 %v896, 7
        %v898 = vsub.s32 %v895, %v897
        %v899 = vrot.slane %v871, %v898
        %v900 = vcombine.high %v878, %v878
        %v901 = vcombine.high %v885, %v885
        %v902 = vcombine.high %v892, %v892
        %v903 = vcombine.high %v899, %v899
        %v904 = vcombine.high %v696, %v696
        %v906 = vunpack.c.l.s4 1966171168
        %v907 = vunpack.c.0.s8 %v906
        %v908 = vlaneseq
        %v909 = vshrl.u32 %v908, 7
        %v910 = vsub.s32 %v907, %v909
        %v911 = vrot.slane %v696, %v910
        %v913 = vunpack.c.l.s4 1966171168
        %v914 = vunpack.c.0.s8 %v913
        %v915 = vlaneseq
        %v916 = vshrl.u32 %v915, 7
        %v917 = vsub.s32 %v914, %v916
        %v918 = vrot.slane %v904, %v917
        %v919 = vcombine.high %v911, %v911
        %v920 = vcombine.high %v918, %v918
        %v922 = vunpack.c.l.s4 1966171168
        %v923 = vunpack.c.0.s8 %v922
        %v924 = vlaneseq
        %v925 = vshrl.u32 %v924, 7
        %v926 = vsub.s32 %v923, %v925
        %v927 = vrot.slane %v911, %v926
        %v929 = vunpack.c.l.s4 1966171168
        %v930 = vunpack.c.0.s8 %v929
        %v931 = vlaneseq
        %v932 = vshrl.u32 %v931, 7
        %v933 = vsub.s32 %v930, %v932
        %v934 = vrot.slane %v918, %v933
        %v936 = vunpack.c.l.s4 1966171168
        %v937 = vunpack.c.0.s8 %v936
        %v938 = vlaneseq
        %v939 = vshrl.u32 %v938, 7
        %v940 = vsub.s32 %v937, %v939
        %v941 = vrot.slane %v919, %v940
        %v943 = vunpack.c.l.s4 1966171168
        %v944 = vunpack.c.0.s8 %v943
        %v945 = vlaneseq
        %v946 = vshrl.u32 %v945, 7
        %v947 = vsub.s32 %v944, %v946
        %v948 = vrot.slane %v920, %v947
        %v949 = vcombine.high %v927, %v927
        %v950 = vcombine.high %v934, %v934
        %v951 = vcombine.high %v941, %v941
        %v952 = vcombine.high %v948, %v948
        %v953 = vcombine.high %v697, %v697
        %v955 = vunpack.c.l.s4 1966171168
        %v956 = vunpack.c.0.s8 %v955
        %v957 = vlaneseq
        %v958 = vshrl.u32 %v957, 7
        %v959 = vsub.s32 %v956, %v958
        %v960 = vrot.slane %v697, %v959
        %v962 = vunpack.c.l.s4 1966171168
        %v963 = vunpack.c.0.s8 %v962
        %v964 = vlaneseq
        %v965 = vshrl.u32 %v964, 7
        %v966 = vsub.s32 %v963, %v965
        %v967 = vrot.slane %v953, %v966
        %v968 = vcombine.high %v960, %v960
        %v969 = vcombine.high %v967, %v967
        %v971 = vunpack.c.l.s4 1966171168
        %v972 = vunpack.c.0.s8 %v971
        %v973 = vlaneseq
        %v974 = vshrl.u32 %v973, 7
        %v975 = vsub.s32 %v972, %v974
        %v976 = vrot.slane %v960, %v975
        %v978 = vunpack.c.l.s4 1966171168
        %v979 = vunpack.c.0.s8 %v978
        %v980 = vlaneseq
        %v981 = vshrl.u32 %v980, 7
        %v982 = vsub.s32 %v979, %v981
        %v983 = vrot.slane %v967, %v982
        %v985 = vunpack.c.l.s4 1966171168
        %v986 = vunpack.c.0.s8 %v985
        %v987 = vlaneseq
        %v988 = vshrl.u32 %v987, 7
        %v989 = vsub.s32 %v986, %v988
        %v990 = vrot.slane %v968, %v989
        %v992 = vunpack.c.l.s4 1966171168
        %v993 = vunpack.c.0.s8 %v992
        %v994 = vlaneseq
        %v995 = vshrl.u32 %v994, 7
        %v996 = vsub.s32 %v993, %v995
        %v997 = vrot.slane %v969, %v996
        %v998 = vcombine.high %v976, %v976
        %v999 = vcombine.high %v983, %v983
        %v1000 = vcombine.high %v990, %v990
        %v1001 = vcombine.high %v997, %v997
        %v1002 = vcombine.high %v698, %v698
        %v1004 = vunpack.c.l.s4 1966171168
        %v1005 = vunpack.c.0.s8 %v1004
        %v1006 = vlaneseq
        %v1007 = vshrl.u32 %v1006, 7
        %v1008 = vsub.s32 %v1005, %v1007
        %v1009 = vrot.slane %v698, %v1008
        %v1011 = vunpack.c.l.s4 1966171168
        %v1012 = vunpack.c.0.s8 %v1011
        %v1013 = vlaneseq
        %v1014 = vshrl.u32 %v1013, 7
        %v1015 = vsub.s32 %v1012, %v1014
        %v1016 = vrot.slane %v1002, %v1015
        %v1017 = vcombine.high %v1009, %v1009
        %v1018 = vcombine.high %v1016, %v1016
        %v1020 = vunpack.c.l.s4 1966171168
        %v1021 = vunpack.c.0.s8 %v1020
        %v1022 = vlaneseq
        %v1023 = vshrl.u32 %v1022, 7
        %v1024 = vsub.s32 %v1021, %v1023
        %v1025 = vrot.slane %v1009, %v1024
        %v1027 = vunpack.c.l.s4 1966171168
        %v1028 = vunpack.c.0.s8 %v1027
        %v1029 = vlaneseq
        %v1030 = vshrl.u32 %v1029, 7
        %v1031 = vsub.s32 %v1028, %v1030
        %v1032 = vrot.slane %v1016, %v1031
        %v1034 = vunpack.c.l.s4 1966171168
        %v1035 = vunpack.c.0.s8 %v1034
        %v1036 = vlaneseq
        %v1037 = vshrl.u32 %v1036, 7
        %v1038 = vsub.s32 %v1035, %v1037
        %v1039 = vrot.slane %v1017, %v1038
        %v1041 = vunpack.c.l.s4 1966171168
        %v1042 = vunpack.c.0.s8 %v1041
        %v1043 = vlaneseq
        %v1044 = vshrl.u32 %v1043, 7
        %v1045 = vsub.s32 %v1042, %v1044
        %v1046 = vrot.slane %v1018, %v1045
        %v1047 = vcombine.high %v1025, %v1025
        %v1048 = vcombine.high %v1032, %v1032
        %v1049 = vcombine.high %v1039, %v1039
        %v1050 = vcombine.high %v1046, %v1046
        %v1051 = vcombine.high %v699, %v699
        %v1053 = vunpack.c.l.s4 1966171168
        %v1054 = vunpack.c.0.s8 %v1053
        %v1055 = vlaneseq
        %v1056 = vshrl.u32 %v1055, 7
        %v1057 = vsub.s32 %v1054, %v1056
        %v1058 = vrot.slane %v699, %v1057
        %v1060 = vunpack.c.l.s4 1966171168
        %v1061 = vunpack.c.0.s8 %v1060
        %v1062 = vlaneseq
        %v1063 = vshrl.u32 %v1062, 7
        %v1064 = vsub.s32 %v1061, %v1063
        %v1065 = vrot.slane %v1051, %v1064
        %v1066 = vcombine.high %v1058, %v1058
        %v1067 = vcombine.high %v1065, %v1065
        %v1069 = vunpack.c.l.s4 1966171168
        %v1070 = vunpack.c.0.s8 %v1069
        %v1071 = vlaneseq
        %v1072 = vshrl.u32 %v1071, 7
        %v1073 = vsub.s32 %v1070, %v1072
        %v1074 = vrot.slane %v1058, %v1073
        %v1076 = vunpack.c.l.s4 1966171168
        %v1077 = vunpack.c.0.s8 %v1076
        %v1078 = vlaneseq
        %v1079 = vshrl.u32 %v1078, 7
        %v1080 = vsub.s32 %v1077, %v1079
        %v1081 = vrot.slane %v1065, %v1080
        %v1083 = vunpack.c.l.s4 1966171168
        %v1084 = vunpack.c.0.s8 %v1083
        %v1085 = vlaneseq
        %v1086 = vshrl.u32 %v1085, 7
        %v1087 = vsub.s32 %v1084, %v1086
        %v1088 = vrot.slane %v1066, %v1087
        %v1090 = vunpack.c.l.s4 1966171168
        %v1091 = vunpack.c.0.s8 %v1090
        %v1092 = vlaneseq
        %v1093 = vshrl.u32 %v1092, 7
        %v1094 = vsub.s32 %v1091, %v1093
        %v1095 = vrot.slane %v1067, %v1094
        %v1096 = vcombine.high %v1074, %v1074
        %v1097 = vcombine.high %v1081, %v1081
        %v1098 = vcombine.high %v1088, %v1088
        %v1099 = vcombine.high %v1095, %v1095
        %v1100 = vlaneseq
        %v1101 = vshrl.u32 %v1100, 7
        %v1102 = vsub.s32 0, %v1101
        %v1103 = vrot.slane %v731, %v1102
        %v1104 = vlaneseq
        %v1105 = vshrl.u32 %v1104, 7
        %v1106 = vsub.s32 0, %v1105
        %v1107 = vrot.slane %v745, %v1106
        %v1108 = vlaneseq
        %v1109 = vshrl.u32 %v1108, 7
        %v1110 = vsub.s32 0, %v1109
        %v1111 = vrot.slane %v753, %v1110
        %v1112 = vlaneseq
        %v1113 = vshrl.u32 %v1112, 7
        %v1114 = vsub.s32 0, %v1113
        %v1115 = vrot.slane %v755, %v1114
        %v1116 = vlaneseq
        %v1117 = vshrl.u32 %v1116, 7
        %v1118 = vsub.s32 0, %v1117
        %v1119 = vrot.slane %v738, %v1118
        %v1120 = vlaneseq
        %v1121 = vshrl.u32 %v1120, 7
        %v1122 = vsub.s32 0, %v1121
        %v1123 = vrot.slane %v752, %v1122
        %v1124 = vlaneseq
        %v1125 = vshrl.u32 %v1124, 7
        %v1126 = vsub.s32 0, %v1125
        %v1127 = vrot.slane %v754, %v1126
        %v1128 = vlaneseq
        %v1129 = vshrl.u32 %v1128, 7
        %v1130 = vsub.s32 0, %v1129
        %v1131 = vrot.slane %v756, %v1130
        %v1132 = vlaneseq
        %v1133 = vshrl.u32 %v1132, 7
        %v1134 = vsub.s32 0, %v1133
        %v1135 = vrot.slane %v780, %v1134
        %v1136 = vlaneseq
        %v1137 = vshrl.u32 %v1136, 7
        %v1138 = vsub.s32 0, %v1137
        %v1139 = vrot.slane %v794, %v1138
        %v1140 = vlaneseq
        %v1141 = vshrl.u32 %v1140, 7
        %v1142 = vsub.s32 0, %v1141
        %v1143 = vrot.slane %v802, %v1142
        %v1144 = vlaneseq
        %v1145 = vshrl.u32 %v1144, 7
        %v1146 = vsub.s32 0, %v1145
        %v1147 = vrot.slane %v804, %v1146
        %v1148 = vlaneseq
        %v1149 = vshrl.u32 %v1148, 7
        %v1150 = vsub.s32 0, %v1149
        %v1151 = vrot.slane %v787, %v1150
        %v1152 = vlaneseq
        %v1153 = vshrl.u32 %v1152, 7
        %v1154 = vsub.s32 0, %v1153
        %v1155 = vrot.slane %v801, %v1154
        %v1156 = vlaneseq
        %v1157 = vshrl.u32 %v1156, 7
        %v1158 = vsub.s32 0, %v1157
        %v1159 = vrot.slane %v803, %v1158
        %v1160 = vlaneseq
        %v1161 = vshrl.u32 %v1160, 7
        %v1162 = vsub.s32 0, %v1161
        %v1163 = vrot.slane %v805, %v1162
        %v1164 = vlaneseq
        %v1165 = vshrl.u32 %v1164, 7
        %v1166 = vsub.s32 0, %v1165
        %v1167 = vrot.slane %v829, %v1166
        %v1168 = vlaneseq
        %v1169 = vshrl.u32 %v1168, 7
        %v1170 = vsub.s32 0, %v1169
        %v1171 = vrot.slane %v843, %v1170
        %v1172 = vlaneseq
        %v1173 = vshrl.u32 %v1172, 7
        %v1174 = vsub.s32 0, %v1173
        %v1175 = vrot.slane %v851, %v1174
        %v1176 = vlaneseq
        %v1177 = vshrl.u32 %v1176, 7
        %v1178 = vsub.s32 0, %v1177
        %v1179 = vrot.slane %v853, %v1178
        %v1180 = vlaneseq
        %v1181 = vshrl.u32 %v1180, 7
        %v1182 = vsub.s32 0, %v1181
        %v1183 = vrot.slane %v836, %v1182
        %v1184 = vlaneseq
        %v1185 = vshrl.u32 %v1184, 7
        %v1186 = vsub.s32 0, %v1185
        %v1187 = vrot.slane %v850, %v1186
        %v1188 = vlaneseq
        %v1189 = vshrl.u32 %v1188, 7
        %v1190 = vsub.s32 0, %v1189
        %v1191 = vrot.slane %v852, %v1190
        %v1192 = vlaneseq
        %v1193 = vshrl.u32 %v1192, 7
        %v1194 = vsub.s32 0, %v1193
        %v1195 = vrot.slane %v854, %v1194
        %v1196 = vlaneseq
        %v1197 = vshrl.u32 %v1196, 7
        %v1198 = vsub.s32 0, %v1197
        %v1199 = vrot.slane %v878, %v1198
        %v1200 = vlaneseq
        %v1201 = vshrl.u32 %v1200, 7
        %v1202 = vsub.s32 0, %v1201
        %v1203 = vrot.slane %v892, %v1202
        %v1204 = vlaneseq
        %v1205 = vshrl.u32 %v1204, 7
        %v1206 = vsub.s32 0, %v1205
        %v1207 = vrot.slane %v900, %v1206
        %v1208 = vlaneseq
        %v1209 = vshrl.u32 %v1208, 7
        %v1210 = vsub.s32 0, %v1209
        %v1211 = vrot.slane %v902, %v1210
        %v1212 = vlaneseq
        %v1213 = vshrl.u32 %v1212, 7
        %v1214 = vsub.s32 0, %v1213
        %v1215 = vrot.slane %v885, %v1214
        %v1216 = vlaneseq
        %v1217 = vshrl.u32 %v1216, 7
        %v1218 = vsub.s32 0, %v1217
        %v1219 = vrot.slane %v899, %v1218
        %v1220 = vlaneseq
        %v1221 = vshrl.u32 %v1220, 7
        %v1222 = vsub.s32 0, %v1221
        %v1223 = vrot.slane %v901, %v1222
        %v1224 = vlaneseq
        %v1225 = vshrl.u32 %v1224, 7
        %v1226 = vsub.s32 0, %v1225
        %v1227 = vrot.slane %v903, %v1226
        %v1228 = vlaneseq
        %v1229 = vshrl.u32 %v1228, 7
        %v1230 = vsub.s32 0, %v1229
        %v1231 = vrot.slane %v927, %v1230
        %v1232 = vlaneseq
        %v1233 = vshrl.u32 %v1232, 7
        %v1234 = vsub.s32 0, %v1233
        %v1235 = vrot.slane %v941, %v1234
        %v1236 = vlaneseq
        %v1237 = vshrl.u32 %v1236, 7
        %v1238 = vsub.s32 0, %v1237
        %v1239 = vrot.slane %v949, %v1238
        %v1240 = vlaneseq
        %v1241 = vshrl.u32 %v1240, 7
        %v1242 = vsub.s32 0, %v1241
        %v1243 = vrot.slane %v951, %v1242
        %v1244 = vlaneseq
        %v1245 = vshrl.u32 %v1244, 7
        %v1246 = vsub.s32 0, %v1245
        %v1247 = vrot.slane %v934, %v1246
        %v1248 = vlaneseq
        %v1249 = vshrl.u32 %v1248, 7
        %v1250 = vsub.s32 0, %v1249
        %v1251 = vrot.slane %v948, %v1250
        %v1252 = vlaneseq
        %v1253 = vshrl.u32 %v1252, 7
        %v1254 = vsub.s32 0, %v1253
        %v1255 = vrot.slane %v950, %v1254
        %v1256 = vlaneseq
        %v1257 = vshrl.u32 %v1256, 7
        %v1258 = vsub.s32 0, %v1257
        %v1259 = vrot.slane %v952, %v1258
        %v1260 = vlaneseq
        %v1261 = vshrl.u32 %v1260, 7
        %v1262 = vsub.s32 0, %v1261
        %v1263 = vrot.slane %v976, %v1262
        %v1264 = vlaneseq
        %v1265 = vshrl.u32 %v1264, 7
        %v1266 = vsub.s32 0, %v1265
        %v1267 = vrot.slane %v990, %v1266
        %v1268 = vlaneseq
        %v1269 = vshrl.u32 %v1268, 7
        %v1270 = vsub.s32 0, %v1269
        %v1271 = vrot.slane %v998, %v1270
        %v1272 = vlaneseq
        %v1273 = vshrl.u32 %v1272, 7
        %v1274 = vsub.s32 0, %v1273
        %v1275 = vrot.slane %v1000, %v1274
        %v1276 = vlaneseq
        %v1277 = vshrl.u32 %v1276, 7
        %v1278 = vsub.s32 0, %v1277
        %v1279 = vrot.slane %v983, %v1278
        %v1280 = vlaneseq
        %v1281 = vshrl.u32 %v1280, 7
        %v1282 = vsub.s32 0, %v1281
        %v1283 = vrot.slane %v997, %v1282
        %v1284 = vlaneseq
        %v1285 = vshrl.u32 %v1284, 7
        %v1286 = vsub.s32 0, %v1285
        %v1287 = vrot.slane %v999, %v1286
        %v1288 = vlaneseq
        %v1289 = vshrl.u32 %v1288, 7
        %v1290 = vsub.s32 0, %v1289
        %v1291 = vrot.slane %v1001, %v1290
        %v1292 = vlaneseq
        %v1293 = vshrl.u32 %v1292, 7
        %v1294 = vsub.s32 0, %v1293
        %v1295 = vrot.slane %v1025, %v1294
        %v1296 = vlaneseq
        %v1297 = vshrl.u32 %v1296, 7
        %v1298 = vsub.s32 0, %v1297
        %v1299 = vrot.slane %v1039, %v1298
        %v1300 = vlaneseq
        %v1301 = vshrl.u32 %v1300, 7
        %v1302 = vsub.s32 0, %v1301
        %v1303 = vrot.slane %v1047, %v1302
        %v1304 = vlaneseq
        %v1305 = vshrl.u32 %v1304, 7
        %v1306 = vsub.s32 0, %v1305
        %v1307 = vrot.slane %v1049, %v1306
        %v1308 = vlaneseq
        %v1309 = vshrl.u32 %v1308, 7
        %v1310 = vsub.s32 0, %v1309
        %v1311 = vrot.slane %v1032, %v1310
        %v1312 = vlaneseq
        %v1313 = vshrl.u32 %v1312, 7
        %v1314 = vsub.s32 0, %v1313
        %v1315 = vrot.slane %v1046, %v1314
        %v1316 = vlaneseq
        %v1317 = vshrl.u32 %v1316, 7
        %v1318 = vsub.s32 0, %v1317
        %v1319 = vrot.slane %v1048, %v1318
        %v1320 = vlaneseq
        %v1321 = vshrl.u32 %v1320, 7
        %v1322 = vsub.s32 0, %v1321
        %v1323 = vrot.slane %v1050, %v1322
        %v1324 = vlaneseq
        %v1325 = vshrl.u32 %v1324, 7
        %v1326 = vsub.s32 0, %v1325
        %v1327 = vrot.slane %v1074, %v1326
        %v1328 = vlaneseq
        %v1329 = vshrl.u32 %v1328, 7
        %v1330 = vsub.s32 0, %v1329
        %v1331 = vrot.slane %v1088, %v1330
        %v1332 = vlaneseq
        %v1333 = vshrl.u32 %v1332, 7
        %v1334 = vsub.s32 0, %v1333
        %v1335 = vrot.slane %v1096, %v1334
        %v1336 = vlaneseq
        %v1337 = vshrl.u32 %v1336, 7
        %v1338 = vsub.s32 0, %v1337
        %v1339 = vrot.slane %v1098, %v1338
        %v1340 = vlaneseq
        %v1341 = vshrl.u32 %v1340, 7
        %v1342 = vsub.s32 0, %v1341
        %v1343 = vrot.slane %v1081, %v1342
        %v1344 = vlaneseq
        %v1345 = vshrl.u32 %v1344, 7
        %v1346 = vsub.s32 0, %v1345
        %v1347 = vrot.slane %v1095, %v1346
        %v1348 = vlaneseq
        %v1349 = vshrl.u32 %v1348, 7
        %v1350 = vsub.s32 0, %v1349
        %v1351 = vrot.slane %v1097, %v1350
        %v1352 = vlaneseq
        %v1353 = vshrl.u32 %v1352, 7
        %v1354 = vsub.s32 0, %v1353
        %v1355 = vrot.slane %v1099, %v1354
        %1356 = vrot.lane.b32.xlu0 %v1103, 120
        %v1357 = vpop.permute.xlu0 %1356
        %1358 = vrot.lane.b32.xlu0 %v1107, 120
        %v1359 = vpop.permute.xlu0 %1358
        %1360 = vrot.lane.b32.xlu0 %v1111, 120
        %v1361 = vpop.permute.xlu0 %1360
        %1362 = vrot.lane.b32.xlu0 %v1115, 120
        %v1363 = vpop.permute.xlu0 %1362
        %1364 = vrot.lane.b32.xlu0 %v1119, 120
        %v1365 = vpop.permute.xlu0 %1364
        %1366 = vrot.lane.b32.xlu0 %v1123, 120
        %v1367 = vpop.permute.xlu0 %1366
        %1368 = vrot.lane.b32.xlu0 %v1127, 120
        %v1369 = vpop.permute.xlu0 %1368
        %1370 = vrot.lane.b32.xlu0 %v1131, 120
        %v1371 = vpop.permute.xlu0 %1370
        %1372 = vrot.lane.b32.xlu0 %v1135, 120
        %v1373 = vpop.permute.xlu0 %1372
        %1374 = vrot.lane.b32.xlu0 %v1139, 120
        %v1375 = vpop.permute.xlu0 %1374
        %1376 = vrot.lane.b32.xlu0 %v1143, 120
        %v1377 = vpop.permute.xlu0 %1376
        %1378 = vrot.lane.b32.xlu0 %v1147, 120
        %v1379 = vpop.permute.xlu0 %1378
        %1380 = vrot.lane.b32.xlu0 %v1151, 120
        %v1381 = vpop.permute.xlu0 %1380
        %1382 = vrot.lane.b32.xlu0 %v1155, 120
        %v1383 = vpop.permute.xlu0 %1382
        %1384 = vrot.lane.b32.xlu0 %v1159, 120
        %v1385 = vpop.permute.xlu0 %1384
        %1386 = vrot.lane.b32.xlu0 %v1163, 120
        %v1387 = vpop.permute.xlu0 %1386
        %1388 = vrot.lane.b32.xlu0 %v1167, 120
        %v1389 = vpop.permute.xlu0 %1388
        %1390 = vrot.lane.b32.xlu0 %v1171, 120
        %v1391 = vpop.permute.xlu0 %1390
        %1392 = vrot.lane.b32.xlu0 %v1175, 120
        %v1393 = vpop.permute.xlu0 %1392
        %1394 = vrot.lane.b32.xlu0 %v1179, 120
        %v1395 = vpop.permute.xlu0 %1394
        %1396 = vrot.lane.b32.xlu0 %v1183, 120
        %v1397 = vpop.permute.xlu0 %1396
        %1398 = vrot.lane.b32.xlu0 %v1187, 120
        %v1399 = vpop.permute.xlu0 %1398
        %1400 = vrot.lane.b32.xlu0 %v1191, 120
        %v1401 = vpop.permute.xlu0 %1400
        %1402 = vrot.lane.b32.xlu0 %v1195, 120
        %v1403 = vpop.permute.xlu0 %1402
        %1404 = vrot.lane.b32.xlu0 %v1199, 120
        %v1405 = vpop.permute.xlu0 %1404
        %1406 = vrot.lane.b32.xlu0 %v1203, 120
        %v1407 = vpop.permute.xlu0 %1406
        %1408 = vrot.lane.b32.xlu0 %v1207, 120
        %v1409 = vpop.permute.xlu0 %1408
        %1410 = vrot.lane.b32.xlu0 %v1211, 120
        %v1411 = vpop.permute.xlu0 %1410
        %1412 = vrot.lane.b32.xlu0 %v1215, 120
        %v1413 = vpop.permute.xlu0 %1412
        %1414 = vrot.lane.b32.xlu0 %v1219, 120
        %v1415 = vpop.permute.xlu0 %1414
        %1416 = vrot.lane.b32.xlu0 %v1223, 120
        %v1417 = vpop.permute.xlu0 %1416
        %1418 = vrot.lane.b32.xlu0 %v1227, 120
        %v1419 = vpop.permute.xlu0 %1418
        %1420 = vrot.lane.b32.xlu0 %v1231, 120
        %v1421 = vpop.permute.xlu0 %1420
        %1422 = vrot.lane.b32.xlu0 %v1235, 120
        %v1423 = vpop.permute.xlu0 %1422
        %1424 = vrot.lane.b32.xlu0 %v1239, 120
        %v1425 = vpop.permute.xlu0 %1424
        %1426 = vrot.lane.b32.xlu0 %v1243, 120
        %v1427 = vpop.permute.xlu0 %1426
        %1428 = vrot.lane.b32.xlu0 %v1247, 120
        %v1429 = vpop.permute.xlu0 %1428
        %1430 = vrot.lane.b32.xlu0 %v1251, 120
        %v1431 = vpop.permute.xlu0 %1430
        %1432 = vrot.lane.b32.xlu0 %v1255, 120
        %v1433 = vpop.permute.xlu0 %1432
        %1434 = vrot.lane.b32.xlu0 %v1259, 120
        %v1435 = vpop.permute.xlu0 %1434
        %1436 = vrot.lane.b32.xlu0 %v1263, 120
        %v1437 = vpop.permute.xlu0 %1436
        %1438 = vrot.lane.b32.xlu0 %v1267, 120
        %v1439 = vpop.permute.xlu0 %1438
        %1440 = vrot.lane.b32.xlu0 %v1271, 120
        %v1441 = vpop.permute.xlu0 %1440
        %1442 = vrot.lane.b32.xlu0 %v1275, 120
        %v1443 = vpop.permute.xlu0 %1442
        %1444 = vrot.lane.b32.xlu0 %v1279, 120
        %v1445 = vpop.permute.xlu0 %1444
        %1446 = vrot.lane.b32.xlu0 %v1283, 120
        %v1447 = vpop.permute.xlu0 %1446
        %1448 = vrot.lane.b32.xlu0 %v1287, 120
        %v1449 = vpop.permute.xlu0 %1448
        %1450 = vrot.lane.b32.xlu0 %v1291, 120
        %v1451 = vpop.permute.xlu0 %1450
        %1452 = vrot.lane.b32.xlu0 %v1295, 120
        %v1453 = vpop.permute.xlu0 %1452
        %1454 = vrot.lane.b32.xlu0 %v1299, 120
        %v1455 = vpop.permute.xlu0 %1454
        %1456 = vrot.lane.b32.xlu0 %v1303, 120
        %v1457 = vpop.permute.xlu0 %1456
        %1458 = vrot.lane.b32.xlu0 %v1307, 120
        %v1459 = vpop.permute.xlu0 %1458
        %1460 = vrot.lane.b32.xlu0 %v1311, 120
        %v1461 = vpop.permute.xlu0 %1460
        %1462 = vrot.lane.b32.xlu0 %v1315, 120
        %v1463 = vpop.permute.xlu0 %1462
        %1464 = vrot.lane.b32.xlu0 %v1319, 120
        %v1465 = vpop.permute.xlu0 %1464
        %1466 = vrot.lane.b32.xlu0 %v1323, 120
        %v1467 = vpop.permute.xlu0 %1466
        %1468 = vrot.lane.b32.xlu0 %v1327, 120
        %v1469 = vpop.permute.xlu0 %1468
        %1470 = vrot.lane.b32.xlu0 %v1331, 120
        %v1471 = vpop.permute.xlu0 %1470
        %1472 = vrot.lane.b32.xlu0 %v1335, 120
        %v1473 = vpop.permute.xlu0 %1472
        %1474 = vrot.lane.b32.xlu0 %v1339, 120
        %v1475 = vpop.permute.xlu0 %1474
        %1476 = vrot.lane.b32.xlu0 %v1343, 120
        %v1477 = vpop.permute.xlu0 %1476
        %1478 = vrot.lane.b32.xlu0 %v1347, 120
        %v1479 = vpop.permute.xlu0 %1478
        %1480 = vrot.lane.b32.xlu0 %v1351, 120
        %v1481 = vpop.permute.xlu0 %1480
        %1482 = vrot.lane.b32.xlu0 %v1355, 120
        %v1483 = vpop.permute.xlu0 %1482
        %1548 = vst.msk [vmem:[#allocation2 + $0x1] sm:$0x1] %vm627, %v1357
        %1549 = vst.msk [vmem:[#allocation2 + $0x3] sm:$0x1] %vm627, %v1359
        %1550 = vst.msk [vmem:[#allocation2 + $0x5] sm:$0x1] %vm627, %v1361
        %1551 = vst.msk [vmem:[#allocation2 + $0x7] sm:$0x1] %vm627, %v1363
        %1552 = vst.msk [vmem:[#allocation2 + $0x9] sm:$0x1] %vm627, %v1365
        %1553 = vst.msk [vmem:[#allocation2 + $0xb] sm:$0x1] %vm627, %v1367
        %1554 = vst.msk [vmem:[#allocation2 + $0xd] sm:$0x1] %vm627, %v1369
        %1555 = vst.msk [vmem:[#allocation2 + $0xf] sm:$0x1] %vm627, %v1371
        %1556 = vst.msk [vmem:[#allocation2 + $0x11] sm:$0x1] %vm627, %v1373
        %1557 = vst.msk [vmem:[#allocation2 + $0x13] sm:$0x1] %vm627, %v1375
        %1558 = vst.msk [vmem:[#allocation2 + $0x15] sm:$0x1] %vm627, %v1377
        %1559 = vst.msk [vmem:[#allocation2 + $0x17] sm:$0x1] %vm627, %v1379
        %1560 = vst.msk [vmem:[#allocation2 + $0x19] sm:$0x1] %vm627, %v1381
        %1561 = vst.msk [vmem:[#allocation2 + $0x1b] sm:$0x1] %vm627, %v1383
        %1562 = vst.msk [vmem:[#allocation2 + $0x1d] sm:$0x1] %vm627, %v1385
        %1563 = vst.msk [vmem:[#allocation2 + $0x1f] sm:$0x1] %vm627, %v1387
        %1564 = vst.msk [vmem:[#allocation2 + $0x21] sm:$0x1] %vm627, %v1389
        %1565 = vst.msk [vmem:[#allocation2 + $0x23] sm:$0x1] %vm627, %v1391
        %1566 = vst.msk [vmem:[#allocation2 + $0x25] sm:$0x1] %vm627, %v1393
        %1567 = vst.msk [vmem:[#allocation2 + $0x27] sm:$0x1] %vm627, %v1395
        %1568 = vst.msk [vmem:[#allocation2 + $0x29] sm:$0x1] %vm627, %v1397
        %1569 = vst.msk [vmem:[#allocation2 + $0x2b] sm:$0x1] %vm627, %v1399
        %1570 = vst.msk [vmem:[#allocation2 + $0x2d] sm:$0x1] %vm627, %v1401
        %1571 = vst.msk [vmem:[#allocation2 + $0x2f] sm:$0x1] %vm627, %v1403
        %1572 = vst.msk [vmem:[#allocation2 + $0x31] sm:$0x1] %vm627, %v1405
        %1573 = vst.msk [vmem:[#allocation2 + $0x33] sm:$0x1] %vm627, %v1407
        %1574 = vst.msk [vmem:[#allocation2 + $0x35] sm:$0x1] %vm627, %v1409
        %1575 = vst.msk [vmem:[#allocation2 + $0x37] sm:$0x1] %vm627, %v1411
        %1576 = vst.msk [vmem:[#allocation2 + $0x39] sm:$0x1] %vm627, %v1413
        %1577 = vst.msk [vmem:[#allocation2 + $0x3b] sm:$0x1] %vm627, %v1415
        %1578 = vst.msk [vmem:[#allocation2 + $0x3d] sm:$0x1] %vm627, %v1417
        %1579 = vst.msk [vmem:[#allocation2 + $0x3f] sm:$0x1] %vm627, %v1419
        %1580 = vst.msk [vmem:[#allocation2 + $0x41] sm:$0x1] %vm627, %v1421
        %1581 = vst.msk [vmem:[#allocation2 + $0x43] sm:$0x1] %vm627, %v1423
        %1582 = vst.msk [vmem:[#allocation2 + $0x45] sm:$0x1] %vm627, %v1425
        %1583 = vst.msk [vmem:[#allocation2 + $0x47] sm:$0x1] %vm627, %v1427
        %1584 = vst.msk [vmem:[#allocation2 + $0x49] sm:$0x1] %vm627, %v1429
        %1585 = vst.msk [vmem:[#allocation2 + $0x4b] sm:$0x1] %vm627, %v1431
        %1586 = vst.msk [vmem:[#allocation2 + $0x4d] sm:$0x1] %vm627, %v1433
        %1587 = vst.msk [vmem:[#allocation2 + $0x4f] sm:$0x1] %vm627, %v1435
        %1588 = vst.msk [vmem:[#allocation2 + $0x51] sm:$0x1] %vm627, %v1437
        %1589 = vst.msk [vmem:[#allocation2 + $0x53] sm:$0x1] %vm627, %v1439
        %1590 = vst.msk [vmem:[#allocation2 + $0x55] sm:$0x1] %vm627, %v1441
        %1591 = vst.msk [vmem:[#allocation2 + $0x57] sm:$0x1] %vm627, %v1443
        %1592 = vst.msk [vmem:[#allocation2 + $0x59] sm:$0x1] %vm627, %v1445
        %1593 = vst.msk [vmem:[#allocation2 + $0x5b] sm:$0x1] %vm627, %v1447
        %1594 = vst.msk [vmem:[#allocation2 + $0x5d] sm:$0x1] %vm627, %v1449
        %1595 = vst.msk [vmem:[#allocation2 + $0x5f] sm:$0x1] %vm627, %v1451
        %1596 = vst.msk [vmem:[#allocation2 + $0x61] sm:$0x1] %vm627, %v1453
        %1597 = vst.msk [vmem:[#allocation2 + $0x63] sm:$0x1] %vm627, %v1455
        %1598 = vst.msk [vmem:[#allocation2 + $0x65] sm:$0x1] %vm627, %v1457
        %1599 = vst.msk [vmem:[#allocation2 + $0x67] sm:$0x1] %vm627, %v1459
        %1600 = vst.msk [vmem:[#allocation2 + $0x69] sm:$0x1] %vm627, %v1461
        %1601 = vst.msk [vmem:[#allocation2 + $0x6b] sm:$0x1] %vm627, %v1463
        %1602 = vst.msk [vmem:[#allocation2 + $0x6d] sm:$0x1] %vm627, %v1465
        %1603 = vst.msk [vmem:[#allocation2 + $0x6f] sm:$0x1] %vm627, %v1467
        %1604 = vst.msk [vmem:[#allocation2 + $0x71] sm:$0x1] %vm627, %v1469
        %1605 = vst.msk [vmem:[#allocation2 + $0x73] sm:$0x1] %vm627, %v1471
        %1606 = vst.msk [vmem:[#allocation2 + $0x75] sm:$0x1] %vm627, %v1473
        %1607 = vst.msk [vmem:[#allocation2 + $0x77] sm:$0x1] %vm627, %v1475
        %1608 = vst.msk [vmem:[#allocation2 + $0x79] sm:$0x1] %vm627, %v1477
        %1609 = vst.msk [vmem:[#allocation2 + $0x7b] sm:$0x1] %vm627, %v1479
        %1610 = vst.msk [vmem:[#allocation2 + $0x7d] sm:$0x1] %vm627, %v1481
        %1611 = vst.msk [vmem:[#allocation2 + $0x7f] sm:$0x1] %vm627, %v1483
        %v1612 = vld [vmem:[#allocation2] sm:$0x3]
        %v1613 = vld [vmem:[#allocation2 + $0x2] sm:$0x3]
        %v1614 = vld [vmem:[#allocation2 + $0x4] sm:$0x3]
        %v1615 = vld [vmem:[#allocation2 + $0x6] sm:$0x3]
        %v1616 = vld [vmem:[#allocation2 + $0x8] sm:$0x3]
        %v1617 = vld [vmem:[#allocation2 + $0xa] sm:$0x3]
        %v1618 = vld [vmem:[#allocation2 + $0xc] sm:$0x3]
        %v1619 = vld [vmem:[#allocation2 + $0xe] sm:$0x3]
        %v1620 = vld [vmem:[#allocation2 + $0x10] sm:$0x3]
        %v1621 = vld [vmem:[#allocation2 + $0x12] sm:$0x3]
        %v1622 = vld [vmem:[#allocation2 + $0x14] sm:$0x3]
        %v1623 = vld [vmem:[#allocation2 + $0x16] sm:$0x3]
        %v1624 = vld [vmem:[#allocation2 + $0x18] sm:$0x3]
        %v1625 = vld [vmem:[#allocation2 + $0x1a] sm:$0x3]
        %v1626 = vld [vmem:[#allocation2 + $0x1c] sm:$0x3]
        %v1627 = vld [vmem:[#allocation2 + $0x1e] sm:$0x3]
        %1628 = vxpose.xlu0.b32.start [1/16] %v1612, 128
        %1629 = vxpose.xlu0.b32.cont [2/16] 0.0, 128
        %1630 = vxpose.xlu0.b32.cont [3/16] 0.0, 128
        %1631 = vxpose.xlu0.b32.cont [4/16] 0.0, 128
        %1632 = vxpose.xlu0.b32.cont [5/16] 0.0, 128
        %1633 = vxpose.xlu0.b32.cont [6/16] 0.0, 128
        %1634 = vxpose.xlu0.b32.cont [7/16] 0.0, 128
        %1635 = vxpose.xlu0.b32.cont [8/16] 0.0, 128
        %1636 = vxpose.xlu0.b32.cont [9/16] 0.0, 128
        %1637 = vxpose.xlu0.b32.cont [10/16] 0.0, 128
        %1638 = vxpose.xlu0.b32.cont [11/16] 0.0, 128
        %1639 = vxpose.xlu0.b32.cont [12/16] 0.0, 128
        %1640 = vxpose.xlu0.b32.cont [13/16] 0.0, 128
        %1641 = vxpose.xlu0.b32.cont [14/16] 0.0, 128
        %1642 = vxpose.xlu0.b32.cont [15/16] 0.0, 128
        %1643 = vxpose.xlu0.b32.end [16/16] 0.0, 128
        %v1644 = vpop.trf.xlu0
        %v1645 = vpop.trf.xlu0
        %v1646 = vpop.trf.xlu0
        %v1647 = vpop.trf.xlu0
        %v1648 = vpop.trf.xlu0
        %v1649 = vpop.trf.xlu0
        %v1650 = vpop.trf.xlu0
        %v1651 = vpop.trf.xlu0
        %v1652 = vpop.trf.xlu0
        %v1653 = vpop.trf.xlu0
        %v1654 = vpop.trf.xlu0
        %v1655 = vpop.trf.xlu0
        %v1656 = vpop.trf.xlu0
        %v1657 = vpop.trf.xlu0
        %v1658 = vpop.trf.xlu0
        %v1659 = vpop.trf.xlu0
        %1660 = vxpose.xlu0.b32.start [1/16] %v1613, 128
        %1661 = vxpose.xlu0.b32.cont [2/16] 0.0, 128
        %1662 = vxpose.xlu0.b32.cont [3/16] 0.0, 128
        %1663 = vxpose.xlu0.b32.cont [4/16] 0.0, 128
        %1664 = vxpose.xlu0.b32.cont [5/16] 0.0, 128
        %1665 = vxpose.xlu0.b32.cont [6/16] 0.0, 128
        %1666 = vxpose.xlu0.b32.cont [7/16] 0.0, 128
        %1667 = vxpose.xlu0.b32.cont [8/16] 0.0, 128
        %1668 = vxpose.xlu0.b32.cont [9/16] 0.0, 128
        %1669 = vxpose.xlu0.b32.cont [10/16] 0.0, 128
        %1670 = vxpose.xlu0.b32.cont [11/16] 0.0, 128
        %1671 = vxpose.xlu0.b32.cont [12/16] 0.0, 128
        %1672 = vxpose.xlu0.b32.cont [13/16] 0.0, 128
        %1673 = vxpose.xlu0.b32.cont [14/16] 0.0, 128
        %1674 = vxpose.xlu0.b32.cont [15/16] 0.0, 128
        %1675 = vxpose.xlu0.b32.end [16/16] 0.0, 128
        %v1676 = vpop.trf.xlu0
        %v1677 = vpop.trf.xlu0
        %v1678 = vpop.trf.xlu0
        %v1679 = vpop.trf.xlu0
        %v1680 = vpop.trf.xlu0
        %v1681 = vpop.trf.xlu0
        %v1682 = vpop.trf.xlu0
        %v1683 = vpop.trf.xlu0
        %v1684 = vpop.trf.xlu0
        %v1685 = vpop.trf.xlu0
        %v1686 = vpop.trf.xlu0
        %v1687 = vpop.trf.xlu0
        %v1688 = vpop.trf.xlu0
        %v1689 = vpop.trf.xlu0
        %v1690 = vpop.trf.xlu0
        %v1691 = vpop.trf.xlu0
        %1692 = vxpose.xlu0.b32.start [1/16] %v1614, 128
        %1693 = vxpose.xlu0.b32.cont [2/16] 0.0, 128
        %1694 = vxpose.xlu0.b32.cont [3/16] 0.0, 128
        %1695 = vxpose.xlu0.b32.cont [4/16] 0.0, 128
        %1696 = vxpose.xlu0.b32.cont [5/16] 0.0, 128
        %1697 = vxpose.xlu0.b32.cont [6/16] 0.0, 128
        %1698 = vxpose.xlu0.b32.cont [7/16] 0.0, 128
        %1699 = vxpose.xlu0.b32.cont [8/16] 0.0, 128
        %1700 = vxpose.xlu0.b32.cont [9/16] 0.0, 128
        %1701 = vxpose.xlu0.b32.cont [10/16] 0.0, 128
        %1702 = vxpose.xlu0.b32.cont [11/16] 0.0, 128
        %1703 = vxpose.xlu0.b32.cont [12/16] 0.0, 128
        %1704 = vxpose.xlu0.b32.cont [13/16] 0.0, 128
        %1705 = vxpose.xlu0.b32.cont [14/16] 0.0, 128
        %1706 = vxpose.xlu0.b32.cont [15/16] 0.0, 128
        %1707 = vxpose.xlu0.b32.end [16/16] 0.0, 128
        %v1708 = vpop.trf.xlu0
        %v1709 = vpop.trf.xlu0
        %v1710 = vpop.trf.xlu0
        %v1711 = vpop.trf.xlu0
        %v1712 = vpop.trf.xlu0
        %v1713 = vpop.trf.xlu0
        %v1714 = vpop.trf.xlu0
        %v1715 = vpop.trf.xlu0
        %v1716 = vpop.trf.xlu0
        %v1717 = vpop.trf.xlu0
        %v1718 = vpop.trf.xlu0
        %v1719 = vpop.trf.xlu0
        %v1720 = vpop.trf.xlu0
        %v1721 = vpop.trf.xlu0
        %v1722 = vpop.trf.xlu0
        %v1723 = vpop.trf.xlu0
        %1724 = vxpose.xlu0.b32.start [1/16] %v1615, 128
        %1725 = vxpose.xlu0.b32.cont [2/16] 0.0, 128
        %1726 = vxpose.xlu0.b32.cont [3/16] 0.0, 128
        %1727 = vxpose.xlu0.b32.cont [4/16] 0.0, 128
        %1728 = vxpose.xlu0.b32.cont [5/16] 0.0, 128
        %1729 = vxpose.xlu0.b32.cont [6/16] 0.0, 128
        %1730 = vxpose.xlu0.b32.cont [7/16] 0.0, 128
        %1731 = vxpose.xlu0.b32.cont [8/16] 0.0, 128
        %1732 = vxpose.xlu0.b32.cont [9/16] 0.0, 128
        %1733 = vxpose.xlu0.b32.cont [10/16] 0.0, 128
        %1734 = vxpose.xlu0.b32.cont [11/16] 0.0, 128
        %1735 = vxpose.xlu0.b32.cont [12/16] 0.0, 128
        %1736 = vxpose.xlu0.b32.cont [13/16] 0.0, 128
        %1737 = vxpose.xlu0.b32.cont [14/16] 0.0, 128
        %1738 = vxpose.xlu0.b32.cont [15/16] 0.0, 128
        %1739 = vxpose.xlu0.b32.end [16/16] 0.0, 128
        %v1740 = vpop.trf.xlu0
        %v1741 = vpop.trf.xlu0
        %v1742 = vpop.trf.xlu0
        %v1743 = vpop.trf.xlu0
        %v1744 = vpop.trf.xlu0
        %v1745 = vpop.trf.xlu0
        %v1746 = vpop.trf.xlu0
        %v1747 = vpop.trf.xlu0
        %v1748 = vpop.trf.xlu0
        %v1749 = vpop.trf.xlu0
        %v1750 = vpop.trf.xlu0
        %v1751 = vpop.trf.xlu0
        %v1752 = vpop.trf.xlu0
        %v1753 = vpop.trf.xlu0
        %v1754 = vpop.trf.xlu0
        %v1755 = vpop.trf.xlu0
        %1756 = vxpose.xlu0.b32.start [1/16] %v1616, 128
        %1757 = vxpose.xlu0.b32.cont [2/16] 0.0, 128
        %1758 = vxpose.xlu0.b32.cont [3/16] 0.0, 128
        %1759 = vxpose.xlu0.b32.cont [4/16] 0.0, 128
        %1760 = vxpose.xlu0.b32.cont [5/16] 0.0, 128
        %1761 = vxpose.xlu0.b32.cont [6/16] 0.0, 128
        %1762 = vxpose.xlu0.b32.cont [7/16] 0.0, 128
        %1763 = vxpose.xlu0.b32.cont [8/16] 0.0, 128
        %1764 = vxpose.xlu0.b32.cont [9/16] 0.0, 128
        %1765 = vxpose.xlu0.b32.cont [10/16] 0.0, 128
        %1766 = vxpose.xlu0.b32.cont [11/16] 0.0, 128
        %1767 = vxpose.xlu0.b32.cont [12/16] 0.0, 128
        %1768 = vxpose.xlu0.b32.cont [13/16] 0.0, 128
        %1769 = vxpose.xlu0.b32.cont [14/16] 0.0, 128
        %1770 = vxpose.xlu0.b32.cont [15/16] 0.0, 128
        %1771 = vxpose.xlu0.b32.end [16/16] 0.0, 128
        %v1772 = vpop.trf.xlu0
        %v1773 = vpop.trf.xlu0
        %v1774 = vpop.trf.xlu0
        %v1775 = vpop.trf.xlu0
        %v1776 = vpop.trf.xlu0
        %v1777 = vpop.trf.xlu0
        %v1778 = vpop.trf.xlu0
        %v1779 = vpop.trf.xlu0
        %v1780 = vpop.trf.xlu0
        %v1781 = vpop.trf.xlu0
        %v1782 = vpop.trf.xlu0
        %v1783 = vpop.trf.xlu0
        %v1784 = vpop.trf.xlu0
        %v1785 = vpop.trf.xlu0
        %v1786 = vpop.trf.xlu0
        %v1787 = vpop.trf.xlu0
        %1788 = vxpose.xlu0.b32.start [1/16] %v1617, 128
        %1789 = vxpose.xlu0.b32.cont [2/16] 0.0, 128
        %1790 = vxpose.xlu0.b32.cont [3/16] 0.0, 128
        %1791 = vxpose.xlu0.b32.cont [4/16] 0.0, 128
        %1792 = vxpose.xlu0.b32.cont [5/16] 0.0, 128
        %1793 = vxpose.xlu0.b32.cont [6/16] 0.0, 128
        %1794 = vxpose.xlu0.b32.cont [7/16] 0.0, 128
        %1795 = vxpose.xlu0.b32.cont [8/16] 0.0, 128
        %1796 = vxpose.xlu0.b32.cont [9/16] 0.0, 128
        %1797 = vxpose.xlu0.b32.cont [10/16] 0.0, 128
        %1798 = vxpose.xlu0.b32.cont [11/16] 0.0, 128
        %1799 = vxpose.xlu0.b32.cont [12/16] 0.0, 128
        %1800 = vxpose.xlu0.b32.cont [13/16] 0.0, 128
        %1801 = vxpose.xlu0.b32.cont [14/16] 0.0, 128
        %1802 = vxpose.xlu0.b32.cont [15/16] 0.0, 128
        %1803 = vxpose.xlu0.b32.end [16/16] 0.0, 128
        %v1804 = vpop.trf.xlu0
        %v1805 = vpop.trf.xlu0
        %v1806 = vpop.trf.xlu0
        %v1807 = vpop.trf.xlu0
        %v1808 = vpop.trf.xlu0
        %v1809 = vpop.trf.xlu0
        %v1810 = vpop.trf.xlu0
        %v1811 = vpop.trf.xlu0
        %v1812 = vpop.trf.xlu0
        %v1813 = vpop.trf.xlu0
        %v1814 = vpop.trf.xlu0
        %v1815 = vpop.trf.xlu0
        %v1816 = vpop.trf.xlu0
        %v1817 = vpop.trf.xlu0
        %v1818 = vpop.trf.xlu0
        %v1819 = vpop.trf.xlu0
        %1820 = vxpose.xlu0.b32.start [1/16] %v1618, 128
        %1821 = vxpose.xlu0.b32.cont [2/16] 0.0, 128
        %1822 = vxpose.xlu0.b32.cont [3/16] 0.0, 128
        %1823 = vxpose.xlu0.b32.cont [4/16] 0.0, 128
        %1824 = vxpose.xlu0.b32.cont [5/16] 0.0, 128
        %1825 = vxpose.xlu0.b32.cont [6/16] 0.0, 128
        %1826 = vxpose.xlu0.b32.cont [7/16] 0.0, 128
        %1827 = vxpose.xlu0.b32.cont [8/16] 0.0, 128
        %1828 = vxpose.xlu0.b32.cont [9/16] 0.0, 128
        %1829 = vxpose.xlu0.b32.cont [10/16] 0.0, 128
        %1830 = vxpose.xlu0.b32.cont [11/16] 0.0, 128
        %1831 = vxpose.xlu0.b32.cont [12/16] 0.0, 128
        %1832 = vxpose.xlu0.b32.cont [13/16] 0.0, 128
        %1833 = vxpose.xlu0.b32.cont [14/16] 0.0, 128
        %1834 = vxpose.xlu0.b32.cont [15/16] 0.0, 128
        %1835 = vxpose.xlu0.b32.end [16/16] 0.0, 128
        %v1836 = vpop.trf.xlu0
        %v1837 = vpop.trf.xlu0
        %v1838 = vpop.trf.xlu0
        %v1839 = vpop.trf.xlu0
        %v1840 = vpop.trf.xlu0
        %v1841 = vpop.trf.xlu0
        %v1842 = vpop.trf.xlu0
        %v1843 = vpop.trf.xlu0
        %v1844 = vpop.trf.xlu0
        %v1845 = vpop.trf.xlu0
        %v1846 = vpop.trf.xlu0
        %v1847 = vpop.trf.xlu0
        %v1848 = vpop.trf.xlu0
        %v1849 = vpop.trf.xlu0
        %v1850 = vpop.trf.xlu0
        %v1851 = vpop.trf.xlu0
        %1852 = vxpose.xlu0.b32.start [1/16] %v1619, 128
        %1853 = vxpose.xlu0.b32.cont [2/16] 0.0, 128
        %1854 = vxpose.xlu0.b32.cont [3/16] 0.0, 128
        %1855 = vxpose.xlu0.b32.cont [4/16] 0.0, 128
        %1856 = vxpose.xlu0.b32.cont [5/16] 0.0, 128
        %1857 = vxpose.xlu0.b32.cont [6/16] 0.0, 128
        %1858 = vxpose.xlu0.b32.cont [7/16] 0.0, 128
        %1859 = vxpose.xlu0.b32.cont [8/16] 0.0, 128
        %1860 = vxpose.xlu0.b32.cont [9/16] 0.0, 128
        %1861 = vxpose.xlu0.b32.cont [10/16] 0.0, 128
        %1862 = vxpose.xlu0.b32.cont [11/16] 0.0, 128
        %1863 = vxpose.xlu0.b32.cont [12/16] 0.0, 128
        %1864 = vxpose.xlu0.b32.cont [13/16] 0.0, 128
        %1865 = vxpose.xlu0.b32.cont [14/16] 0.0, 128
        %1866 = vxpose.xlu0.b32.cont [15/16] 0.0, 128
        %1867 = vxpose.xlu0.b32.end [16/16] 0.0, 128
        %v1868 = vpop.trf.xlu0
        %v1869 = vpop.trf.xlu0
        %v1870 = vpop.trf.xlu0
        %v1871 = vpop.trf.xlu0
        %v1872 = vpop.trf.xlu0
        %v1873 = vpop.trf.xlu0
        %v1874 = vpop.trf.xlu0
        %v1875 = vpop.trf.xlu0
        %v1876 = vpop.trf.xlu0
        %v1877 = vpop.trf.xlu0
        %v1878 = vpop.trf.xlu0
        %v1879 = vpop.trf.xlu0
        %v1880 = vpop.trf.xlu0
        %v1881 = vpop.trf.xlu0
        %v1882 = vpop.trf.xlu0
        %v1883 = vpop.trf.xlu0
        %1884 = vxpose.xlu0.b32.start [1/16] %v1620, 128
        %1885 = vxpose.xlu0.b32.cont [2/16] 0.0, 128
        %1886 = vxpose.xlu0.b32.cont [3/16] 0.0, 128
        %1887 = vxpose.xlu0.b32.cont [4/16] 0.0, 128
        %1888 = vxpose.xlu0.b32.cont [5/16] 0.0, 128
        %1889 = vxpose.xlu0.b32.cont [6/16] 0.0, 128
        %1890 = vxpose.xlu0.b32.cont [7/16] 0.0, 128
        %1891 = vxpose.xlu0.b32.cont [8/16] 0.0, 128
        %1892 = vxpose.xlu0.b32.cont [9/16] 0.0, 128
        %1893 = vxpose.xlu0.b32.cont [10/16] 0.0, 128
        %1894 = vxpose.xlu0.b32.cont [11/16] 0.0, 128
        %1895 = vxpose.xlu0.b32.cont [12/16] 0.0, 128
        %1896 = vxpose.xlu0.b32.cont [13/16] 0.0, 128
        %1897 = vxpose.xlu0.b32.cont [14/16] 0.0, 128
        %1898 = vxpose.xlu0.b32.cont [15/16] 0.0, 128
        %1899 = vxpose.xlu0.b32.end [16/16] 0.0, 128
        %v1900 = vpop.trf.xlu0
        %v1901 = vpop.trf.xlu0
        %v1902 = vpop.trf.xlu0
        %v1903 = vpop.trf.xlu0
        %v1904 = vpop.trf.xlu0
        %v1905 = vpop.trf.xlu0
        %v1906 = vpop.trf.xlu0
        %v1907 = vpop.trf.xlu0
        %v1908 = vpop.trf.xlu0
        %v1909 = vpop.trf.xlu0
        %v1910 = vpop.trf.xlu0
        %v1911 = vpop.trf.xlu0
        %v1912 = vpop.trf.xlu0
        %v1913 = vpop.trf.xlu0
        %v1914 = vpop.trf.xlu0
        %v1915 = vpop.trf.xlu0
        %1916 = vxpose.xlu0.b32.start [1/16] %v1621, 128
        %1917 = vxpose.xlu0.b32.cont [2/16] 0.0, 128
        %1918 = vxpose.xlu0.b32.cont [3/16] 0.0, 128
        %1919 = vxpose.xlu0.b32.cont [4/16] 0.0, 128
        %1920 = vxpose.xlu0.b32.cont [5/16] 0.0, 128
        %1921 = vxpose.xlu0.b32.cont [6/16] 0.0, 128
        %1922 = vxpose.xlu0.b32.cont [7/16] 0.0, 128
        %1923 = vxpose.xlu0.b32.cont [8/16] 0.0, 128
        %1924 = vxpose.xlu0.b32.cont [9/16] 0.0, 128
        %1925 = vxpose.xlu0.b32.cont [10/16] 0.0, 128
        %1926 = vxpose.xlu0.b32.cont [11/16] 0.0, 128
        %1927 = vxpose.xlu0.b32.cont [12/16] 0.0, 128
        %1928 = vxpose.xlu0.b32.cont [13/16] 0.0, 128
        %1929 = vxpose.xlu0.b32.cont [14/16] 0.0, 128
        %1930 = vxpose.xlu0.b32.cont [15/16] 0.0, 128
        %1931 = vxpose.xlu0.b32.end [16/16] 0.0, 128
        %v1932 = vpop.trf.xlu0
        %v1933 = vpop.trf.xlu0
        %v1934 = vpop.trf.xlu0
        %v1935 = vpop.trf.xlu0
        %v1936 = vpop.trf.xlu0
        %v1937 = vpop.trf.xlu0
        %v1938 = vpop.trf.xlu0
        %v1939 = vpop.trf.xlu0
        %v1940 = vpop.trf.xlu0
        %v1941 = vpop.trf.xlu0
        %v1942 = vpop.trf.xlu0
        %v1943 = vpop.trf.xlu0
        %v1944 = vpop.trf.xlu0
        %v1945 = vpop.trf.xlu0
        %v1946 = vpop.trf.xlu0
        %v1947 = vpop.trf.xlu0
        %1948 = vxpose.xlu0.b32.start [1/16] %v1622, 128
        %1949 = vxpose.xlu0.b32.cont [2/16] 0.0, 128
        %1950 = vxpose.xlu0.b32.cont [3/16] 0.0, 128
        %1951 = vxpose.xlu0.b32.cont [4/16] 0.0, 128
        %1952 = vxpose.xlu0.b32.cont [5/16] 0.0, 128
        %1953 = vxpose.xlu0.b32.cont [6/16] 0.0, 128
        %1954 = vxpose.xlu0.b32.cont [7/16] 0.0, 128
        %1955 = vxpose.xlu0.b32.cont [8/16] 0.0, 128
        %1956 = vxpose.xlu0.b32.cont [9/16] 0.0, 128
        %1957 = vxpose.xlu0.b32.cont [10/16] 0.0, 128
        %1958 = vxpose.xlu0.b32.cont [11/16] 0.0, 128
        %1959 = vxpose.xlu0.b32.cont [12/16] 0.0, 128
        %1960 = vxpose.xlu0.b32.cont [13/16] 0.0, 128
        %1961 = vxpose.xlu0.b32.cont [14/16] 0.0, 128
        %1962 = vxpose.xlu0.b32.cont [15/16] 0.0, 128
        %1963 = vxpose.xlu0.b32.end [16/16] 0.0, 128
        %v1964 = vpop.trf.xlu0
        %v1965 = vpop.trf.xlu0
        %v1966 = vpop.trf.xlu0
        %v1967 = vpop.trf.xlu0
        %v1968 = vpop.trf.xlu0
        %v1969 = vpop.trf.xlu0
        %v1970 = vpop.trf.xlu0
        %v1971 = vpop.trf.xlu0
        %v1972 = vpop.trf.xlu0
        %v1973 = vpop.trf.xlu0
        %v1974 = vpop.trf.xlu0
        %v1975 = vpop.trf.xlu0
        %v1976 = vpop.trf.xlu0
        %v1977 = vpop.trf.xlu0
        %v1978 = vpop.trf.xlu0
        %v1979 = vpop.trf.xlu0
        %1980 = vxpose.xlu0.b32.start [1/16] %v1623, 128
        %1981 = vxpose.xlu0.b32.cont [2/16] 0.0, 128
        %1982 = vxpose.xlu0.b32.cont [3/16] 0.0, 128
        %1983 = vxpose.xlu0.b32.cont [4/16] 0.0, 128
        %1984 = vxpose.xlu0.b32.cont [5/16] 0.0, 128
        %1985 = vxpose.xlu0.b32.cont [6/16] 0.0, 128
        %1986 = vxpose.xlu0.b32.cont [7/16] 0.0, 128
        %1987 = vxpose.xlu0.b32.cont [8/16] 0.0, 128
        %1988 = vxpose.xlu0.b32.cont [9/16] 0.0, 128
        %1989 = vxpose.xlu0.b32.cont [10/16] 0.0, 128
        %1990 = vxpose.xlu0.b32.cont [11/16] 0.0, 128
        %1991 = vxpose.xlu0.b32.cont [12/16] 0.0, 128
        %1992 = vxpose.xlu0.b32.cont [13/16] 0.0, 128
        %1993 = vxpose.xlu0.b32.cont [14/16] 0.0, 128
        %1994 = vxpose.xlu0.b32.cont [15/16] 0.0, 128
        %1995 = vxpose.xlu0.b32.end [16/16] 0.0, 128
        %v1996 = vpop.trf.xlu0
        %v1997 = vpop.trf.xlu0
        %v1998 = vpop.trf.xlu0
        %v1999 = vpop.trf.xlu0
        %v2000 = vpop.trf.xlu0
        %v2001 = vpop.trf.xlu0
        %v2002 = vpop.trf.xlu0
        %v2003 = vpop.trf.xlu0
        %v2004 = vpop.trf.xlu0
        %v2005 = vpop.trf.xlu0
        %v2006 = vpop.trf.xlu0
        %v2007 = vpop.trf.xlu0
        %v2008 = vpop.trf.xlu0
        %v2009 = vpop.trf.xlu0
        %v2010 = vpop.trf.xlu0
        %v2011 = vpop.trf.xlu0
        %2012 = vxpose.xlu0.b32.start [1/16] %v1624, 128
        %2013 = vxpose.xlu0.b32.cont [2/16] 0.0, 128
        %2014 = vxpose.xlu0.b32.cont [3/16] 0.0, 128
        %2015 = vxpose.xlu0.b32.cont [4/16] 0.0, 128
        %2016 = vxpose.xlu0.b32.cont [5/16] 0.0, 128
        %2017 = vxpose.xlu0.b32.cont [6/16] 0.0, 128
        %2018 = vxpose.xlu0.b32.cont [7/16] 0.0, 128
        %2019 = vxpose.xlu0.b32.cont [8/16] 0.0, 128
        %2020 = vxpose.xlu0.b32.cont [9/16] 0.0, 128
        %2021 = vxpose.xlu0.b32.cont [10/16] 0.0, 128
        %2022 = vxpose.xlu0.b32.cont [11/16] 0.0, 128
        %2023 = vxpose.xlu0.b32.cont [12/16] 0.0, 128
        %2024 = vxpose.xlu0.b32.cont [13/16] 0.0, 128
        %2025 = vxpose.xlu0.b32.cont [14/16] 0.0, 128
        %2026 = vxpose.xlu0.b32.cont [15/16] 0.0, 128
        %2027 = vxpose.xlu0.b32.end [16/16] 0.0, 128
        %v2028 = vpop.trf.xlu0
        %v2029 = vpop.trf.xlu0
        %v2030 = vpop.trf.xlu0
        %v2031 = vpop.trf.xlu0
        %v2032 = vpop.trf.xlu0
        %v2033 = vpop.trf.xlu0
        %v2034 = vpop.trf.xlu0
        %v2035 = vpop.trf.xlu0
        %v2036 = vpop.trf.xlu0
        %v2037 = vpop.trf.xlu0
        %v2038 = vpop.trf.xlu0
        %v2039 = vpop.trf.xlu0
        %v2040 = vpop.trf.xlu0
        %v2041 = vpop.trf.xlu0
        %v2042 = vpop.trf.xlu0
        %v2043 = vpop.trf.xlu0
        %2044 = vxpose.xlu0.b32.start [1/16] %v1625, 128
        %2045 = vxpose.xlu0.b32.cont [2/16] 0.0, 128
        %2046 = vxpose.xlu0.b32.cont [3/16] 0.0, 128
        %2047 = vxpose.xlu0.b32.cont [4/16] 0.0, 128
        %2048 = vxpose.xlu0.b32.cont [5/16] 0.0, 128
        %2049 = vxpose.xlu0.b32.cont [6/16] 0.0, 128
        %2050 = vxpose.xlu0.b32.cont [7/16] 0.0, 128
        %2051 = vxpose.xlu0.b32.cont [8/16] 0.0, 128
        %2052 = vxpose.xlu0.b32.cont [9/16] 0.0, 128
        %2053 = vxpose.xlu0.b32.cont [10/16] 0.0, 128
        %2054 = vxpose.xlu0.b32.cont [11/16] 0.0, 128
        %2055 = vxpose.xlu0.b32.cont [12/16] 0.0, 128
        %2056 = vxpose.xlu0.b32.cont [13/16] 0.0, 128
        %2057 = vxpose.xlu0.b32.cont [14/16] 0.0, 128
        %2058 = vxpose.xlu0.b32.cont [15/16] 0.0, 128
        %2059 = vxpose.xlu0.b32.end [16/16] 0.0, 128
        %v2060 = vpop.trf.xlu0
        %v2061 = vpop.trf.xlu0
        %v2062 = vpop.trf.xlu0
        %v2063 = vpop.trf.xlu0
        %v2064 = vpop.trf.xlu0
        %v2065 = vpop.trf.xlu0
        %v2066 = vpop.trf.xlu0
        %v2067 = vpop.trf.xlu0
        %v2068 = vpop.trf.xlu0
        %v2069 = vpop.trf.xlu0
        %v2070 = vpop.trf.xlu0
        %v2071 = vpop.trf.xlu0
        %v2072 = vpop.trf.xlu0
        %v2073 = vpop.trf.xlu0
        %v2074 = vpop.trf.xlu0
        %v2075 = vpop.trf.xlu0
        %2076 = vxpose.xlu0.b32.start [1/16] %v1626, 128
        %2077 = vxpose.xlu0.b32.cont [2/16] 0.0, 128
        %2078 = vxpose.xlu0.b32.cont [3/16] 0.0, 128
        %2079 = vxpose.xlu0.b32.cont [4/16] 0.0, 128
        %2080 = vxpose.xlu0.b32.cont [5/16] 0.0, 128
        %2081 = vxpose.xlu0.b32.cont [6/16] 0.0, 128
        %2082 = vxpose.xlu0.b32.cont [7/16] 0.0, 128
        %2083 = vxpose.xlu0.b32.cont [8/16] 0.0, 128
        %2084 = vxpose.xlu0.b32.cont [9/16] 0.0, 128
        %2085 = vxpose.xlu0.b32.cont [10/16] 0.0, 128
        %2086 = vxpose.xlu0.b32.cont [11/16] 0.0, 128
        %2087 = vxpose.xlu0.b32.cont [12/16] 0.0, 128
        %2088 = vxpose.xlu0.b32.cont [13/16] 0.0, 128
        %2089 = vxpose.xlu0.b32.cont [14/16] 0.0, 128
        %2090 = vxpose.xlu0.b32.cont [15/16] 0.0, 128
        %2091 = vxpose.xlu0.b32.end [16/16] 0.0, 128
        %v2092 = vpop.trf.xlu0
        %v2093 = vpop.trf.xlu0
        %v2094 = vpop.trf.xlu0
        %v2095 = vpop.trf.xlu0
        %v2096 = vpop.trf.xlu0
        %v2097 = vpop.trf.xlu0
        %v2098 = vpop.trf.xlu0
        %v2099 = vpop.trf.xlu0
        %v2100 = vpop.trf.xlu0
        %v2101 = vpop.trf.xlu0
        %v2102 = vpop.trf.xlu0
        %v2103 = vpop.trf.xlu0
        %v2104 = vpop.trf.xlu0
        %v2105 = vpop.trf.xlu0
        %v2106 = vpop.trf.xlu0
        %v2107 = vpop.trf.xlu0
        %2108 = vxpose.xlu0.b32.start [1/16] %v1627, 128
        %2109 = vxpose.xlu0.b32.cont [2/16] 0.0, 128
        %2110 = vxpose.xlu0.b32.cont [3/16] 0.0, 128
        %2111 = vxpose.xlu0.b32.cont [4/16] 0.0, 128
        %2112 = vxpose.xlu0.b32.cont [5/16] 0.0, 128
        %2113 = vxpose.xlu0.b32.cont [6/16] 0.0, 128
        %2114 = vxpose.xlu0.b32.cont [7/16] 0.0, 128
        %2115 = vxpose.xlu0.b32.cont [8/16] 0.0, 128
        %2116 = vxpose.xlu0.b32.cont [9/16] 0.0, 128
        %2117 = vxpose.xlu0.b32.cont [10/16] 0.0, 128
        %2118 = vxpose.xlu0.b32.cont [11/16] 0.0, 128
        %2119 = vxpose.xlu0.b32.cont [12/16] 0.0, 128
        %2120 = vxpose.xlu0.b32.cont [13/16] 0.0, 128
        %2121 = vxpose.xlu0.b32.cont [14/16] 0.0, 128
        %2122 = vxpose.xlu0.b32.cont [15/16] 0.0, 128
        %2123 = vxpose.xlu0.b32.end [16/16] 0.0, 128
        %v2124 = vpop.trf.xlu0
        %v2125 = vpop.trf.xlu0
        %v2126 = vpop.trf.xlu0
        %v2127 = vpop.trf.xlu0
        %v2128 = vpop.trf.xlu0
        %v2129 = vpop.trf.xlu0
        %v2130 = vpop.trf.xlu0
        %v2131 = vpop.trf.xlu0
        %v2132 = vpop.trf.xlu0
        %v2133 = vpop.trf.xlu0
        %v2134 = vpop.trf.xlu0
        %v2135 = vpop.trf.xlu0
        %v2136 = vpop.trf.xlu0
        %v2137 = vpop.trf.xlu0
        %v2138 = vpop.trf.xlu0
        %v2139 = vpop.trf.xlu0
        %2140 = vxpose.xlu0.b32.start [1/16] %v1644, 128
        %2141 = vxpose.xlu0.b32.cont [2/16] %v1676, 128
        %2142 = vxpose.xlu0.b32.cont [3/16] %v1708, 128
        %2143 = vxpose.xlu0.b32.cont [4/16] %v1740, 128
        %2144 = vxpose.xlu0.b32.cont [5/16] %v1772, 128
        %2145 = vxpose.xlu0.b32.cont [6/16] %v1804, 128
        %2146 = vxpose.xlu0.b32.cont [7/16] %v1836, 128
        %2147 = vxpose.xlu0.b32.cont [8/16] %v1868, 128
        %2148 = vxpose.xlu0.b32.cont [9/16] 0.0, 128
        %2149 = vxpose.xlu0.b32.cont [10/16] 0.0, 128
        %2150 = vxpose.xlu0.b32.cont [11/16] 0.0, 128
        %2151 = vxpose.xlu0.b32.cont [12/16] 0.0, 128
        %2152 = vxpose.xlu0.b32.cont [13/16] 0.0, 128
        %2153 = vxpose.xlu0.b32.cont [14/16] 0.0, 128
        %2154 = vxpose.xlu0.b32.cont [15/16] 0.0, 128
        %2155 = vxpose.xlu0.b32.end [16/16] 0.0, 128
        %v2156 = vpop.trf.xlu0
        %v2157 = vpop.trf.xlu0
        %v2158 = vpop.trf.xlu0
        %v2159 = vpop.trf.xlu0
        %v2160 = vpop.trf.xlu0
        %v2161 = vpop.trf.xlu0
        %v2162 = vpop.trf.xlu0
        %v2163 = vpop.trf.xlu0
        %v2164 = vpop.trf.xlu0
        %v2165 = vpop.trf.xlu0
        %v2166 = vpop.trf.xlu0
        %v2167 = vpop.trf.xlu0
        %v2168 = vpop.trf.xlu0
        %v2169 = vpop.trf.xlu0
        %v2170 = vpop.trf.xlu0
        %v2171 = vpop.trf.xlu0
        %2172 = vxpose.xlu0.b32.start [1/16] %v1900, 128
        %2173 = vxpose.xlu0.b32.cont [2/16] %v1932, 128
        %2174 = vxpose.xlu0.b32.cont [3/16] %v1964, 128
        %2175 = vxpose.xlu0.b32.cont [4/16] %v1996, 128
        %2176 = vxpose.xlu0.b32.cont [5/16] %v2028, 128
        %2177 = vxpose.xlu0.b32.cont [6/16] %v2060, 128
        %2178 = vxpose.xlu0.b32.cont [7/16] %v2092, 128
        %2179 = vxpose.xlu0.b32.cont [8/16] %v2124, 128
        %2180 = vxpose.xlu0.b32.cont [9/16] 0.0, 128
        %2181 = vxpose.xlu0.b32.cont [10/16] 0.0, 128
        %2182 = vxpose.xlu0.b32.cont [11/16] 0.0, 128
        %2183 = vxpose.xlu0.b32.cont [12/16] 0.0, 128
        %2184 = vxpose.xlu0.b32.cont [13/16] 0.0, 128
        %2185 = vxpose.xlu0.b32.cont [14/16] 0.0, 128
        %2186 = vxpose.xlu0.b32.cont [15/16] 0.0, 128
        %2187 = vxpose.xlu0.b32.end [16/16] 0.0, 128
        %v2188 = vpop.trf.xlu0
        %v2189 = vpop.trf.xlu0
        %v2190 = vpop.trf.xlu0
        %v2191 = vpop.trf.xlu0
        %v2192 = vpop.trf.xlu0
        %v2193 = vpop.trf.xlu0
        %v2194 = vpop.trf.xlu0
        %v2195 = vpop.trf.xlu0
        %v2196 = vpop.trf.xlu0
        %v2197 = vpop.trf.xlu0
        %v2198 = vpop.trf.xlu0
        %v2199 = vpop.trf.xlu0
        %v2200 = vpop.trf.xlu0
        %v2201 = vpop.trf.xlu0
        %v2202 = vpop.trf.xlu0
        %v2203 = vpop.trf.xlu0
        %vm2204 = vcmask 517120
        %2205 = vst.msk [vmem:[%s152] sm:$0x3] %vm2204, %v2156
        %2206 = vst.msk [vmem:[%s152 + $0x4] sm:$0x3] %vm2204, %v2188
        %s2207 = scalar_lea.vmem [#allocation2], 32
        %v2208 = vld [vmem:[%s2207] sm:$0x3]
        %v2209 = vld [vmem:[%s2207 + $0x2] sm:$0x3]
        %v2210 = vld [vmem:[%s2207 + $0x4] sm:$0x3]
        %v2211 = vld [vmem:[%s2207 + $0x6] sm:$0x3]
        %v2212 = vld [vmem:[%s2207 + $0x8] sm:$0x3]
        %v2213 = vld [vmem:[%s2207 + $0xa] sm:$0x3]
        %v2214 = vld [vmem:[%s2207 + $0xc] sm:$0x3]
        %v2215 = vld [vmem:[%s2207 + $0xe] sm:$0x3]
        %v2216 = vld [vmem:[%s2207 + $0x10] sm:$0x3]
        %v2217 = vld [vmem:[%s2207 + $0x12] sm:$0x3]
        %v2218 = vld [vmem:[%s2207 + $0x14] sm:$0x3]
        %v2219 = vld [vmem:[%s2207 + $0x16] sm:$0x3]
        %v2220 = vld [vmem:[%s2207 + $0x18] sm:$0x3]
        %v2221 = vld [vmem:[%s2207 + $0x1a] sm:$0x3]
        %v2222 = vld [vmem:[%s2207 + $0x1c] sm:$0x3]
        %v2223 = vld [vmem:[%s2207 + $0x1e] sm:$0x3]
        %2224 = vxpose.xlu0.b32.start [1/16] %v2208, 128
        %2225 = vxpose.xlu0.b32.cont [2/16] 0.0, 128
        %2226 = vxpose.xlu0.b32.cont [3/16] 0.0, 128
        %2227 = vxpose.xlu0.b32.cont [4/16] 0.0, 128
        %2228 = vxpose.xlu0.b32.cont [5/16] 0.0, 128
        %2229 = vxpose.xlu0.b32.cont [6/16] 0.0, 128
        %2230 = vxpose.xlu0.b32.cont [7/16] 0.0, 128
        %2231 = vxpose.xlu0.b32.cont [8/16] 0.0, 128
        %2232 = vxpose.xlu0.b32.cont [9/16] 0.0, 128
        %2233 = vxpose.xlu0.b32.cont [10/16] 0.0, 128
        %2234 = vxpose.xlu0.b32.cont [11/16] 0.0, 128
        %2235 = vxpose.xlu0.b32.cont [12/16] 0.0, 128
        %2236 = vxpose.xlu0.b32.cont [13/16] 0.0, 128
        %2237 = vxpose.xlu0.b32.cont [14/16] 0.0, 128
        %2238 = vxpose.xlu0.b32.cont [15/16] 0.0, 128
        %2239 = vxpose.xlu0.b32.end [16/16] 0.0, 128
        %v2240 = vpop.trf.xlu0
        %v2241 = vpop.trf.xlu0
        %v2242 = vpop.trf.xlu0
        %v2243 = vpop.trf.xlu0
        %v2244 = vpop.trf.xlu0
        %v2245 = vpop.trf.xlu0
        %v2246 = vpop.trf.xlu0
        %v2247 = vpop.trf.xlu0
        %v2248 = vpop.trf.xlu0
        %v2249 = vpop.trf.xlu0
        %v2250 = vpop.trf.xlu0
        %v2251 = vpop.trf.xlu0
        %v2252 = vpop.trf.xlu0
        %v2253 = vpop.trf.xlu0
        %v2254 = vpop.trf.xlu0
        %v2255 = vpop.trf.xlu0
        %2256 = vxpose.xlu0.b32.start [1/16] %v2209, 128
        %2257 = vxpose.xlu0.b32.cont [2/16] 0.0, 128
        %2258 = vxpose.xlu0.b32.cont [3/16] 0.0, 128
        %2259 = vxpose.xlu0.b32.cont [4/16] 0.0, 128
        %2260 = vxpose.xlu0.b32.cont [5/16] 0.0, 128
        %2261 = vxpose.xlu0.b32.cont [6/16] 0.0, 128
        %2262 = vxpose.xlu0.b32.cont [7/16] 0.0, 128
        %2263 = vxpose.xlu0.b32.cont [8/16] 0.0, 128
        %2264 = vxpose.xlu0.b32.cont [9/16] 0.0, 128
        %2265 = vxpose.xlu0.b32.cont [10/16] 0.0, 128
        %2266 = vxpose.xlu0.b32.cont [11/16] 0.0, 128
        %2267 = vxpose.xlu0.b32.cont [12/16] 0.0, 128
        %2268 = vxpose.xlu0.b32.cont [13/16] 0.0, 128
        %2269 = vxpose.xlu0.b32.cont [14/16] 0.0, 128
        %2270 = vxpose.xlu0.b32.cont [15/16] 0.0, 128
        %2271 = vxpose.xlu0.b32.end [16/16] 0.0, 128
        %v2272 = vpop.trf.xlu0
        %v2273 = vpop.trf.xlu0
        %v2274 = vpop.trf.xlu0
        %v2275 = vpop.trf.xlu0
        %v2276 = vpop.trf.xlu0
        %v2277 = vpop.trf.xlu0
        %v2278 = vpop.trf.xlu0
        %v2279 = vpop.trf.xlu0
        %v2280 = vpop.trf.xlu0
        %v2281 = vpop.trf.xlu0
        %v2282 = vpop.trf.xlu0
        %v2283 = vpop.trf.xlu0
        %v2284 = vpop.trf.xlu0
        %v2285 = vpop.trf.xlu0
        %v2286 = vpop.trf.xlu0
        %v2287 = vpop.trf.xlu0
        %2288 = vxpose.xlu0.b32.start [1/16] %v2210, 128
        %2289 = vxpose.xlu0.b32.cont [2/16] 0.0, 128
        %2290 = vxpose.xlu0.b32.cont [3/16] 0.0, 128
        %2291 = vxpose.xlu0.b32.cont [4/16] 0.0, 128
        %2292 = vxpose.xlu0.b32.cont [5/16] 0.0, 128
        %2293 = vxpose.xlu0.b32.cont [6/16] 0.0, 128
        %2294 = vxpose.xlu0.b32.cont [7/16] 0.0, 128
        %2295 = vxpose.xlu0.b32.cont [8/16] 0.0, 128
        %2296 = vxpose.xlu0.b32.cont [9/16] 0.0, 128
        %2297 = vxpose.xlu0.b32.cont [10/16] 0.0, 128
        %2298 = vxpose.xlu0.b32.cont [11/16] 0.0, 128
        %2299 = vxpose.xlu0.b32.cont [12/16] 0.0, 128
        %2300 = vxpose.xlu0.b32.cont [13/16] 0.0, 128
        %2301 = vxpose.xlu0.b32.cont [14/16] 0.0, 128
        %2302 = vxpose.xlu0.b32.cont [15/16] 0.0, 128
        %2303 = vxpose.xlu0.b32.end [16/16] 0.0, 128
        %v2304 = vpop.trf.xlu0
        %v2305 = vpop.trf.xlu0
        %v2306 = vpop.trf.xlu0
        %v2307 = vpop.trf.xlu0
        %v2308 = vpop.trf.xlu0
        %v2309 = vpop.trf.xlu0
        %v2310 = vpop.trf.xlu0
        %v2311 = vpop.trf.xlu0
        %v2312 = vpop.trf.xlu0
        %v2313 = vpop.trf.xlu0
        %v2314 = vpop.trf.xlu0
        %v2315 = vpop.trf.xlu0
        %v2316 = vpop.trf.xlu0
        %v2317 = vpop.trf.xlu0
        %v2318 = vpop.trf.xlu0
        %v2319 = vpop.trf.xlu0
        %2320 = vxpose.xlu0.b32.start [1/16] %v2211, 128
        %2321 = vxpose.xlu0.b32.cont [2/16] 0.0, 128
        %2322 = vxpose.xlu0.b32.cont [3/16] 0.0, 128
        %2323 = vxpose.xlu0.b32.cont [4/16] 0.0, 128
        %2324 = vxpose.xlu0.b32.cont [5/16] 0.0, 128
        %2325 = vxpose.xlu0.b32.cont [6/16] 0.0, 128
        %2326 = vxpose.xlu0.b32.cont [7/16] 0.0, 128
        %2327 = vxpose.xlu0.b32.cont [8/16] 0.0, 128
        %2328 = vxpose.xlu0.b32.cont [9/16] 0.0, 128
        %2329 = vxpose.xlu0.b32.cont [10/16] 0.0, 128
        %2330 = vxpose.xlu0.b32.cont [11/16] 0.0, 128
        %2331 = vxpose.xlu0.b32.cont [12/16] 0.0, 128
        %2332 = vxpose.xlu0.b32.cont [13/16] 0.0, 128
        %2333 = vxpose.xlu0.b32.cont [14/16] 0.0, 128
        %2334 = vxpose.xlu0.b32.cont [15/16] 0.0, 128
        %2335 = vxpose.xlu0.b32.end [16/16] 0.0, 128
        %v2336 = vpop.trf.xlu0
        %v2337 = vpop.trf.xlu0
        %v2338 = vpop.trf.xlu0
        %v2339 = vpop.trf.xlu0
        %v2340 = vpop.trf.xlu0
        %v2341 = vpop.trf.xlu0
        %v2342 = vpop.trf.xlu0
        %v2343 = vpop.trf.xlu0
        %v2344 = vpop.trf.xlu0
        %v2345 = vpop.trf.xlu0
        %v2346 = vpop.trf.xlu0
        %v2347 = vpop.trf.xlu0
        %v2348 = vpop.trf.xlu0
        %v2349 = vpop.trf.xlu0
        %v2350 = vpop.trf.xlu0
        %v2351 = vpop.trf.xlu0
        %2352 = vxpose.xlu0.b32.start [1/16] %v2212, 128
        %2353 = vxpose.xlu0.b32.cont [2/16] 0.0, 128
        %2354 = vxpose.xlu0.b32.cont [3/16] 0.0, 128
        %2355 = vxpose.xlu0.b32.cont [4/16] 0.0, 128
        %2356 = vxpose.xlu0.b32.cont [5/16] 0.0, 128
        %2357 = vxpose.xlu0.b32.cont [6/16] 0.0, 128
        %2358 = vxpose.xlu0.b32.cont [7/16] 0.0, 128
        %2359 = vxpose.xlu0.b32.cont [8/16] 0.0, 128
        %2360 = vxpose.xlu0.b32.cont [9/16] 0.0, 128
        %2361 = vxpose.xlu0.b32.cont [10/16] 0.0, 128
        %2362 = vxpose.xlu0.b32.cont [11/16] 0.0, 128
        %2363 = vxpose.xlu0.b32.cont [12/16] 0.0, 128
        %2364 = vxpose.xlu0.b32.cont [13/16] 0.0, 128
        %2365 = vxpose.xlu0.b32.cont [14/16] 0.0, 128
        %2366 = vxpose.xlu0.b32.cont [15/16] 0.0, 128
        %2367 = vxpose.xlu0.b32.end [16/16] 0.0, 128
        %v2368 = vpop.trf.xlu0
        %v2369 = vpop.trf.xlu0
        %v2370 = vpop.trf.xlu0
        %v2371 = vpop.trf.xlu0
        %v2372 = vpop.trf.xlu0
        %v2373 = vpop.trf.xlu0
        %v2374 = vpop.trf.xlu0
        %v2375 = vpop.trf.xlu0
        %v2376 = vpop.trf.xlu0
        %v2377 = vpop.trf.xlu0
        %v2378 = vpop.trf.xlu0
        %v2379 = vpop.trf.xlu0
        %v2380 = vpop.trf.xlu0
        %v2381 = vpop.trf.xlu0
        %v2382 = vpop.trf.xlu0
        %v2383 = vpop.trf.xlu0
        %2384 = vxpose.xlu0.b32.start [1/16] %v2213, 128
        %2385 = vxpose.xlu0.b32.cont [2/16] 0.0, 128
        %2386 = vxpose.xlu0.b32.cont [3/16] 0.0, 128
        %2387 = vxpose.xlu0.b32.cont [4/16] 0.0, 128
        %2388 = vxpose.xlu0.b32.cont [5/16] 0.0, 128
        %2389 = vxpose.xlu0.b32.cont [6/16] 0.0, 128
        %2390 = vxpose.xlu0.b32.cont [7/16] 0.0, 128
        %2391 = vxpose.xlu0.b32.cont [8/16] 0.0, 128
        %2392 = vxpose.xlu0.b32.cont [9/16] 0.0, 128
        %2393 = vxpose.xlu0.b32.cont [10/16] 0.0, 128
        %2394 = vxpose.xlu0.b32.cont [11/16] 0.0, 128
        %2395 = vxpose.xlu0.b32.cont [12/16] 0.0, 128
        %2396 = vxpose.xlu0.b32.cont [13/16] 0.0, 128
        %2397 = vxpose.xlu0.b32.cont [14/16] 0.0, 128
        %2398 = vxpose.xlu0.b32.cont [15/16] 0.0, 128
        %2399 = vxpose.xlu0.b32.end [16/16] 0.0, 128
        %v2400 = vpop.trf.xlu0
        %v2401 = vpop.trf.xlu0
        %v2402 = vpop.trf.xlu0
        %v2403 = vpop.trf.xlu0
        %v2404 = vpop.trf.xlu0
        %v2405 = vpop.trf.xlu0
        %v2406 = vpop.trf.xlu0
        %v2407 = vpop.trf.xlu0
        %v2408 = vpop.trf.xlu0
        %v2409 = vpop.trf.xlu0
        %v2410 = vpop.trf.xlu0
        %v2411 = vpop.trf.xlu0
        %v2412 = vpop.trf.xlu0
        %v2413 = vpop.trf.xlu0
        %v2414 = vpop.trf.xlu0
        %v2415 = vpop.trf.xlu0
        %2416 = vxpose.xlu0.b32.start [1/16] %v2214, 128
        %2417 = vxpose.xlu0.b32.cont [2/16] 0.0, 128
        %2418 = vxpose.xlu0.b32.cont [3/16] 0.0, 128
        %2419 = vxpose.xlu0.b32.cont [4/16] 0.0, 128
        %2420 = vxpose.xlu0.b32.cont [5/16] 0.0, 128
        %2421 = vxpose.xlu0.b32.cont [6/16] 0.0, 128
        %2422 = vxpose.xlu0.b32.cont [7/16] 0.0, 128
        %2423 = vxpose.xlu0.b32.cont [8/16] 0.0, 128
        %2424 = vxpose.xlu0.b32.cont [9/16] 0.0, 128
        %2425 = vxpose.xlu0.b32.cont [10/16] 0.0, 128
        %2426 = vxpose.xlu0.b32.cont [11/16] 0.0, 128
        %2427 = vxpose.xlu0.b32.cont [12/16] 0.0, 128
        %2428 = vxpose.xlu0.b32.cont [13/16] 0.0, 128
        %2429 = vxpose.xlu0.b32.cont [14/16] 0.0, 128
        %2430 = vxpose.xlu0.b32.cont [15/16] 0.0, 128
        %2431 = vxpose.xlu0.b32.end [16/16] 0.0, 128
        %v2432 = vpop.trf.xlu0
        %v2433 = vpop.trf.xlu0
        %v2434 = vpop.trf.xlu0
        %v2435 = vpop.trf.xlu0
        %v2436 = vpop.trf.xlu0
        %v2437 = vpop.trf.xlu0
        %v2438 = vpop.trf.xlu0
        %v2439 = vpop.trf.xlu0
        %v2440 = vpop.trf.xlu0
        %v2441 = vpop.trf.xlu0
        %v2442 = vpop.trf.xlu0
        %v2443 = vpop.trf.xlu0
        %v2444 = vpop.trf.xlu0
        %v2445 = vpop.trf.xlu0
        %v2446 = vpop.trf.xlu0
        %v2447 = vpop.trf.xlu0
        %2448 = vxpose.xlu0.b32.start [1/16] %v2215, 128
        %2449 = vxpose.xlu0.b32.cont [2/16] 0.0, 128
        %2450 = vxpose.xlu0.b32.cont [3/16] 0.0, 128
        %2451 = vxpose.xlu0.b32.cont [4/16] 0.0, 128
        %2452 = vxpose.xlu0.b32.cont [5/16] 0.0, 128
        %2453 = vxpose.xlu0.b32.cont [6/16] 0.0, 128
        %2454 = vxpose.xlu0.b32.cont [7/16] 0.0, 128
        %2455 = vxpose.xlu0.b32.cont [8/16] 0.0, 128
        %2456 = vxpose.xlu0.b32.cont [9/16] 0.0, 128
        %2457 = vxpose.xlu0.b32.cont [10/16] 0.0, 128
        %2458 = vxpose.xlu0.b32.cont [11/16] 0.0, 128
        %2459 = vxpose.xlu0.b32.cont [12/16] 0.0, 128
        %2460 = vxpose.xlu0.b32.cont [13/16] 0.0, 128
        %2461 = vxpose.xlu0.b32.cont [14/16] 0.0, 128
        %2462 = vxpose.xlu0.b32.cont [15/16] 0.0, 128
        %2463 = vxpose.xlu0.b32.end [16/16] 0.0, 128
        %v2464 = vpop.trf.xlu0
        %v2465 = vpop.trf.xlu0
        %v2466 = vpop.trf.xlu0
        %v2467 = vpop.trf.xlu0
        %v2468 = vpop.trf.xlu0
        %v2469 = vpop.trf.xlu0
        %v2470 = vpop.trf.xlu0
        %v2471 = vpop.trf.xlu0
        %v2472 = vpop.trf.xlu0
        %v2473 = vpop.trf.xlu0
        %v2474 = vpop.trf.xlu0
        %v2475 = vpop.trf.xlu0
        %v2476 = vpop.trf.xlu0
        %v2477 = vpop.trf.xlu0
        %v2478 = vpop.trf.xlu0
        %v2479 = vpop.trf.xlu0
        %2480 = vxpose.xlu0.b32.start [1/16] %v2216, 128
        %2481 = vxpose.xlu0.b32.cont [2/16] 0.0, 128
        %2482 = vxpose.xlu0.b32.cont [3/16] 0.0, 128
        %2483 = vxpose.xlu0.b32.cont [4/16] 0.0, 128
        %2484 = vxpose.xlu0.b32.cont [5/16] 0.0, 128
        %2485 = vxpose.xlu0.b32.cont [6/16] 0.0, 128
        %2486 = vxpose.xlu0.b32.cont [7/16] 0.0, 128
        %2487 = vxpose.xlu0.b32.cont [8/16] 0.0, 128
        %2488 = vxpose.xlu0.b32.cont [9/16] 0.0, 128
        %2489 = vxpose.xlu0.b32.cont [10/16] 0.0, 128
        %2490 = vxpose.xlu0.b32.cont [11/16] 0.0, 128
        %2491 = vxpose.xlu0.b32.cont [12/16] 0.0, 128
        %2492 = vxpose.xlu0.b32.cont [13/16] 0.0, 128
        %2493 = vxpose.xlu0.b32.cont [14/16] 0.0, 128
        %2494 = vxpose.xlu0.b32.cont [15/16] 0.0, 128
        %2495 = vxpose.xlu0.b32.end [16/16] 0.0, 128
        %v2496 = vpop.trf.xlu0
        %v2497 = vpop.trf.xlu0
        %v2498 = vpop.trf.xlu0
        %v2499 = vpop.trf.xlu0
        %v2500 = vpop.trf.xlu0
        %v2501 = vpop.trf.xlu0
        %v2502 = vpop.trf.xlu0
        %v2503 = vpop.trf.xlu0
        %v2504 = vpop.trf.xlu0
        %v2505 = vpop.trf.xlu0
        %v2506 = vpop.trf.xlu0
        %v2507 = vpop.trf.xlu0
        %v2508 = vpop.trf.xlu0
        %v2509 = vpop.trf.xlu0
        %v2510 = vpop.trf.xlu0
        %v2511 = vpop.trf.xlu0
        %2512 = vxpose.xlu0.b32.start [1/16] %v2217, 128
        %2513 = vxpose.xlu0.b32.cont [2/16] 0.0, 128
        %2514 = vxpose.xlu0.b32.cont [3/16] 0.0, 128
        %2515 = vxpose.xlu0.b32.cont [4/16] 0.0, 128
        %2516 = vxpose.xlu0.b32.cont [5/16] 0.0, 128
        %2517 = vxpose.xlu0.b32.cont [6/16] 0.0, 128
        %2518 = vxpose.xlu0.b32.cont [7/16] 0.0, 128
        %2519 = vxpose.xlu0.b32.cont [8/16] 0.0, 128
        %2520 = vxpose.xlu0.b32.cont [9/16] 0.0, 128
        %2521 = vxpose.xlu0.b32.cont [10/16] 0.0, 128
        %2522 = vxpose.xlu0.b32.cont [11/16] 0.0, 128
        %2523 = vxpose.xlu0.b32.cont [12/16] 0.0, 128
        %2524 = vxpose.xlu0.b32.cont [13/16] 0.0, 128
        %2525 = vxpose.xlu0.b32.cont [14/16] 0.0, 128
        %2526 = vxpose.xlu0.b32.cont [15/16] 0.0, 128
        %2527 = vxpose.xlu0.b32.end [16/16] 0.0, 128
        %v2528 = vpop.trf.xlu0
        %v2529 = vpop.trf.xlu0
        %v2530 = vpop.trf.xlu0
        %v2531 = vpop.trf.xlu0
        %v2532 = vpop.trf.xlu0
        %v2533 = vpop.trf.xlu0
        %v2534 = vpop.trf.xlu0
        %v2535 = vpop.trf.xlu0
        %v2536 = vpop.trf.xlu0
        %v2537 = vpop.trf.xlu0
        %v2538 = vpop.trf.xlu0
        %v2539 = vpop.trf.xlu0
        %v2540 = vpop.trf.xlu0
        %v2541 = vpop.trf.xlu0
        %v2542 = vpop.trf.xlu0
        %v2543 = vpop.trf.xlu0
        %2544 = vxpose.xlu0.b32.start [1/16] %v2218, 128
        %2545 = vxpose.xlu0.b32.cont [2/16] 0.0, 128
        %2546 = vxpose.xlu0.b32.cont [3/16] 0.0, 128
        %2547 = vxpose.xlu0.b32.cont [4/16] 0.0, 128
        %2548 = vxpose.xlu0.b32.cont [5/16] 0.0, 128
        %2549 = vxpose.xlu0.b32.cont [6/16] 0.0, 128
        %2550 = vxpose.xlu0.b32.cont [7/16] 0.0, 128
        %2551 = vxpose.xlu0.b32.cont [8/16] 0.0, 128
        %2552 = vxpose.xlu0.b32.cont [9/16] 0.0, 128
        %2553 = vxpose.xlu0.b32.cont [10/16] 0.0, 128
        %2554 = vxpose.xlu0.b32.cont [11/16] 0.0, 128
        %2555 = vxpose.xlu0.b32.cont [12/16] 0.0, 128
        %2556 = vxpose.xlu0.b32.cont [13/16] 0.0, 128
        %2557 = vxpose.xlu0.b32.cont [14/16] 0.0, 128
        %2558 = vxpose.xlu0.b32.cont [15/16] 0.0, 128
        %2559 = vxpose.xlu0.b32.end [16/16] 0.0, 128
        %v2560 = vpop.trf.xlu0
        %v2561 = vpop.trf.xlu0
        %v2562 = vpop.trf.xlu0
        %v2563 = vpop.trf.xlu0
        %v2564 = vpop.trf.xlu0
        %v2565 = vpop.trf.xlu0
        %v2566 = vpop.trf.xlu0
        %v2567 = vpop.trf.xlu0
        %v2568 = vpop.trf.xlu0
        %v2569 = vpop.trf.xlu0
        %v2570 = vpop.trf.xlu0
        %v2571 = vpop.trf.xlu0
        %v2572 = vpop.trf.xlu0
        %v2573 = vpop.trf.xlu0
        %v2574 = vpop.trf.xlu0
        %v2575 = vpop.trf.xlu0
        %2576 = vxpose.xlu0.b32.start [1/16] %v2219, 128
        %2577 = vxpose.xlu0.b32.cont [2/16] 0.0, 128
        %2578 = vxpose.xlu0.b32.cont [3/16] 0.0, 128
        %2579 = vxpose.xlu0.b32.cont [4/16] 0.0, 128
        %2580 = vxpose.xlu0.b32.cont [5/16] 0.0, 128
        %2581 = vxpose.xlu0.b32.cont [6/16] 0.0, 128
        %2582 = vxpose.xlu0.b32.cont [7/16] 0.0, 128
        %2583 = vxpose.xlu0.b32.cont [8/16] 0.0, 128
        %2584 = vxpose.xlu0.b32.cont [9/16] 0.0, 128
        %2585 = vxpose.xlu0.b32.cont [10/16] 0.0, 128
        %2586 = vxpose.xlu0.b32.cont [11/16] 0.0, 128
        %2587 = vxpose.xlu0.b32.cont [12/16] 0.0, 128
        %2588 = vxpose.xlu0.b32.cont [13/16] 0.0, 128
        %2589 = vxpose.xlu0.b32.cont [14/16] 0.0, 128
        %2590 = vxpose.xlu0.b32.cont [15/16] 0.0, 128
        %2591 = vxpose.xlu0.b32.end [16/16] 0.0, 128
        %v2592 = vpop.trf.xlu0
        %v2593 = vpop.trf.xlu0
        %v2594 = vpop.trf.xlu0
        %v2595 = vpop.trf.xlu0
        %v2596 = vpop.trf.xlu0
        %v2597 = vpop.trf.xlu0
        %v2598 = vpop.trf.xlu0
        %v2599 = vpop.trf.xlu0
        %v2600 = vpop.trf.xlu0
        %v2601 = vpop.trf.xlu0
        %v2602 = vpop.trf.xlu0
        %v2603 = vpop.trf.xlu0
        %v2604 = vpop.trf.xlu0
        %v2605 = vpop.trf.xlu0
        %v2606 = vpop.trf.xlu0
        %v2607 = vpop.trf.xlu0
        %2608 = vxpose.xlu0.b32.start [1/16] %v2220, 128
        %2609 = vxpose.xlu0.b32.cont [2/16] 0.0, 128
        %2610 = vxpose.xlu0.b32.cont [3/16] 0.0, 128
        %2611 = vxpose.xlu0.b32.cont [4/16] 0.0, 128
        %2612 = vxpose.xlu0.b32.cont [5/16] 0.0, 128
        %2613 = vxpose.xlu0.b32.cont [6/16] 0.0, 128
        %2614 = vxpose.xlu0.b32.cont [7/16] 0.0, 128
        %2615 = vxpose.xlu0.b32.cont [8/16] 0.0, 128
        %2616 = vxpose.xlu0.b32.cont [9/16] 0.0, 128
        %2617 = vxpose.xlu0.b32.cont [10/16] 0.0, 128
        %2618 = vxpose.xlu0.b32.cont [11/16] 0.0, 128
        %2619 = vxpose.xlu0.b32.cont [12/16] 0.0, 128
        %2620 = vxpose.xlu0.b32.cont [13/16] 0.0, 128
        %2621 = vxpose.xlu0.b32.cont [14/16] 0.0, 128
        %2622 = vxpose.xlu0.b32.cont [15/16] 0.0, 128
        %2623 = vxpose.xlu0.b32.end [16/16] 0.0, 128
        %v2624 = vpop.trf.xlu0
        %v2625 = vpop.trf.xlu0
        %v2626 = vpop.trf.xlu0
        %v2627 = vpop.trf.xlu0
        %v2628 = vpop.trf.xlu0
        %v2629 = vpop.trf.xlu0
        %v2630 = vpop.trf.xlu0
        %v2631 = vpop.trf.xlu0
        %v2632 = vpop.trf.xlu0
        %v2633 = vpop.trf.xlu0
        %v2634 = vpop.trf.xlu0
        %v2635 = vpop.trf.xlu0
        %v2636 = vpop.trf.xlu0
        %v2637 = vpop.trf.xlu0
        %v2638 = vpop.trf.xlu0
        %v2639 = vpop.trf.xlu0
        %2640 = vxpose.xlu0.b32.start [1/16] %v2221, 128
        %2641 = vxpose.xlu0.b32.cont [2/16] 0.0, 128
        %2642 = vxpose.xlu0.b32.cont [3/16] 0.0, 128
        %2643 = vxpose.xlu0.b32.cont [4/16] 0.0, 128
        %2644 = vxpose.xlu0.b32.cont [5/16] 0.0, 128
        %2645 = vxpose.xlu0.b32.cont [6/16] 0.0, 128
        %2646 = vxpose.xlu0.b32.cont [7/16] 0.0, 128
        %2647 = vxpose.xlu0.b32.cont [8/16] 0.0, 128
        %2648 = vxpose.xlu0.b32.cont [9/16] 0.0, 128
        %2649 = vxpose.xlu0.b32.cont [10/16] 0.0, 128
        %2650 = vxpose.xlu0.b32.cont [11/16] 0.0, 128
        %2651 = vxpose.xlu0.b32.cont [12/16] 0.0, 128
        %2652 = vxpose.xlu0.b32.cont [13/16] 0.0, 128
        %2653 = vxpose.xlu0.b32.cont [14/16] 0.0, 128
        %2654 = vxpose.xlu0.b32.cont [15/16] 0.0, 128
        %2655 = vxpose.xlu0.b32.end [16/16] 0.0, 128
        %v2656 = vpop.trf.xlu0
        %v2657 = vpop.trf.xlu0
        %v2658 = vpop.trf.xlu0
        %v2659 = vpop.trf.xlu0
        %v2660 = vpop.trf.xlu0
        %v2661 = vpop.trf.xlu0
        %v2662 = vpop.trf.xlu0
        %v2663 = vpop.trf.xlu0
        %v2664 = vpop.trf.xlu0
        %v2665 = vpop.trf.xlu0
        %v2666 = vpop.trf.xlu0
        %v2667 = vpop.trf.xlu0
        %v2668 = vpop.trf.xlu0
        %v2669 = vpop.trf.xlu0
        %v2670 = vpop.trf.xlu0
        %v2671 = vpop.trf.xlu0
        %2672 = vxpose.xlu0.b32.start [1/16] %v2222, 128
        %2673 = vxpose.xlu0.b32.cont [2/16] 0.0, 128
        %2674 = vxpose.xlu0.b32.cont [3/16] 0.0, 128
        %2675 = vxpose.xlu0.b32.cont [4/16] 0.0, 128
        %2676 = vxpose.xlu0.b32.cont [5/16] 0.0, 128
        %2677 = vxpose.xlu0.b32.cont [6/16] 0.0, 128
        %2678 = vxpose.xlu0.b32.cont [7/16] 0.0, 128
        %2679 = vxpose.xlu0.b32.cont [8/16] 0.0, 128
        %2680 = vxpose.xlu0.b32.cont [9/16] 0.0, 128
        %2681 = vxpose.xlu0.b32.cont [10/16] 0.0, 128
        %2682 = vxpose.xlu0.b32.cont [11/16] 0.0, 128
        %2683 = vxpose.xlu0.b32.cont [12/16] 0.0, 128
        %2684 = vxpose.xlu0.b32.cont [13/16] 0.0, 128
        %2685 = vxpose.xlu0.b32.cont [14/16] 0.0, 128
        %2686 = vxpose.xlu0.b32.cont [15/16] 0.0, 128
        %2687 = vxpose.xlu0.b32.end [16/16] 0.0, 128
        %v2688 = vpop.trf.xlu0
        %v2689 = vpop.trf.xlu0
        %v2690 = vpop.trf.xlu0
        %v2691 = vpop.trf.xlu0
        %v2692 = vpop.trf.xlu0
        %v2693 = vpop.trf.xlu0
        %v2694 = vpop.trf.xlu0
        %v2695 = vpop.trf.xlu0
        %v2696 = vpop.trf.xlu0
        %v2697 = vpop.trf.xlu0
        %v2698 = vpop.trf.xlu0
        %v2699 = vpop.trf.xlu0
        %v2700 = vpop.trf.xlu0
        %v2701 = vpop.trf.xlu0
        %v2702 = vpop.trf.xlu0
        %v2703 = vpop.trf.xlu0
        %2704 = vxpose.xlu0.b32.start [1/16] %v2223, 128
        %2705 = vxpose.xlu0.b32.cont [2/16] 0.0, 128
        %2706 = vxpose.xlu0.b32.cont [3/16] 0.0, 128
        %2707 = vxpose.xlu0.b32.cont [4/16] 0.0, 128
        %2708 = vxpose.xlu0.b32.cont [5/16] 0.0, 128
        %2709 = vxpose.xlu0.b32.cont [6/16] 0.0, 128
        %2710 = vxpose.xlu0.b32.cont [7/16] 0.0, 128
        %2711 = vxpose.xlu0.b32.cont [8/16] 0.0, 128
        %2712 = vxpose.xlu0.b32.cont [9/16] 0.0, 128
        %2713 = vxpose.xlu0.b32.cont [10/16] 0.0, 128
        %2714 = vxpose.xlu0.b32.cont [11/16] 0.0, 128
        %2715 = vxpose.xlu0.b32.cont [12/16] 0.0, 128
        %2716 = vxpose.xlu0.b32.cont [13/16] 0.0, 128
        %2717 = vxpose.xlu0.b32.cont [14/16] 0.0, 128
        %2718 = vxpose.xlu0.b32.cont [15/16] 0.0, 128
        %2719 = vxpose.xlu0.b32.end [16/16] 0.0, 128
        %v2720 = vpop.trf.xlu0
        %v2721 = vpop.trf.xlu0
        %v2722 = vpop.trf.xlu0
        %v2723 = vpop.trf.xlu0
        %v2724 = vpop.trf.xlu0
        %v2725 = vpop.trf.xlu0
        %v2726 = vpop.trf.xlu0
        %v2727 = vpop.trf.xlu0
        %v2728 = vpop.trf.xlu0
        %v2729 = vpop.trf.xlu0
        %v2730 = vpop.trf.xlu0
        %v2731 = vpop.trf.xlu0
        %v2732 = vpop.trf.xlu0
        %v2733 = vpop.trf.xlu0
        %v2734 = vpop.trf.xlu0
        %v2735 = vpop.trf.xlu0
        %2736 = vxpose.xlu0.b32.start [1/16] %v2240, 128
        %2737 = vxpose.xlu0.b32.cont [2/16] %v2272, 128
        %2738 = vxpose.xlu0.b32.cont [3/16] %v2304, 128
        %2739 = vxpose.xlu0.b32.cont [4/16] %v2336, 128
        %2740 = vxpose.xlu0.b32.cont [5/16] %v2368, 128
        %2741 = vxpose.xlu0.b32.cont [6/16] %v2400, 128
        %2742 = vxpose.xlu0.b32.cont [7/16] %v2432, 128
        %2743 = vxpose.xlu0.b32.cont [8/16] %v2464, 128
        %2744 = vxpose.xlu0.b32.cont [9/16] 0.0, 128
        %2745 = vxpose.xlu0.b32.cont [10/16] 0.0, 128
        %2746 = vxpose.xlu0.b32.cont [11/16] 0.0, 128
        %2747 = vxpose.xlu0.b32.cont [12/16] 0.0, 128
        %2748 = vxpose.xlu0.b32.cont [13/16] 0.0, 128
        %2749 = vxpose.xlu0.b32.cont [14/16] 0.0, 128
        %2750 = vxpose.xlu0.b32.cont [15/16] 0.0, 128
        %2751 = vxpose.xlu0.b32.end [16/16] 0.0, 128
        %v2752 = vpop.trf.xlu0
        %v2753 = vpop.trf.xlu0
        %v2754 = vpop.trf.xlu0
        %v2755 = vpop.trf.xlu0
        %v2756 = vpop.trf.xlu0
        %v2757 = vpop.trf.xlu0
        %v2758 = vpop.trf.xlu0
        %v2759 = vpop.trf.xlu0
        %v2760 = vpop.trf.xlu0
        %v2761 = vpop.trf.xlu0
        %v2762 = vpop.trf.xlu0
        %v2763 = vpop.trf.xlu0
        %v2764 = vpop.trf.xlu0
        %v2765 = vpop.trf.xlu0
        %v2766 = vpop.trf.xlu0
        %v2767 = vpop.trf.xlu0
        %2768 = vxpose.xlu0.b32.start [1/16] %v2496, 128
        %2769 = vxpose.xlu0.b32.cont [2/16] %v2528, 128
        %2770 = vxpose.xlu0.b32.cont [3/16] %v2560, 128
        %2771 = vxpose.xlu0.b32.cont [4/16] %v2592, 128
        %2772 = vxpose.xlu0.b32.cont [5/16] %v2624, 128
        %2773 = vxpose.xlu0.b32.cont [6/16] %v2656, 128
        %2774 = vxpose.xlu0.b32.cont [7/16] %v2688, 128
        %2775 = vxpose.xlu0.b32.cont [8/16] %v2720, 128
        %2776 = vxpose.xlu0.b32.cont [9/16] 0.0, 128
        %2777 = vxpose.xlu0.b32.cont [10/16] 0.0, 128
        %2778 = vxpose.xlu0.b32.cont [11/16] 0.0, 128
        %2779 = vxpose.xlu0.b32.cont [12/16] 0.0, 128
        %2780 = vxpose.xlu0.b32.cont [13/16] 0.0, 128
        %2781 = vxpose.xlu0.b32.cont [14/16] 0.0, 128
        %2782 = vxpose.xlu0.b32.cont [15/16] 0.0, 128
        %2783 = vxpose.xlu0.b32.end [16/16] 0.0, 128
        %v2784 = vpop.trf.xlu0
        %v2785 = vpop.trf.xlu0
        %v2786 = vpop.trf.xlu0
        %v2787 = vpop.trf.xlu0
        %v2788 = vpop.trf.xlu0
        %v2789 = vpop.trf.xlu0
        %v2790 = vpop.trf.xlu0
        %v2791 = vpop.trf.xlu0
        %v2792 = vpop.trf.xlu0
        %v2793 = vpop.trf.xlu0
        %v2794 = vpop.trf.xlu0
        %v2795 = vpop.trf.xlu0
        %v2796 = vpop.trf.xlu0
        %v2797 = vpop.trf.xlu0
        %v2798 = vpop.trf.xlu0
        %v2799 = vpop.trf.xlu0
        %v2803 = vunpack.c.l.s4 1983009808
        %v2804 = vunpack.c.0.s8 %v2803
        %v2805 = vlaneseq
        %v2806 = vshrl.u32 %v2805, 7
        %v2807 = vsub.s32 %v2804, %v2806
        %v2808 = vrot.slane %v2752, %v2807
        %v2810 = vunpack.c.l.s4 1983009808
        %v2811 = vunpack.c.0.s8 %v2810
        %v2812 = vlaneseq
        %v2813 = vshrl.u32 %v2812, 7
        %v2814 = vsub.s32 %v2811, %v2813
        %v2815 = vrot.slane %v2784, %v2814
        %2816 = vrot.lane.b32.xlu0 %v2808, 64
        %v2817 = vpop.permute.xlu0 %2816
        %2818 = vrot.lane.b32.xlu0 %v2815, 64
        %v2819 = vpop.permute.xlu0 %2818
        %vm2822 = vcmask 1041920
        %2823 = vst.msk [vmem:[%s152] sm:$0x3] %vm2822, %v2817
        %2824 = vst.msk [vmem:[%s152 + $0x4] sm:$0x3] %vm2822, %v2819
        %s2825 = scalar_lea.vmem [#allocation2], 64
        %v2826 = vld [vmem:[%s2825] sm:$0x3]
        %v2827 = vld [vmem:[%s2825 + $0x2] sm:$0x3]
        %v2828 = vld [vmem:[%s2825 + $0x4] sm:$0x3]
        %v2829 = vld [vmem:[%s2825 + $0x6] sm:$0x3]
        %v2830 = vld [vmem:[%s2825 + $0x8] sm:$0x3]
        %v2831 = vld [vmem:[%s2825 + $0xa] sm:$0x3]
        %v2832 = vld [vmem:[%s2825 + $0xc] sm:$0x3]
        %v2833 = vld [vmem:[%s2825 + $0xe] sm:$0x3]
        %v2834 = vld [vmem:[%s2825 + $0x10] sm:$0x3]
        %v2835 = vld [vmem:[%s2825 + $0x12] sm:$0x3]
        %v2836 = vld [vmem:[%s2825 + $0x14] sm:$0x3]
        %v2837 = vld [vmem:[%s2825 + $0x16] sm:$0x3]
        %v2838 = vld [vmem:[%s2825 + $0x18] sm:$0x3]
        %v2839 = vld [vmem:[%s2825 + $0x1a] sm:$0x3]
        %v2840 = vld [vmem:[%s2825 + $0x1c] sm:$0x3]
        %v2841 = vld [vmem:[%s2825 + $0x1e] sm:$0x3]
        %2842 = vxpose.xlu0.b32.start [1/16] %v2826, 128
        %2843 = vxpose.xlu0.b32.cont [2/16] 0.0, 128
        %2844 = vxpose.xlu0.b32.cont [3/16] 0.0, 128
        %2845 = vxpose.xlu0.b32.cont [4/16] 0.0, 128
        %2846 = vxpose.xlu0.b32.cont [5/16] 0.0, 128
        %2847 = vxpose.xlu0.b32.cont [6/16] 0.0, 128
        %2848 = vxpose.xlu0.b32.cont [7/16] 0.0, 128
        %2849 = vxpose.xlu0.b32.cont [8/16] 0.0, 128
        %2850 = vxpose.xlu0.b32.cont [9/16] 0.0, 128
        %2851 = vxpose.xlu0.b32.cont [10/16] 0.0, 128
        %2852 = vxpose.xlu0.b32.cont [11/16] 0.0, 128
        %2853 = vxpose.xlu0.b32.cont [12/16] 0.0, 128
        %2854 = vxpose.xlu0.b32.cont [13/16] 0.0, 128
        %2855 = vxpose.xlu0.b32.cont [14/16] 0.0, 128
        %2856 = vxpose.xlu0.b32.cont [15/16] 0.0, 128
        %2857 = vxpose.xlu0.b32.end [16/16] 0.0, 128
        %v2858 = vpop.trf.xlu0
        %v2859 = vpop.trf.xlu0
        %v2860 = vpop.trf.xlu0
        %v2861 = vpop.trf.xlu0
        %v2862 = vpop.trf.xlu0
        %v2863 = vpop.trf.xlu0
        %v2864 = vpop.trf.xlu0
        %v2865 = vpop.trf.xlu0
        %v2866 = vpop.trf.xlu0
        %v2867 = vpop.trf.xlu0
        %v2868 = vpop.trf.xlu0
        %v2869 = vpop.trf.xlu0
        %v2870 = vpop.trf.xlu0
        %v2871 = vpop.trf.xlu0
        %v2872 = vpop.trf.xlu0
        %v2873 = vpop.trf.xlu0
        %2874 = vxpose.xlu0.b32.start [1/16] %v2827, 128
        %2875 = vxpose.xlu0.b32.cont [2/16] 0.0, 128
        %2876 = vxpose.xlu0.b32.cont [3/16] 0.0, 128
        %2877 = vxpose.xlu0.b32.cont [4/16] 0.0, 128
        %2878 = vxpose.xlu0.b32.cont [5/16] 0.0, 128
        %2879 = vxpose.xlu0.b32.cont [6/16] 0.0, 128
        %2880 = vxpose.xlu0.b32.cont [7/16] 0.0, 128
        %2881 = vxpose.xlu0.b32.cont [8/16] 0.0, 128
        %2882 = vxpose.xlu0.b32.cont [9/16] 0.0, 128
        %2883 = vxpose.xlu0.b32.cont [10/16] 0.0, 128
        %2884 = vxpose.xlu0.b32.cont [11/16] 0.0, 128
        %2885 = vxpose.xlu0.b32.cont [12/16] 0.0, 128
        %2886 = vxpose.xlu0.b32.cont [13/16] 0.0, 128
        %2887 = vxpose.xlu0.b32.cont [14/16] 0.0, 128
        %2888 = vxpose.xlu0.b32.cont [15/16] 0.0, 128
        %2889 = vxpose.xlu0.b32.end [16/16] 0.0, 128
        %v2890 = vpop.trf.xlu0
        %v2891 = vpop.trf.xlu0
        %v2892 = vpop.trf.xlu0
        %v2893 = vpop.trf.xlu0
        %v2894 = vpop.trf.xlu0
        %v2895 = vpop.trf.xlu0
        %v2896 = vpop.trf.xlu0
        %v2897 = vpop.trf.xlu0
        %v2898 = vpop.trf.xlu0
        %v2899 = vpop.trf.xlu0
        %v2900 = vpop.trf.xlu0
        %v2901 = vpop.trf.xlu0
        %v2902 = vpop.trf.xlu0
        %v2903 = vpop.trf.xlu0
        %v2904 = vpop.trf.xlu0
        %v2905 = vpop.trf.xlu0
        %2906 = vxpose.xlu0.b32.start [1/16] %v2828, 128
        %2907 = vxpose.xlu0.b32.cont [2/16] 0.0, 128
        %2908 = vxpose.xlu0.b32.cont [3/16] 0.0, 128
        %2909 = vxpose.xlu0.b32.cont [4/16] 0.0, 128
        %2910 = vxpose.xlu0.b32.cont [5/16] 0.0, 128
        %2911 = vxpose.xlu0.b32.cont [6/16] 0.0, 128
        %2912 = vxpose.xlu0.b32.cont [7/16] 0.0, 128
        %2913 = vxpose.xlu0.b32.cont [8/16] 0.0, 128
        %2914 = vxpose.xlu0.b32.cont [9/16] 0.0, 128
        %2915 = vxpose.xlu0.b32.cont [10/16] 0.0, 128
        %2916 = vxpose.xlu0.b32.cont [11/16] 0.0, 128
        %2917 = vxpose.xlu0.b32.cont [12/16] 0.0, 128
        %2918 = vxpose.xlu0.b32.cont [13/16] 0.0, 128
        %2919 = vxpose.xlu0.b32.cont [14/16] 0.0, 128
        %2920 = vxpose.xlu0.b32.cont [15/16] 0.0, 128
        %2921 = vxpose.xlu0.b32.end [16/16] 0.0, 128
        %v2922 = vpop.trf.xlu0
        %v2923 = vpop.trf.xlu0
        %v2924 = vpop.trf.xlu0
        %v2925 = vpop.trf.xlu0
        %v2926 = vpop.trf.xlu0
        %v2927 = vpop.trf.xlu0
        %v2928 = vpop.trf.xlu0
        %v2929 = vpop.trf.xlu0
        %v2930 = vpop.trf.xlu0
        %v2931 = vpop.trf.xlu0
        %v2932 = vpop.trf.xlu0
        %v2933 = vpop.trf.xlu0
        %v2934 = vpop.trf.xlu0
        %v2935 = vpop.trf.xlu0
        %v2936 = vpop.trf.xlu0
        %v2937 = vpop.trf.xlu0
        %2938 = vxpose.xlu0.b32.start [1/16] %v2829, 128
        %2939 = vxpose.xlu0.b32.cont [2/16] 0.0, 128
        %2940 = vxpose.xlu0.b32.cont [3/16] 0.0, 128
        %2941 = vxpose.xlu0.b32.cont [4/16] 0.0, 128
        %2942 = vxpose.xlu0.b32.cont [5/16] 0.0, 128
        %2943 = vxpose.xlu0.b32.cont [6/16] 0.0, 128
        %2944 = vxpose.xlu0.b32.cont [7/16] 0.0, 128
        %2945 = vxpose.xlu0.b32.cont [8/16] 0.0, 128
        %2946 = vxpose.xlu0.b32.cont [9/16] 0.0, 128
        %2947 = vxpose.xlu0.b32.cont [10/16] 0.0, 128
        %2948 = vxpose.xlu0.b32.cont [11/16] 0.0, 128
        %2949 = vxpose.xlu0.b32.cont [12/16] 0.0, 128
        %2950 = vxpose.xlu0.b32.cont [13/16] 0.0, 128
        %2951 = vxpose.xlu0.b32.cont [14/16] 0.0, 128
        %2952 = vxpose.xlu0.b32.cont [15/16] 0.0, 128
        %2953 = vxpose.xlu0.b32.end [16/16] 0.0, 128
        %v2954 = vpop.trf.xlu0
        %v2955 = vpop.trf.xlu0
        %v2956 = vpop.trf.xlu0
        %v2957 = vpop.trf.xlu0
        %v2958 = vpop.trf.xlu0
        %v2959 = vpop.trf.xlu0
        %v2960 = vpop.trf.xlu0
        %v2961 = vpop.trf.xlu0
        %v2962 = vpop.trf.xlu0
        %v2963 = vpop.trf.xlu0
        %v2964 = vpop.trf.xlu0
        %v2965 = vpop.trf.xlu0
        %v2966 = vpop.trf.xlu0
        %v2967 = vpop.trf.xlu0
        %v2968 = vpop.trf.xlu0
        %v2969 = vpop.trf.xlu0
        %2970 = vxpose.xlu0.b32.start [1/16] %v2830, 128
        %2971 = vxpose.xlu0.b32.cont [2/16] 0.0, 128
        %2972 = vxpose.xlu0.b32.cont [3/16] 0.0, 128
        %2973 = vxpose.xlu0.b32.cont [4/16] 0.0, 128
        %2974 = vxpose.xlu0.b32.cont [5/16] 0.0, 128
        %2975 = vxpose.xlu0.b32.cont [6/16] 0.0, 128
        %2976 = vxpose.xlu0.b32.cont [7/16] 0.0, 128
        %2977 = vxpose.xlu0.b32.cont [8/16] 0.0, 128
        %2978 = vxpose.xlu0.b32.cont [9/16] 0.0, 128
        %2979 = vxpose.xlu0.b32.cont [10/16] 0.0, 128
        %2980 = vxpose.xlu0.b32.cont [11/16] 0.0, 128
        %2981 = vxpose.xlu0.b32.cont [12/16] 0.0, 128
        %2982 = vxpose.xlu0.b32.cont [13/16] 0.0, 128
        %2983 = vxpose.xlu0.b32.cont [14/16] 0.0, 128
        %2984 = vxpose.xlu0.b32.cont [15/16] 0.0, 128
        %2985 = vxpose.xlu0.b32.end [16/16] 0.0, 128
        %v2986 = vpop.trf.xlu0
        %v2987 = vpop.trf.xlu0
        %v2988 = vpop.trf.xlu0
        %v2989 = vpop.trf.xlu0
        %v2990 = vpop.trf.xlu0
        %v2991 = vpop.trf.xlu0
        %v2992 = vpop.trf.xlu0
        %v2993 = vpop.trf.xlu0
        %v2994 = vpop.trf.xlu0
        %v2995 = vpop.trf.xlu0
        %v2996 = vpop.trf.xlu0
        %v2997 = vpop.trf.xlu0
        %v2998 = vpop.trf.xlu0
        %v2999 = vpop.trf.xlu0
        %v3000 = vpop.trf.xlu0
        %v3001 = vpop.trf.xlu0
        %3002 = vxpose.xlu0.b32.start [1/16] %v2831, 128
        %3003 = vxpose.xlu0.b32.cont [2/16] 0.0, 128
        %3004 = vxpose.xlu0.b32.cont [3/16] 0.0, 128
        %3005 = vxpose.xlu0.b32.cont [4/16] 0.0, 128
        %3006 = vxpose.xlu0.b32.cont [5/16] 0.0, 128
        %3007 = vxpose.xlu0.b32.cont [6/16] 0.0, 128
        %3008 = vxpose.xlu0.b32.cont [7/16] 0.0, 128
        %3009 = vxpose.xlu0.b32.cont [8/16] 0.0, 128
        %3010 = vxpose.xlu0.b32.cont [9/16] 0.0, 128
        %3011 = vxpose.xlu0.b32.cont [10/16] 0.0, 128
        %3012 = vxpose.xlu0.b32.cont [11/16] 0.0, 128
        %3013 = vxpose.xlu0.b32.cont [12/16] 0.0, 128
        %3014 = vxpose.xlu0.b32.cont [13/16] 0.0, 128
        %3015 = vxpose.xlu0.b32.cont [14/16] 0.0, 128
        %3016 = vxpose.xlu0.b32.cont [15/16] 0.0, 128
        %3017 = vxpose.xlu0.b32.end [16/16] 0.0, 128
        %v3018 = vpop.trf.xlu0
        %v3019 = vpop.trf.xlu0
        %v3020 = vpop.trf.xlu0
        %v3021 = vpop.trf.xlu0
        %v3022 = vpop.trf.xlu0
        %v3023 = vpop.trf.xlu0
        %v3024 = vpop.trf.xlu0
        %v3025 = vpop.trf.xlu0
        %v3026 = vpop.trf.xlu0
        %v3027 = vpop.trf.xlu0
        %v3028 = vpop.trf.xlu0
        %v3029 = vpop.trf.xlu0
        %v3030 = vpop.trf.xlu0
        %v3031 = vpop.trf.xlu0
        %v3032 = vpop.trf.xlu0
        %v3033 = vpop.trf.xlu0
        %3034 = vxpose.xlu0.b32.start [1/16] %v2832, 128
        %3035 = vxpose.xlu0.b32.cont [2/16] 0.0, 128
        %3036 = vxpose.xlu0.b32.cont [3/16] 0.0, 128
        %3037 = vxpose.xlu0.b32.cont [4/16] 0.0, 128
        %3038 = vxpose.xlu0.b32.cont [5/16] 0.0, 128
        %3039 = vxpose.xlu0.b32.cont [6/16] 0.0, 128
        %3040 = vxpose.xlu0.b32.cont [7/16] 0.0, 128
        %3041 = vxpose.xlu0.b32.cont [8/16] 0.0, 128
        %3042 = vxpose.xlu0.b32.cont [9/16] 0.0, 128
        %3043 = vxpose.xlu0.b32.cont [10/16] 0.0, 128
        %3044 = vxpose.xlu0.b32.cont [11/16] 0.0, 128
        %3045 = vxpose.xlu0.b32.cont [12/16] 0.0, 128
        %3046 = vxpose.xlu0.b32.cont [13/16] 0.0, 128
        %3047 = vxpose.xlu0.b32.cont [14/16] 0.0, 128
        %3048 = vxpose.xlu0.b32.cont [15/16] 0.0, 128
        %3049 = vxpose.xlu0.b32.end [16/16] 0.0, 128
        %v3050 = vpop.trf.xlu0
        %v3051 = vpop.trf.xlu0
        %v3052 = vpop.trf.xlu0
        %v3053 = vpop.trf.xlu0
        %v3054 = vpop.trf.xlu0
        %v3055 = vpop.trf.xlu0
        %v3056 = vpop.trf.xlu0
        %v3057 = vpop.trf.xlu0
        %v3058 = vpop.trf.xlu0
        %v3059 = vpop.trf.xlu0
        %v3060 = vpop.trf.xlu0
        %v3061 = vpop.trf.xlu0
        %v3062 = vpop.trf.xlu0
        %v3063 = vpop.trf.xlu0
        %v3064 = vpop.trf.xlu0
        %v3065 = vpop.trf.xlu0
        %3066 = vxpose.xlu0.b32.start [1/16] %v2833, 128
        %3067 = vxpose.xlu0.b32.cont [2/16] 0.0, 128
        %3068 = vxpose.xlu0.b32.cont [3/16] 0.0, 128
        %3069 = vxpose.xlu0.b32.cont [4/16] 0.0, 128
        %3070 = vxpose.xlu0.b32.cont [5/16] 0.0, 128
        %3071 = vxpose.xlu0.b32.cont [6/16] 0.0, 128
        %3072 = vxpose.xlu0.b32.cont [7/16] 0.0, 128
        %3073 = vxpose.xlu0.b32.cont [8/16] 0.0, 128
        %3074 = vxpose.xlu0.b32.cont [9/16] 0.0, 128
        %3075 = vxpose.xlu0.b32.cont [10/16] 0.0, 128
        %3076 = vxpose.xlu0.b32.cont [11/16] 0.0, 128
        %3077 = vxpose.xlu0.b32.cont [12/16] 0.0, 128
        %3078 = vxpose.xlu0.b32.cont [13/16] 0.0, 128
        %3079 = vxpose.xlu0.b32.cont [14/16] 0.0, 128
        %3080 = vxpose.xlu0.b32.cont [15/16] 0.0, 128
        %3081 = vxpose.xlu0.b32.end [16/16] 0.0, 128
        %v3082 = vpop.trf.xlu0
        %v3083 = vpop.trf.xlu0
        %v3084 = vpop.trf.xlu0
        %v3085 = vpop.trf.xlu0
        %v3086 = vpop.trf.xlu0
        %v3087 = vpop.trf.xlu0
        %v3088 = vpop.trf.xlu0
        %v3089 = vpop.trf.xlu0
        %v3090 = vpop.trf.xlu0
        %v3091 = vpop.trf.xlu0
        %v3092 = vpop.trf.xlu0
        %v3093 = vpop.trf.xlu0
        %v3094 = vpop.trf.xlu0
        %v3095 = vpop.trf.xlu0
        %v3096 = vpop.trf.xlu0
        %v3097 = vpop.trf.xlu0
        %3098 = vxpose.xlu0.b32.start [1/16] %v2834, 128
        %3099 = vxpose.xlu0.b32.cont [2/16] 0.0, 128
        %3100 = vxpose.xlu0.b32.cont [3/16] 0.0, 128
        %3101 = vxpose.xlu0.b32.cont [4/16] 0.0, 128
        %3102 = vxpose.xlu0.b32.cont [5/16] 0.0, 128
        %3103 = vxpose.xlu0.b32.cont [6/16] 0.0, 128
        %3104 = vxpose.xlu0.b32.cont [7/16] 0.0, 128
        %3105 = vxpose.xlu0.b32.cont [8/16] 0.0, 128
        %3106 = vxpose.xlu0.b32.cont [9/16] 0.0, 128
        %3107 = vxpose.xlu0.b32.cont [10/16] 0.0, 128
        %3108 = vxpose.xlu0.b32.cont [11/16] 0.0, 128
        %3109 = vxpose.xlu0.b32.cont [12/16] 0.0, 128
        %3110 = vxpose.xlu0.b32.cont [13/16] 0.0, 128
        %3111 = vxpose.xlu0.b32.cont [14/16] 0.0, 128
        %3112 = vxpose.xlu0.b32.cont [15/16] 0.0, 128
        %3113 = vxpose.xlu0.b32.end [16/16] 0.0, 128
        %v3114 = vpop.trf.xlu0
        %v3115 = vpop.trf.xlu0
        %v3116 = vpop.trf.xlu0
        %v3117 = vpop.trf.xlu0
        %v3118 = vpop.trf.xlu0
        %v3119 = vpop.trf.xlu0
        %v3120 = vpop.trf.xlu0
        %v3121 = vpop.trf.xlu0
        %v3122 = vpop.trf.xlu0
        %v3123 = vpop.trf.xlu0
        %v3124 = vpop.trf.xlu0
        %v3125 = vpop.trf.xlu0
        %v3126 = vpop.trf.xlu0
        %v3127 = vpop.trf.xlu0
        %v3128 = vpop.trf.xlu0
        %v3129 = vpop.trf.xlu0
        %3130 = vxpose.xlu0.b32.start [1/16] %v2835, 128
        %3131 = vxpose.xlu0.b32.cont [2/16] 0.0, 128
        %3132 = vxpose.xlu0.b32.cont [3/16] 0.0, 128
        %3133 = vxpose.xlu0.b32.cont [4/16] 0.0, 128
        %3134 = vxpose.xlu0.b32.cont [5/16] 0.0, 128
        %3135 = vxpose.xlu0.b32.cont [6/16] 0.0, 128
        %3136 = vxpose.xlu0.b32.cont [7/16] 0.0, 128
        %3137 = vxpose.xlu0.b32.cont [8/16] 0.0, 128
        %3138 = vxpose.xlu0.b32.cont [9/16] 0.0, 128
        %3139 = vxpose.xlu0.b32.cont [10/16] 0.0, 128
        %3140 = vxpose.xlu0.b32.cont [11/16] 0.0, 128
        %3141 = vxpose.xlu0.b32.cont [12/16] 0.0, 128
        %3142 = vxpose.xlu0.b32.cont [13/16] 0.0, 128
        %3143 = vxpose.xlu0.b32.cont [14/16] 0.0, 128
        %3144 = vxpose.xlu0.b32.cont [15/16] 0.0, 128
        %3145 = vxpose.xlu0.b32.end [16/16] 0.0, 128
        %v3146 = vpop.trf.xlu0
        %v3147 = vpop.trf.xlu0
        %v3148 = vpop.trf.xlu0
        %v3149 = vpop.trf.xlu0
        %v3150 = vpop.trf.xlu0
        %v3151 = vpop.trf.xlu0
        %v3152 = vpop.trf.xlu0
        %v3153 = vpop.trf.xlu0
        %v3154 = vpop.trf.xlu0
        %v3155 = vpop.trf.xlu0
        %v3156 = vpop.trf.xlu0
        %v3157 = vpop.trf.xlu0
        %v3158 = vpop.trf.xlu0
        %v3159 = vpop.trf.xlu0
        %v3160 = vpop.trf.xlu0
        %v3161 = vpop.trf.xlu0
        %3162 = vxpose.xlu0.b32.start [1/16] %v2836, 128
        %3163 = vxpose.xlu0.b32.cont [2/16] 0.0, 128
        %3164 = vxpose.xlu0.b32.cont [3/16] 0.0, 128
        %3165 = vxpose.xlu0.b32.cont [4/16] 0.0, 128
        %3166 = vxpose.xlu0.b32.cont [5/16] 0.0, 128
        %3167 = vxpose.xlu0.b32.cont [6/16] 0.0, 128
        %3168 = vxpose.xlu0.b32.cont [7/16] 0.0, 128
        %3169 = vxpose.xlu0.b32.cont [8/16] 0.0, 128
        %3170 = vxpose.xlu0.b32.cont [9/16] 0.0, 128
        %3171 = vxpose.xlu0.b32.cont [10/16] 0.0, 128
        %3172 = vxpose.xlu0.b32.cont [11/16] 0.0, 128
        %3173 = vxpose.xlu0.b32.cont [12/16] 0.0, 128
        %3174 = vxpose.xlu0.b32.cont [13/16] 0.0, 128
        %3175 = vxpose.xlu0.b32.cont [14/16] 0.0, 128
        %3176 = vxpose.xlu0.b32.cont [15/16] 0.0, 128
        %3177 = vxpose.xlu0.b32.end [16/16] 0.0, 128
        %v3178 = vpop.trf.xlu0
        %v3179 = vpop.trf.xlu0
        %v3180 = vpop.trf.xlu0
        %v3181 = vpop.trf.xlu0
        %v3182 = vpop.trf.xlu0
        %v3183 = vpop.trf.xlu0
        %v3184 = vpop.trf.xlu0
        %v3185 = vpop.trf.xlu0
        %v3186 = vpop.trf.xlu0
        %v3187 = vpop.trf.xlu0
        %v3188 = vpop.trf.xlu0
        %v3189 = vpop.trf.xlu0
        %v3190 = vpop.trf.xlu0
        %v3191 = vpop.trf.xlu0
        %v3192 = vpop.trf.xlu0
        %v3193 = vpop.trf.xlu0
        %3194 = vxpose.xlu0.b32.start [1/16] %v2837, 128
        %3195 = vxpose.xlu0.b32.cont [2/16] 0.0, 128
        %3196 = vxpose.xlu0.b32.cont [3/16] 0.0, 128
        %3197 = vxpose.xlu0.b32.cont [4/16] 0.0, 128
        %3198 = vxpose.xlu0.b32.cont [5/16] 0.0, 128
        %3199 = vxpose.xlu0.b32.cont [6/16] 0.0, 128
        %3200 = vxpose.xlu0.b32.cont [7/16] 0.0, 128
        %3201 = vxpose.xlu0.b32.cont [8/16] 0.0, 128
        %3202 = vxpose.xlu0.b32.cont [9/16] 0.0, 128
        %3203 = vxpose.xlu0.b32.cont [10/16] 0.0, 128
        %3204 = vxpose.xlu0.b32.cont [11/16] 0.0, 128
        %3205 = vxpose.xlu0.b32.cont [12/16] 0.0, 128
        %3206 = vxpose.xlu0.b32.cont [13/16] 0.0, 128
        %3207 = vxpose.xlu0.b32.cont [14/16] 0.0, 128
        %3208 = vxpose.xlu0.b32.cont [15/16] 0.0, 128
        %3209 = vxpose.xlu0.b32.end [16/16] 0.0, 128
        %v3210 = vpop.trf.xlu0
        %v3211 = vpop.trf.xlu0
        %v3212 = vpop.trf.xlu0
        %v3213 = vpop.trf.xlu0
        %v3214 = vpop.trf.xlu0
        %v3215 = vpop.trf.xlu0
        %v3216 = vpop.trf.xlu0
        %v3217 = vpop.trf.xlu0
        %v3218 = vpop.trf.xlu0
        %v3219 = vpop.trf.xlu0
        %v3220 = vpop.trf.xlu0
        %v3221 = vpop.trf.xlu0
        %v3222 = vpop.trf.xlu0
        %v3223 = vpop.trf.xlu0
        %v3224 = vpop.trf.xlu0
        %v3225 = vpop.trf.xlu0
        %3226 = vxpose.xlu0.b32.start [1/16] %v2838, 128
        %3227 = vxpose.xlu0.b32.cont [2/16] 0.0, 128
        %3228 = vxpose.xlu0.b32.cont [3/16] 0.0, 128
        %3229 = vxpose.xlu0.b32.cont [4/16] 0.0, 128
        %3230 = vxpose.xlu0.b32.cont [5/16] 0.0, 128
        %3231 = vxpose.xlu0.b32.cont [6/16] 0.0, 128
        %3232 = vxpose.xlu0.b32.cont [7/16] 0.0, 128
        %3233 = vxpose.xlu0.b32.cont [8/16] 0.0, 128
        %3234 = vxpose.xlu0.b32.cont [9/16] 0.0, 128
        %3235 = vxpose.xlu0.b32.cont [10/16] 0.0, 128
        %3236 = vxpose.xlu0.b32.cont [11/16] 0.0, 128
        %3237 = vxpose.xlu0.b32.cont [12/16] 0.0, 128
        %3238 = vxpose.xlu0.b32.cont [13/16] 0.0, 128
        %3239 = vxpose.xlu0.b32.cont [14/16] 0.0, 128
        %3240 = vxpose.xlu0.b32.cont [15/16] 0.0, 128
        %3241 = vxpose.xlu0.b32.end [16/16] 0.0, 128
        %v3242 = vpop.trf.xlu0
        %v3243 = vpop.trf.xlu0
        %v3244 = vpop.trf.xlu0
        %v3245 = vpop.trf.xlu0
        %v3246 = vpop.trf.xlu0
        %v3247 = vpop.trf.xlu0
        %v3248 = vpop.trf.xlu0
        %v3249 = vpop.trf.xlu0
        %v3250 = vpop.trf.xlu0
        %v3251 = vpop.trf.xlu0
        %v3252 = vpop.trf.xlu0
        %v3253 = vpop.trf.xlu0
        %v3254 = vpop.trf.xlu0
        %v3255 = vpop.trf.xlu0
        %v3256 = vpop.trf.xlu0
        %v3257 = vpop.trf.xlu0
        %3258 = vxpose.xlu0.b32.start [1/16] %v2839, 128
        %3259 = vxpose.xlu0.b32.cont [2/16] 0.0, 128
        %3260 = vxpose.xlu0.b32.cont [3/16] 0.0, 128
        %3261 = vxpose.xlu0.b32.cont [4/16] 0.0, 128
        %3262 = vxpose.xlu0.b32.cont [5/16] 0.0, 128
        %3263 = vxpose.xlu0.b32.cont [6/16] 0.0, 128
        %3264 = vxpose.xlu0.b32.cont [7/16] 0.0, 128
        %3265 = vxpose.xlu0.b32.cont [8/16] 0.0, 128
        %3266 = vxpose.xlu0.b32.cont [9/16] 0.0, 128
        %3267 = vxpose.xlu0.b32.cont [10/16] 0.0, 128
        %3268 = vxpose.xlu0.b32.cont [11/16] 0.0, 128
        %3269 = vxpose.xlu0.b32.cont [12/16] 0.0, 128
        %3270 = vxpose.xlu0.b32.cont [13/16] 0.0, 128
        %3271 = vxpose.xlu0.b32.cont [14/16] 0.0, 128
        %3272 = vxpose.xlu0.b32.cont [15/16] 0.0, 128
        %3273 = vxpose.xlu0.b32.end [16/16] 0.0, 128
        %v3274 = vpop.trf.xlu0
        %v3275 = vpop.trf.xlu0
        %v3276 = vpop.trf.xlu0
        %v3277 = vpop.trf.xlu0
        %v3278 = vpop.trf.xlu0
        %v3279 = vpop.trf.xlu0
        %v3280 = vpop.trf.xlu0
        %v3281 = vpop.trf.xlu0
        %v3282 = vpop.trf.xlu0
        %v3283 = vpop.trf.xlu0
        %v3284 = vpop.trf.xlu0
        %v3285 = vpop.trf.xlu0
        %v3286 = vpop.trf.xlu0
        %v3287 = vpop.trf.xlu0
        %v3288 = vpop.trf.xlu0
        %v3289 = vpop.trf.xlu0
        %3290 = vxpose.xlu0.b32.start [1/16] %v2840, 128
        %3291 = vxpose.xlu0.b32.cont [2/16] 0.0, 128
        %3292 = vxpose.xlu0.b32.cont [3/16] 0.0, 128
        %3293 = vxpose.xlu0.b32.cont [4/16] 0.0, 128
        %3294 = vxpose.xlu0.b32.cont [5/16] 0.0, 128
        %3295 = vxpose.xlu0.b32.cont [6/16] 0.0, 128
        %3296 = vxpose.xlu0.b32.cont [7/16] 0.0, 128
        %3297 = vxpose.xlu0.b32.cont [8/16] 0.0, 128
        %3298 = vxpose.xlu0.b32.cont [9/16] 0.0, 128
        %3299 = vxpose.xlu0.b32.cont [10/16] 0.0, 128
        %3300 = vxpose.xlu0.b32.cont [11/16] 0.0, 128
        %3301 = vxpose.xlu0.b32.cont [12/16] 0.0, 128
        %3302 = vxpose.xlu0.b32.cont [13/16] 0.0, 128
        %3303 = vxpose.xlu0.b32.cont [14/16] 0.0, 128
        %3304 = vxpose.xlu0.b32.cont [15/16] 0.0, 128
        %3305 = vxpose.xlu0.b32.end [16/16] 0.0, 128
        %v3306 = vpop.trf.xlu0
        %v3307 = vpop.trf.xlu0
        %v3308 = vpop.trf.xlu0
        %v3309 = vpop.trf.xlu0
        %v3310 = vpop.trf.xlu0
        %v3311 = vpop.trf.xlu0
        %v3312 = vpop.trf.xlu0
        %v3313 = vpop.trf.xlu0
        %v3314 = vpop.trf.xlu0
        %v3315 = vpop.trf.xlu0
        %v3316 = vpop.trf.xlu0
        %v3317 = vpop.trf.xlu0
        %v3318 = vpop.trf.xlu0
        %v3319 = vpop.trf.xlu0
        %v3320 = vpop.trf.xlu0
        %v3321 = vpop.trf.xlu0
        %3322 = vxpose.xlu0.b32.start [1/16] %v2841, 128
        %3323 = vxpose.xlu0.b32.cont [2/16] 0.0, 128
        %3324 = vxpose.xlu0.b32.cont [3/16] 0.0, 128
        %3325 = vxpose.xlu0.b32.cont [4/16] 0.0, 128
        %3326 = vxpose.xlu0.b32.cont [5/16] 0.0, 128
        %3327 = vxpose.xlu0.b32.cont [6/16] 0.0, 128
        %3328 = vxpose.xlu0.b32.cont [7/16] 0.0, 128
        %3329 = vxpose.xlu0.b32.cont [8/16] 0.0, 128
        %3330 = vxpose.xlu0.b32.cont [9/16] 0.0, 128
        %3331 = vxpose.xlu0.b32.cont [10/16] 0.0, 128
        %3332 = vxpose.xlu0.b32.cont [11/16] 0.0, 128
        %3333 = vxpose.xlu0.b32.cont [12/16] 0.0, 128
        %3334 = vxpose.xlu0.b32.cont [13/16] 0.0, 128
        %3335 = vxpose.xlu0.b32.cont [14/16] 0.0, 128
        %3336 = vxpose.xlu0.b32.cont [15/16] 0.0, 128
        %3337 = vxpose.xlu0.b32.end [16/16] 0.0, 128
        %v3338 = vpop.trf.xlu0
        %v3339 = vpop.trf.xlu0
        %v3340 = vpop.trf.xlu0
        %v3341 = vpop.trf.xlu0
        %v3342 = vpop.trf.xlu0
        %v3343 = vpop.trf.xlu0
        %v3344 = vpop.trf.xlu0
        %v3345 = vpop.trf.xlu0
        %v3346 = vpop.trf.xlu0
        %v3347 = vpop.trf.xlu0
        %v3348 = vpop.trf.xlu0
        %v3349 = vpop.trf.xlu0
        %v3350 = vpop.trf.xlu0
        %v3351 = vpop.trf.xlu0
        %v3352 = vpop.trf.xlu0
        %v3353 = vpop.trf.xlu0
        %3354 = vxpose.xlu0.b32.start [1/16] %v2858, 128
        %3355 = vxpose.xlu0.b32.cont [2/16] %v2890, 128
        %3356 = vxpose.xlu0.b32.cont [3/16] %v2922, 128
        %3357 = vxpose.xlu0.b32.cont [4/16] %v2954, 128
        %3358 = vxpose.xlu0.b32.cont [5/16] %v2986, 128
        %3359 = vxpose.xlu0.b32.cont [6/16] %v3018, 128
        %3360 = vxpose.xlu0.b32.cont [7/16] %v3050, 128
        %3361 = vxpose.xlu0.b32.cont [8/16] %v3082, 128
        %3362 = vxpose.xlu0.b32.cont [9/16] 0.0, 128
        %3363 = vxpose.xlu0.b32.cont [10/16] 0.0, 128
        %3364 = vxpose.xlu0.b32.cont [11/16] 0.0, 128
        %3365 = vxpose.xlu0.b32.cont [12/16] 0.0, 128
        %3366 = vxpose.xlu0.b32.cont [13/16] 0.0, 128
        %3367 = vxpose.xlu0.b32.cont [14/16] 0.0, 128
        %3368 = vxpose.xlu0.b32.cont [15/16] 0.0, 128
        %3369 = vxpose.xlu0.b32.end [16/16] 0.0, 128
        %v3370 = vpop.trf.xlu0
        %v3371 = vpop.trf.xlu0
        %v3372 = vpop.trf.xlu0
        %v3373 = vpop.trf.xlu0
        %v3374 = vpop.trf.xlu0
        %v3375 = vpop.trf.xlu0
        %v3376 = vpop.trf.xlu0
        %v3377 = vpop.trf.xlu0
        %v3378 = vpop.trf.xlu0
        %v3379 = vpop.trf.xlu0
        %v3380 = vpop.trf.xlu0
        %v3381 = vpop.trf.xlu0
        %v3382 = vpop.trf.xlu0
        %v3383 = vpop.trf.xlu0
        %v3384 = vpop.trf.xlu0
        %v3385 = vpop.trf.xlu0
        %3386 = vxpose.xlu0.b32.start [1/16] %v3114, 128
        %3387 = vxpose.xlu0.b32.cont [2/16] %v3146, 128
        %3388 = vxpose.xlu0.b32.cont [3/16] %v3178, 128
        %3389 = vxpose.xlu0.b32.cont [4/16] %v3210, 128
        %3390 = vxpose.xlu0.b32.cont [5/16] %v3242, 128
        %3391 = vxpose.xlu0.b32.cont [6/16] %v3274, 128
        %3392 = vxpose.xlu0.b32.cont [7/16] %v3306, 128
        %3393 = vxpose.xlu0.b32.cont [8/16] %v3338, 128
        %3394 = vxpose.xlu0.b32.cont [9/16] 0.0, 128
        %3395 = vxpose.xlu0.b32.cont [10/16] 0.0, 128
        %3396 = vxpose.xlu0.b32.cont [11/16] 0.0, 128
        %3397 = vxpose.xlu0.b32.cont [12/16] 0.0, 128
        %3398 = vxpose.xlu0.b32.cont [13/16] 0.0, 128
        %3399 = vxpose.xlu0.b32.cont [14/16] 0.0, 128
        %3400 = vxpose.xlu0.b32.cont [15/16] 0.0, 128
        %3401 = vxpose.xlu0.b32.end [16/16] 0.0, 128
        %v3402 = vpop.trf.xlu0
        %v3403 = vpop.trf.xlu0
        %v3404 = vpop.trf.xlu0
        %v3405 = vpop.trf.xlu0
        %v3406 = vpop.trf.xlu0
        %v3407 = vpop.trf.xlu0
        %v3408 = vpop.trf.xlu0
        %v3409 = vpop.trf.xlu0
        %v3410 = vpop.trf.xlu0
        %v3411 = vpop.trf.xlu0
        %v3412 = vpop.trf.xlu0
        %v3413 = vpop.trf.xlu0
        %v3414 = vpop.trf.xlu0
        %v3415 = vpop.trf.xlu0
        %v3416 = vpop.trf.xlu0
        %v3417 = vpop.trf.xlu0
        %3418 = vst.msk [vmem:[%s152 + $0x2] sm:$0x3] %vm2204, %v3370
        %3419 = vst.msk [vmem:[%s152 + $0x6] sm:$0x3] %vm2204, %v3402
        %s3420 = scalar_lea.vmem [#allocation2], 96
        %v3421 = vld [vmem:[%s3420] sm:$0x3]
        %v3422 = vld [vmem:[%s3420 + $0x2] sm:$0x3]
        %v3423 = vld [vmem:[%s3420 + $0x4] sm:$0x3]
        %v3424 = vld [vmem:[%s3420 + $0x6] sm:$0x3]
        %v3425 = vld [vmem:[%s3420 + $0x8] sm:$0x3]
        %v3426 = vld [vmem:[%s3420 + $0xa] sm:$0x3]
        %v3427 = vld [vmem:[%s3420 + $0xc] sm:$0x3]
        %v3428 = vld [vmem:[%s3420 + $0xe] sm:$0x3]
        %v3429 = vld [vmem:[%s3420 + $0x10] sm:$0x3]
        %v3430 = vld [vmem:[%s3420 + $0x12] sm:$0x3]
        %v3431 = vld [vmem:[%s3420 + $0x14] sm:$0x3]
        %v3432 = vld [vmem:[%s3420 + $0x16] sm:$0x3]
        %v3433 = vld [vmem:[%s3420 + $0x18] sm:$0x3]
        %v3434 = vld [vmem:[%s3420 + $0x1a] sm:$0x3]
        %v3435 = vld [vmem:[%s3420 + $0x1c] sm:$0x3]
        %v3436 = vld [vmem:[%s3420 + $0x1e] sm:$0x3]
        %3437 = vxpose.xlu0.b32.start [1/16] %v3421, 128
        %3438 = vxpose.xlu0.b32.cont [2/16] 0.0, 128
        %3439 = vxpose.xlu0.b32.cont [3/16] 0.0, 128
        %3440 = vxpose.xlu0.b32.cont [4/16] 0.0, 128
        %3441 = vxpose.xlu0.b32.cont [5/16] 0.0, 128
        %3442 = vxpose.xlu0.b32.cont [6/16] 0.0, 128
        %3443 = vxpose.xlu0.b32.cont [7/16] 0.0, 128
        %3444 = vxpose.xlu0.b32.cont [8/16] 0.0, 128
        %3445 = vxpose.xlu0.b32.cont [9/16] 0.0, 128
        %3446 = vxpose.xlu0.b32.cont [10/16] 0.0, 128
        %3447 = vxpose.xlu0.b32.cont [11/16] 0.0, 128
        %3448 = vxpose.xlu0.b32.cont [12/16] 0.0, 128
        %3449 = vxpose.xlu0.b32.cont [13/16] 0.0, 128
        %3450 = vxpose.xlu0.b32.cont [14/16] 0.0, 128
        %3451 = vxpose.xlu0.b32.cont [15/16] 0.0, 128
        %3452 = vxpose.xlu0.b32.end [16/16] 0.0, 128
        %v3453 = vpop.trf.xlu0
        %v3454 = vpop.trf.xlu0
        %v3455 = vpop.trf.xlu0
        %v3456 = vpop.trf.xlu0
        %v3457 = vpop.trf.xlu0
        %v3458 = vpop.trf.xlu0
        %v3459 = vpop.trf.xlu0
        %v3460 = vpop.trf.xlu0
        %v3461 = vpop.trf.xlu0
        %v3462 = vpop.trf.xlu0
        %v3463 = vpop.trf.xlu0
        %v3464 = vpop.trf.xlu0
        %v3465 = vpop.trf.xlu0
        %v3466 = vpop.trf.xlu0
        %v3467 = vpop.trf.xlu0
        %v3468 = vpop.trf.xlu0
        %3469 = vxpose.xlu0.b32.start [1/16] %v3422, 128
        %3470 = vxpose.xlu0.b32.cont [2/16] 0.0, 128
        %3471 = vxpose.xlu0.b32.cont [3/16] 0.0, 128
        %3472 = vxpose.xlu0.b32.cont [4/16] 0.0, 128
        %3473 = vxpose.xlu0.b32.cont [5/16] 0.0, 128
        %3474 = vxpose.xlu0.b32.cont [6/16] 0.0, 128
        %3475 = vxpose.xlu0.b32.cont [7/16] 0.0, 128
        %3476 = vxpose.xlu0.b32.cont [8/16] 0.0, 128
        %3477 = vxpose.xlu0.b32.cont [9/16] 0.0, 128
        %3478 = vxpose.xlu0.b32.cont [10/16] 0.0, 128
        %3479 = vxpose.xlu0.b32.cont [11/16] 0.0, 128
        %3480 = vxpose.xlu0.b32.cont [12/16] 0.0, 128
        %3481 = vxpose.xlu0.b32.cont [13/16] 0.0, 128
        %3482 = vxpose.xlu0.b32.cont [14/16] 0.0, 128
        %3483 = vxpose.xlu0.b32.cont [15/16] 0.0, 128
        %3484 = vxpose.xlu0.b32.end [16/16] 0.0, 128
        %v3485 = vpop.trf.xlu0
        %v3486 = vpop.trf.xlu0
        %v3487 = vpop.trf.xlu0
        %v3488 = vpop.trf.xlu0
        %v3489 = vpop.trf.xlu0
        %v3490 = vpop.trf.xlu0
        %v3491 = vpop.trf.xlu0
        %v3492 = vpop.trf.xlu0
        %v3493 = vpop.trf.xlu0
        %v3494 = vpop.trf.xlu0
        %v3495 = vpop.trf.xlu0
        %v3496 = vpop.trf.xlu0
        %v3497 = vpop.trf.xlu0
        %v3498 = vpop.trf.xlu0
        %v3499 = vpop.trf.xlu0
        %v3500 = vpop.trf.xlu0
        %3501 = vxpose.xlu0.b32.start [1/16] %v3423, 128
        %3502 = vxpose.xlu0.b32.cont [2/16] 0.0, 128
        %3503 = vxpose.xlu0.b32.cont [3/16] 0.0, 128
        %3504 = vxpose.xlu0.b32.cont [4/16] 0.0, 128
        %3505 = vxpose.xlu0.b32.cont [5/16] 0.0, 128
        %3506 = vxpose.xlu0.b32.cont [6/16] 0.0, 128
        %3507 = vxpose.xlu0.b32.cont [7/16] 0.0, 128
        %3508 = vxpose.xlu0.b32.cont [8/16] 0.0, 128
        %3509 = vxpose.xlu0.b32.cont [9/16] 0.0, 128
        %3510 = vxpose.xlu0.b32.cont [10/16] 0.0, 128
        %3511 = vxpose.xlu0.b32.cont [11/16] 0.0, 128
        %3512 = vxpose.xlu0.b32.cont [12/16] 0.0, 128
        %3513 = vxpose.xlu0.b32.cont [13/16] 0.0, 128
        %3514 = vxpose.xlu0.b32.cont [14/16] 0.0, 128
        %3515 = vxpose.xlu0.b32.cont [15/16] 0.0, 128
        %3516 = vxpose.xlu0.b32.end [16/16] 0.0, 128
        %v3517 = vpop.trf.xlu0
        %v3518 = vpop.trf.xlu0
        %v3519 = vpop.trf.xlu0
        %v3520 = vpop.trf.xlu0
        %v3521 = vpop.trf.xlu0
        %v3522 = vpop.trf.xlu0
        %v3523 = vpop.trf.xlu0
        %v3524 = vpop.trf.xlu0
        %v3525 = vpop.trf.xlu0
        %v3526 = vpop.trf.xlu0
        %v3527 = vpop.trf.xlu0
        %v3528 = vpop.trf.xlu0
        %v3529 = vpop.trf.xlu0
        %v3530 = vpop.trf.xlu0
        %v3531 = vpop.trf.xlu0
        %v3532 = vpop.trf.xlu0
        %3533 = vxpose.xlu0.b32.start [1/16] %v3424, 128
        %3534 = vxpose.xlu0.b32.cont [2/16] 0.0, 128
        %3535 = vxpose.xlu0.b32.cont [3/16] 0.0, 128
        %3536 = vxpose.xlu0.b32.cont [4/16] 0.0, 128
        %3537 = vxpose.xlu0.b32.cont [5/16] 0.0, 128
        %3538 = vxpose.xlu0.b32.cont [6/16] 0.0, 128
        %3539 = vxpose.xlu0.b32.cont [7/16] 0.0, 128
        %3540 = vxpose.xlu0.b32.cont [8/16] 0.0, 128
        %3541 = vxpose.xlu0.b32.cont [9/16] 0.0, 128
        %3542 = vxpose.xlu0.b32.cont [10/16] 0.0, 128
        %3543 = vxpose.xlu0.b32.cont [11/16] 0.0, 128
        %3544 = vxpose.xlu0.b32.cont [12/16] 0.0, 128
        %3545 = vxpose.xlu0.b32.cont [13/16] 0.0, 128
        %3546 = vxpose.xlu0.b32.cont [14/16] 0.0, 128
        %3547 = vxpose.xlu0.b32.cont [15/16] 0.0, 128
        %3548 = vxpose.xlu0.b32.end [16/16] 0.0, 128
        %v3549 = vpop.trf.xlu0
        %v3550 = vpop.trf.xlu0
        %v3551 = vpop.trf.xlu0
        %v3552 = vpop.trf.xlu0
        %v3553 = vpop.trf.xlu0
        %v3554 = vpop.trf.xlu0
        %v3555 = vpop.trf.xlu0
        %v3556 = vpop.trf.xlu0
        %v3557 = vpop.trf.xlu0
        %v3558 = vpop.trf.xlu0
        %v3559 = vpop.trf.xlu0
        %v3560 = vpop.trf.xlu0
        %v3561 = vpop.trf.xlu0
        %v3562 = vpop.trf.xlu0
        %v3563 = vpop.trf.xlu0
        %v3564 = vpop.trf.xlu0
        %3565 = vxpose.xlu0.b32.start [1/16] %v3425, 128
        %3566 = vxpose.xlu0.b32.cont [2/16] 0.0, 128
        %3567 = vxpose.xlu0.b32.cont [3/16] 0.0, 128
        %3568 = vxpose.xlu0.b32.cont [4/16] 0.0, 128
        %3569 = vxpose.xlu0.b32.cont [5/16] 0.0, 128
        %3570 = vxpose.xlu0.b32.cont [6/16] 0.0, 128
        %3571 = vxpose.xlu0.b32.cont [7/16] 0.0, 128
        %3572 = vxpose.xlu0.b32.cont [8/16] 0.0, 128
        %3573 = vxpose.xlu0.b32.cont [9/16] 0.0, 128
        %3574 = vxpose.xlu0.b32.cont [10/16] 0.0, 128
        %3575 = vxpose.xlu0.b32.cont [11/16] 0.0, 128
        %3576 = vxpose.xlu0.b32.cont [12/16] 0.0, 128
        %3577 = vxpose.xlu0.b32.cont [13/16] 0.0, 128
        %3578 = vxpose.xlu0.b32.cont [14/16] 0.0, 128
        %3579 = vxpose.xlu0.b32.cont [15/16] 0.0, 128
        %3580 = vxpose.xlu0.b32.end [16/16] 0.0, 128
        %v3581 = vpop.trf.xlu0
        %v3582 = vpop.trf.xlu0
        %v3583 = vpop.trf.xlu0
        %v3584 = vpop.trf.xlu0
        %v3585 = vpop.trf.xlu0
        %v3586 = vpop.trf.xlu0
        %v3587 = vpop.trf.xlu0
        %v3588 = vpop.trf.xlu0
        %v3589 = vpop.trf.xlu0
        %v3590 = vpop.trf.xlu0
        %v3591 = vpop.trf.xlu0
        %v3592 = vpop.trf.xlu0
        %v3593 = vpop.trf.xlu0
        %v3594 = vpop.trf.xlu0
        %v3595 = vpop.trf.xlu0
        %v3596 = vpop.trf.xlu0
        %3597 = vxpose.xlu0.b32.start [1/16] %v3426, 128
        %3598 = vxpose.xlu0.b32.cont [2/16] 0.0, 128
        %3599 = vxpose.xlu0.b32.cont [3/16] 0.0, 128
        %3600 = vxpose.xlu0.b32.cont [4/16] 0.0, 128
        %3601 = vxpose.xlu0.b32.cont [5/16] 0.0, 128
        %3602 = vxpose.xlu0.b32.cont [6/16] 0.0, 128
        %3603 = vxpose.xlu0.b32.cont [7/16] 0.0, 128
        %3604 = vxpose.xlu0.b32.cont [8/16] 0.0, 128
        %3605 = vxpose.xlu0.b32.cont [9/16] 0.0, 128
        %3606 = vxpose.xlu0.b32.cont [10/16] 0.0, 128
        %3607 = vxpose.xlu0.b32.cont [11/16] 0.0, 128
        %3608 = vxpose.xlu0.b32.cont [12/16] 0.0, 128
        %3609 = vxpose.xlu0.b32.cont [13/16] 0.0, 128
        %3610 = vxpose.xlu0.b32.cont [14/16] 0.0, 128
        %3611 = vxpose.xlu0.b32.cont [15/16] 0.0, 128
        %3612 = vxpose.xlu0.b32.end [16/16] 0.0, 128
        %v3613 = vpop.trf.xlu0
        %v3614 = vpop.trf.xlu0
        %v3615 = vpop.trf.xlu0
        %v3616 = vpop.trf.xlu0
        %v3617 = vpop.trf.xlu0
        %v3618 = vpop.trf.xlu0
        %v3619 = vpop.trf.xlu0
        %v3620 = vpop.trf.xlu0
        %v3621 = vpop.trf.xlu0
        %v3622 = vpop.trf.xlu0
        %v3623 = vpop.trf.xlu0
        %v3624 = vpop.trf.xlu0
        %v3625 = vpop.trf.xlu0
        %v3626 = vpop.trf.xlu0
        %v3627 = vpop.trf.xlu0
        %v3628 = vpop.trf.xlu0
        %3629 = vxpose.xlu0.b32.start [1/16] %v3427, 128
        %3630 = vxpose.xlu0.b32.cont [2/16] 0.0, 128
        %3631 = vxpose.xlu0.b32.cont [3/16] 0.0, 128
        %3632 = vxpose.xlu0.b32.cont [4/16] 0.0, 128
        %3633 = vxpose.xlu0.b32.cont [5/16] 0.0, 128
        %3634 = vxpose.xlu0.b32.cont [6/16] 0.0, 128
        %3635 = vxpose.xlu0.b32.cont [7/16] 0.0, 128
        %3636 = vxpose.xlu0.b32.cont [8/16] 0.0, 128
        %3637 = vxpose.xlu0.b32.cont [9/16] 0.0, 128
        %3638 = vxpose.xlu0.b32.cont [10/16] 0.0, 128
        %3639 = vxpose.xlu0.b32.cont [11/16] 0.0, 128
        %3640 = vxpose.xlu0.b32.cont [12/16] 0.0, 128
        %3641 = vxpose.xlu0.b32.cont [13/16] 0.0, 128
        %3642 = vxpose.xlu0.b32.cont [14/16] 0.0, 128
        %3643 = vxpose.xlu0.b32.cont [15/16] 0.0, 128
        %3644 = vxpose.xlu0.b32.end [16/16] 0.0, 128
        %v3645 = vpop.trf.xlu0
        %v3646 = vpop.trf.xlu0
        %v3647 = vpop.trf.xlu0
        %v3648 = vpop.trf.xlu0
        %v3649 = vpop.trf.xlu0
        %v3650 = vpop.trf.xlu0
        %v3651 = vpop.trf.xlu0
        %v3652 = vpop.trf.xlu0
        %v3653 = vpop.trf.xlu0
        %v3654 = vpop.trf.xlu0
        %v3655 = vpop.trf.xlu0
        %v3656 = vpop.trf.xlu0
        %v3657 = vpop.trf.xlu0
        %v3658 = vpop.trf.xlu0
        %v3659 = vpop.trf.xlu0
        %v3660 = vpop.trf.xlu0
        %3661 = vxpose.xlu0.b32.start [1/16] %v3428, 128
        %3662 = vxpose.xlu0.b32.cont [2/16] 0.0, 128
        %3663 = vxpose.xlu0.b32.cont [3/16] 0.0, 128
        %3664 = vxpose.xlu0.b32.cont [4/16] 0.0, 128
        %3665 = vxpose.xlu0.b32.cont [5/16] 0.0, 128
        %3666 = vxpose.xlu0.b32.cont [6/16] 0.0, 128
        %3667 = vxpose.xlu0.b32.cont [7/16] 0.0, 128
        %3668 = vxpose.xlu0.b32.cont [8/16] 0.0, 128
        %3669 = vxpose.xlu0.b32.cont [9/16] 0.0, 128
        %3670 = vxpose.xlu0.b32.cont [10/16] 0.0, 128
        %3671 = vxpose.xlu0.b32.cont [11/16] 0.0, 128
        %3672 = vxpose.xlu0.b32.cont [12/16] 0.0, 128
        %3673 = vxpose.xlu0.b32.cont [13/16] 0.0, 128
        %3674 = vxpose.xlu0.b32.cont [14/16] 0.0, 128
        %3675 = vxpose.xlu0.b32.cont [15/16] 0.0, 128
        %3676 = vxpose.xlu0.b32.end [16/16] 0.0, 128
        %v3677 = vpop.trf.xlu0
        %v3678 = vpop.trf.xlu0
        %v3679 = vpop.trf.xlu0
        %v3680 = vpop.trf.xlu0
        %v3681 = vpop.trf.xlu0
        %v3682 = vpop.trf.xlu0
        %v3683 = vpop.trf.xlu0
        %v3684 = vpop.trf.xlu0
        %v3685 = vpop.trf.xlu0
        %v3686 = vpop.trf.xlu0
        %v3687 = vpop.trf.xlu0
        %v3688 = vpop.trf.xlu0
        %v3689 = vpop.trf.xlu0
        %v3690 = vpop.trf.xlu0
        %v3691 = vpop.trf.xlu0
        %v3692 = vpop.trf.xlu0
        %3693 = vxpose.xlu0.b32.start [1/16] %v3429, 128
        %3694 = vxpose.xlu0.b32.cont [2/16] 0.0, 128
        %3695 = vxpose.xlu0.b32.cont [3/16] 0.0, 128
        %3696 = vxpose.xlu0.b32.cont [4/16] 0.0, 128
        %3697 = vxpose.xlu0.b32.cont [5/16] 0.0, 128
        %3698 = vxpose.xlu0.b32.cont [6/16] 0.0, 128
        %3699 = vxpose.xlu0.b32.cont [7/16] 0.0, 128
        %3700 = vxpose.xlu0.b32.cont [8/16] 0.0, 128
        %3701 = vxpose.xlu0.b32.cont [9/16] 0.0, 128
        %3702 = vxpose.xlu0.b32.cont [10/16] 0.0, 128
        %3703 = vxpose.xlu0.b32.cont [11/16] 0.0, 128
        %3704 = vxpose.xlu0.b32.cont [12/16] 0.0, 128
        %3705 = vxpose.xlu0.b32.cont [13/16] 0.0, 128
        %3706 = vxpose.xlu0.b32.cont [14/16] 0.0, 128
        %3707 = vxpose.xlu0.b32.cont [15/16] 0.0, 128
        %3708 = vxpose.xlu0.b32.end [16/16] 0.0, 128
        %v3709 = vpop.trf.xlu0
        %v3710 = vpop.trf.xlu0
        %v3711 = vpop.trf.xlu0
        %v3712 = vpop.trf.xlu0
        %v3713 = vpop.trf.xlu0
        %v3714 = vpop.trf.xlu0
        %v3715 = vpop.trf.xlu0
        %v3716 = vpop.trf.xlu0
        %v3717 = vpop.trf.xlu0
        %v3718 = vpop.trf.xlu0
        %v3719 = vpop.trf.xlu0
        %v3720 = vpop.trf.xlu0
        %v3721 = vpop.trf.xlu0
        %v3722 = vpop.trf.xlu0
        %v3723 = vpop.trf.xlu0
        %v3724 = vpop.trf.xlu0
        %3725 = vxpose.xlu0.b32.start [1/16] %v3430, 128
        %3726 = vxpose.xlu0.b32.cont [2/16] 0.0, 128
        %3727 = vxpose.xlu0.b32.cont [3/16] 0.0, 128
        %3728 = vxpose.xlu0.b32.cont [4/16] 0.0, 128
        %3729 = vxpose.xlu0.b32.cont [5/16] 0.0, 128
        %3730 = vxpose.xlu0.b32.cont [6/16] 0.0, 128
        %3731 = vxpose.xlu0.b32.cont [7/16] 0.0, 128
        %3732 = vxpose.xlu0.b32.cont [8/16] 0.0, 128
        %3733 = vxpose.xlu0.b32.cont [9/16] 0.0, 128
        %3734 = vxpose.xlu0.b32.cont [10/16] 0.0, 128
        %3735 = vxpose.xlu0.b32.cont [11/16] 0.0, 128
        %3736 = vxpose.xlu0.b32.cont [12/16] 0.0, 128
        %3737 = vxpose.xlu0.b32.cont [13/16] 0.0, 128
        %3738 = vxpose.xlu0.b32.cont [14/16] 0.0, 128
        %3739 = vxpose.xlu0.b32.cont [15/16] 0.0, 128
        %3740 = vxpose.xlu0.b32.end [16/16] 0.0, 128
        %v3741 = vpop.trf.xlu0
        %v3742 = vpop.trf.xlu0
        %v3743 = vpop.trf.xlu0
        %v3744 = vpop.trf.xlu0
        %v3745 = vpop.trf.xlu0
        %v3746 = vpop.trf.xlu0
        %v3747 = vpop.trf.xlu0
        %v3748 = vpop.trf.xlu0
        %v3749 = vpop.trf.xlu0
        %v3750 = vpop.trf.xlu0
        %v3751 = vpop.trf.xlu0
        %v3752 = vpop.trf.xlu0
        %v3753 = vpop.trf.xlu0
        %v3754 = vpop.trf.xlu0
        %v3755 = vpop.trf.xlu0
        %v3756 = vpop.trf.xlu0
        %3757 = vxpose.xlu0.b32.start [1/16] %v3431, 128
        %3758 = vxpose.xlu0.b32.cont [2/16] 0.0, 128
        %3759 = vxpose.xlu0.b32.cont [3/16] 0.0, 128
        %3760 = vxpose.xlu0.b32.cont [4/16] 0.0, 128
        %3761 = vxpose.xlu0.b32.cont [5/16] 0.0, 128
        %3762 = vxpose.xlu0.b32.cont [6/16] 0.0, 128
        %3763 = vxpose.xlu0.b32.cont [7/16] 0.0, 128
        %3764 = vxpose.xlu0.b32.cont [8/16] 0.0, 128
        %3765 = vxpose.xlu0.b32.cont [9/16] 0.0, 128
        %3766 = vxpose.xlu0.b32.cont [10/16] 0.0, 128
        %3767 = vxpose.xlu0.b32.cont [11/16] 0.0, 128
        %3768 = vxpose.xlu0.b32.cont [12/16] 0.0, 128
        %3769 = vxpose.xlu0.b32.cont [13/16] 0.0, 128
        %3770 = vxpose.xlu0.b32.cont [14/16] 0.0, 128
        %3771 = vxpose.xlu0.b32.cont [15/16] 0.0, 128
        %3772 = vxpose.xlu0.b32.end [16/16] 0.0, 128
        %v3773 = vpop.trf.xlu0
        %v3774 = vpop.trf.xlu0
        %v3775 = vpop.trf.xlu0
        %v3776 = vpop.trf.xlu0
        %v3777 = vpop.trf.xlu0
        %v3778 = vpop.trf.xlu0
        %v3779 = vpop.trf.xlu0
        %v3780 = vpop.trf.xlu0
        %v3781 = vpop.trf.xlu0
        %v3782 = vpop.trf.xlu0
        %v3783 = vpop.trf.xlu0
        %v3784 = vpop.trf.xlu0
        %v3785 = vpop.trf.xlu0
        %v3786 = vpop.trf.xlu0
        %v3787 = vpop.trf.xlu0
        %v3788 = vpop.trf.xlu0
        %3789 = vxpose.xlu0.b32.start [1/16] %v3432, 128
        %3790 = vxpose.xlu0.b32.cont [2/16] 0.0, 128
        %3791 = vxpose.xlu0.b32.cont [3/16] 0.0, 128
        %3792 = vxpose.xlu0.b32.cont [4/16] 0.0, 128
        %3793 = vxpose.xlu0.b32.cont [5/16] 0.0, 128
        %3794 = vxpose.xlu0.b32.cont [6/16] 0.0, 128
        %3795 = vxpose.xlu0.b32.cont [7/16] 0.0, 128
        %3796 = vxpose.xlu0.b32.cont [8/16] 0.0, 128
        %3797 = vxpose.xlu0.b32.cont [9/16] 0.0, 128
        %3798 = vxpose.xlu0.b32.cont [10/16] 0.0, 128
        %3799 = vxpose.xlu0.b32.cont [11/16] 0.0, 128
        %3800 = vxpose.xlu0.b32.cont [12/16] 0.0, 128
        %3801 = vxpose.xlu0.b32.cont [13/16] 0.0, 128
        %3802 = vxpose.xlu0.b32.cont [14/16] 0.0, 128
        %3803 = vxpose.xlu0.b32.cont [15/16] 0.0, 128
        %3804 = vxpose.xlu0.b32.end [16/16] 0.0, 128
        %v3805 = vpop.trf.xlu0
        %v3806 = vpop.trf.xlu0
        %v3807 = vpop.trf.xlu0
        %v3808 = vpop.trf.xlu0
        %v3809 = vpop.trf.xlu0
        %v3810 = vpop.trf.xlu0
        %v3811 = vpop.trf.xlu0
        %v3812 = vpop.trf.xlu0
        %v3813 = vpop.trf.xlu0
        %v3814 = vpop.trf.xlu0
        %v3815 = vpop.trf.xlu0
        %v3816 = vpop.trf.xlu0
        %v3817 = vpop.trf.xlu0
        %v3818 = vpop.trf.xlu0
        %v3819 = vpop.trf.xlu0
        %v3820 = vpop.trf.xlu0
        %3821 = vxpose.xlu0.b32.start [1/16] %v3433, 128
        %3822 = vxpose.xlu0.b32.cont [2/16] 0.0, 128
        %3823 = vxpose.xlu0.b32.cont [3/16] 0.0, 128
        %3824 = vxpose.xlu0.b32.cont [4/16] 0.0, 128
        %3825 = vxpose.xlu0.b32.cont [5/16] 0.0, 128
        %3826 = vxpose.xlu0.b32.cont [6/16] 0.0, 128
        %3827 = vxpose.xlu0.b32.cont [7/16] 0.0, 128
        %3828 = vxpose.xlu0.b32.cont [8/16] 0.0, 128
        %3829 = vxpose.xlu0.b32.cont [9/16] 0.0, 128
        %3830 = vxpose.xlu0.b32.cont [10/16] 0.0, 128
        %3831 = vxpose.xlu0.b32.cont [11/16] 0.0, 128
        %3832 = vxpose.xlu0.b32.cont [12/16] 0.0, 128
        %3833 = vxpose.xlu0.b32.cont [13/16] 0.0, 128
        %3834 = vxpose.xlu0.b32.cont [14/16] 0.0, 128
        %3835 = vxpose.xlu0.b32.cont [15/16] 0.0, 128
        %3836 = vxpose.xlu0.b32.end [16/16] 0.0, 128
        %v3837 = vpop.trf.xlu0
        %v3838 = vpop.trf.xlu0
        %v3839 = vpop.trf.xlu0
        %v3840 = vpop.trf.xlu0
        %v3841 = vpop.trf.xlu0
        %v3842 = vpop.trf.xlu0
        %v3843 = vpop.trf.xlu0
        %v3844 = vpop.trf.xlu0
        %v3845 = vpop.trf.xlu0
        %v3846 = vpop.trf.xlu0
        %v3847 = vpop.trf.xlu0
        %v3848 = vpop.trf.xlu0
        %v3849 = vpop.trf.xlu0
        %v3850 = vpop.trf.xlu0
        %v3851 = vpop.trf.xlu0
        %v3852 = vpop.trf.xlu0
        %3853 = vxpose.xlu0.b32.start [1/16] %v3434, 128
        %3854 = vxpose.xlu0.b32.cont [2/16] 0.0, 128
        %3855 = vxpose.xlu0.b32.cont [3/16] 0.0, 128
        %3856 = vxpose.xlu0.b32.cont [4/16] 0.0, 128
        %3857 = vxpose.xlu0.b32.cont [5/16] 0.0, 128
        %3858 = vxpose.xlu0.b32.cont [6/16] 0.0, 128
        %3859 = vxpose.xlu0.b32.cont [7/16] 0.0, 128
        %3860 = vxpose.xlu0.b32.cont [8/16] 0.0, 128
        %3861 = vxpose.xlu0.b32.cont [9/16] 0.0, 128
        %3862 = vxpose.xlu0.b32.cont [10/16] 0.0, 128
        %3863 = vxpose.xlu0.b32.cont [11/16] 0.0, 128
        %3864 = vxpose.xlu0.b32.cont [12/16] 0.0, 128
        %3865 = vxpose.xlu0.b32.cont [13/16] 0.0, 128
        %3866 = vxpose.xlu0.b32.cont [14/16] 0.0, 128
        %3867 = vxpose.xlu0.b32.cont [15/16] 0.0, 128
        %3868 = vxpose.xlu0.b32.end [16/16] 0.0, 128
        %v3869 = vpop.trf.xlu0
        %v3870 = vpop.trf.xlu0
        %v3871 = vpop.trf.xlu0
        %v3872 = vpop.trf.xlu0
        %v3873 = vpop.trf.xlu0
        %v3874 = vpop.trf.xlu0
        %v3875 = vpop.trf.xlu0
        %v3876 = vpop.trf.xlu0
        %v3877 = vpop.trf.xlu0
        %v3878 = vpop.trf.xlu0
        %v3879 = vpop.trf.xlu0
        %v3880 = vpop.trf.xlu0
        %v3881 = vpop.trf.xlu0
        %v3882 = vpop.trf.xlu0
        %v3883 = vpop.trf.xlu0
        %v3884 = vpop.trf.xlu0
        %3885 = vxpose.xlu0.b32.start [1/16] %v3435, 128
        %3886 = vxpose.xlu0.b32.cont [2/16] 0.0, 128
        %3887 = vxpose.xlu0.b32.cont [3/16] 0.0, 128
        %3888 = vxpose.xlu0.b32.cont [4/16] 0.0, 128
        %3889 = vxpose.xlu0.b32.cont [5/16] 0.0, 128
        %3890 = vxpose.xlu0.b32.cont [6/16] 0.0, 128
        %3891 = vxpose.xlu0.b32.cont [7/16] 0.0, 128
        %3892 = vxpose.xlu0.b32.cont [8/16] 0.0, 128
        %3893 = vxpose.xlu0.b32.cont [9/16] 0.0, 128
        %3894 = vxpose.xlu0.b32.cont [10/16] 0.0, 128
        %3895 = vxpose.xlu0.b32.cont [11/16] 0.0, 128
        %3896 = vxpose.xlu0.b32.cont [12/16] 0.0, 128
        %3897 = vxpose.xlu0.b32.cont [13/16] 0.0, 128
        %3898 = vxpose.xlu0.b32.cont [14/16] 0.0, 128
        %3899 = vxpose.xlu0.b32.cont [15/16] 0.0, 128
        %3900 = vxpose.xlu0.b32.end [16/16] 0.0, 128
        %v3901 = vpop.trf.xlu0
        %v3902 = vpop.trf.xlu0
        %v3903 = vpop.trf.xlu0
        %v3904 = vpop.trf.xlu0
        %v3905 = vpop.trf.xlu0
        %v3906 = vpop.trf.xlu0
        %v3907 = vpop.trf.xlu0
        %v3908 = vpop.trf.xlu0
        %v3909 = vpop.trf.xlu0
        %v3910 = vpop.trf.xlu0
        %v3911 = vpop.trf.xlu0
        %v3912 = vpop.trf.xlu0
        %v3913 = vpop.trf.xlu0
        %v3914 = vpop.trf.xlu0
        %v3915 = vpop.trf.xlu0
        %v3916 = vpop.trf.xlu0
        %3917 = vxpose.xlu0.b32.start [1/16] %v3436, 128
        %3918 = vxpose.xlu0.b32.cont [2/16] 0.0, 128
        %3919 = vxpose.xlu0.b32.cont [3/16] 0.0, 128
        %3920 = vxpose.xlu0.b32.cont [4/16] 0.0, 128
        %3921 = vxpose.xlu0.b32.cont [5/16] 0.0, 128
        %3922 = vxpose.xlu0.b32.cont [6/16] 0.0, 128
        %3923 = vxpose.xlu0.b32.cont [7/16] 0.0, 128
        %3924 = vxpose.xlu0.b32.cont [8/16] 0.0, 128
        %3925 = vxpose.xlu0.b32.cont [9/16] 0.0, 128
        %3926 = vxpose.xlu0.b32.cont [10/16] 0.0, 128
        %3927 = vxpose.xlu0.b32.cont [11/16] 0.0, 128
        %3928 = vxpose.xlu0.b32.cont [12/16] 0.0, 128
        %3929 = vxpose.xlu0.b32.cont [13/16] 0.0, 128
        %3930 = vxpose.xlu0.b32.cont [14/16] 0.0, 128
        %3931 = vxpose.xlu0.b32.cont [15/16] 0.0, 128
        %3932 = vxpose.xlu0.b32.end [16/16] 0.0, 128
        %v3933 = vpop.trf.xlu0
        %v3934 = vpop.trf.xlu0
        %v3935 = vpop.trf.xlu0
        %v3936 = vpop.trf.xlu0
        %v3937 = vpop.trf.xlu0
        %v3938 = vpop.trf.xlu0
        %v3939 = vpop.trf.xlu0
        %v3940 = vpop.trf.xlu0
        %v3941 = vpop.trf.xlu0
        %v3942 = vpop.trf.xlu0
        %v3943 = vpop.trf.xlu0
        %v3944 = vpop.trf.xlu0
        %v3945 = vpop.trf.xlu0
        %v3946 = vpop.trf.xlu0
        %v3947 = vpop.trf.xlu0
        %v3948 = vpop.trf.xlu0
        %3949 = vxpose.xlu0.b32.start [1/16] %v3453, 128
        %3950 = vxpose.xlu0.b32.cont [2/16] %v3485, 128
        %3951 = vxpose.xlu0.b32.cont [3/16] %v3517, 128
        %3952 = vxpose.xlu0.b32.cont [4/16] %v3549, 128
        %3953 = vxpose.xlu0.b32.cont [5/16] %v3581, 128
        %3954 = vxpose.xlu0.b32.cont [6/16] %v3613, 128
        %3955 = vxpose.xlu0.b32.cont [7/16] %v3645, 128
        %3956 = vxpose.xlu0.b32.cont [8/16] %v3677, 128
        %3957 = vxpose.xlu0.b32.cont [9/16] 0.0, 128
        %3958 = vxpose.xlu0.b32.cont [10/16] 0.0, 128
        %3959 = vxpose.xlu0.b32.cont [11/16] 0.0, 128
        %3960 = vxpose.xlu0.b32.cont [12/16] 0.0, 128
        %3961 = vxpose.xlu0.b32.cont [13/16] 0.0, 128
        %3962 = vxpose.xlu0.b32.cont [14/16] 0.0, 128
        %3963 = vxpose.xlu0.b32.cont [15/16] 0.0, 128
        %3964 = vxpose.xlu0.b32.end [16/16] 0.0, 128
        %v3965 = vpop.trf.xlu0
        %v3966 = vpop.trf.xlu0
        %v3967 = vpop.trf.xlu0
        %v3968 = vpop.trf.xlu0
        %v3969 = vpop.trf.xlu0
        %v3970 = vpop.trf.xlu0
        %v3971 = vpop.trf.xlu0
        %v3972 = vpop.trf.xlu0
        %v3973 = vpop.trf.xlu0
        %v3974 = vpop.trf.xlu0
        %v3975 = vpop.trf.xlu0
        %v3976 = vpop.trf.xlu0
        %v3977 = vpop.trf.xlu0
        %v3978 = vpop.trf.xlu0
        %v3979 = vpop.trf.xlu0
        %v3980 = vpop.trf.xlu0
        %3981 = vxpose.xlu0.b32.start [1/16] %v3709, 128
        %3982 = vxpose.xlu0.b32.cont [2/16] %v3741, 128
        %3983 = vxpose.xlu0.b32.cont [3/16] %v3773, 128
        %3984 = vxpose.xlu0.b32.cont [4/16] %v3805, 128
        %3985 = vxpose.xlu0.b32.cont [5/16] %v3837, 128
        %3986 = vxpose.xlu0.b32.cont [6/16] %v3869, 128
        %3987 = vxpose.xlu0.b32.cont [7/16] %v3901, 128
        %3988 = vxpose.xlu0.b32.cont [8/16] %v3933, 128
        %3989 = vxpose.xlu0.b32.cont [9/16] 0.0, 128
        %3990 = vxpose.xlu0.b32.cont [10/16] 0.0, 128
        %3991 = vxpose.xlu0.b32.cont [11/16] 0.0, 128
        %3992 = vxpose.xlu0.b32.cont [12/16] 0.0, 128
        %3993 = vxpose.xlu0.b32.cont [13/16] 0.0, 128
        %3994 = vxpose.xlu0.b32.cont [14/16] 0.0, 128
        %3995 = vxpose.xlu0.b32.cont [15/16] 0.0, 128
        %3996 = vxpose.xlu0.b32.end [16/16] 0.0, 128
        %v3997 = vpop.trf.xlu0
        %v3998 = vpop.trf.xlu0
        %v3999 = vpop.trf.xlu0
        %v4000 = vpop.trf.xlu0
        %v4001 = vpop.trf.xlu0
        %v4002 = vpop.trf.xlu0
        %v4003 = vpop.trf.xlu0
        %v4004 = vpop.trf.xlu0
        %v4005 = vpop.trf.xlu0
        %v4006 = vpop.trf.xlu0
        %v4007 = vpop.trf.xlu0
        %v4008 = vpop.trf.xlu0
        %v4009 = vpop.trf.xlu0
        %v4010 = vpop.trf.xlu0
        %v4011 = vpop.trf.xlu0
        %v4012 = vpop.trf.xlu0
        %v4016 = vunpack.c.l.s4 1983009808
        %v4017 = vunpack.c.0.s8 %v4016
        %v4018 = vlaneseq
        %v4019 = vshrl.u32 %v4018, 7
        %v4020 = vsub.s32 %v4017, %v4019
        %v4021 = vrot.slane %v3965, %v4020
        %v4023 = vunpack.c.l.s4 1983009808
        %v4024 = vunpack.c.0.s8 %v4023
        %v4025 = vlaneseq
        %v4026 = vshrl.u32 %v4025, 7
        %v4027 = vsub.s32 %v4024, %v4026
        %v4028 = vrot.slane %v3997, %v4027
        %4029 = vrot.lane.b32.xlu0 %v4021, 64
        %v4030 = vpop.permute.xlu0 %4029
        %4031 = vrot.lane.b32.xlu0 %v4028, 64
        %v4032 = vpop.permute.xlu0 %4031
        %4035 = vst.msk [vmem:[%s152 + $0x2] sm:$0x3] %vm2822, %v4030
        %4036 = vst.msk [vmem:[%s152 + $0x6] sm:$0x3] %vm2822, %v4032
        %s4037 = sand.u32 %s68, 1
        %s4038 = scalar_lea.sflag [#allocation5], %s4037
        %s4039 = sand.u32 %s68, 1
        %s4040 = smul.addr %s4039, 8
        %s4041 = scalar_lea.vmem [#allocation6], %s4040
        // Predicated region
        $region29: #{tpu_custom_call.1} parent=23 // pred_check
          %p4042 = pneg %p78
        $region30: #{tpu_custom_call.1} parent=23 // pred_check_branch
          %4044 = sbr.rel (%p4042) target = $region32
        $region31: #{tpu_custom_call.1} parent=23 // pred_region
          %s4045 = smul.u32 2, %s23
          %s4047 = ssub.s32 128, 128
          %4048 = vsyncadd %s4038, %s4047
          %s4049 = smul.addr %s4045, 2
          %s4050 = smul.addr %s22, 4
          %s4051 = sadd.s32 %s4049, %s4050
          %s4052 = smul.addr %s4051, 32
          %s4053 = scalar_lea.hbm %s1, %s4052
          %s4054 = sshll.u32 %s4041, 4
          %s4055 = int_to_ptr.vmem [resolvable:$true] %s4054
          %4060 = dma.vmem_to_hbm [thread:$0]  %s4055, 128, %s4053, %s4038, 64, 64, 4
        $region32: #{tpu_custom_call.1} parent=23 // pred_fallthru
          _
      $region24: #{tpu_custom_call.1} parent=5 // pred_fallthru
        _
      %p4061 = scmp.le.s32.totalorder 2, %s13
      // Predicated region
      $region33: #{tpu_custom_call.1} parent=5 // pred_check
        %p4062 = pneg %p4061
      $region34: #{tpu_custom_call.1} parent=5 // pred_check_branch
        %4064 = sbr.rel (%p4062) target = $region36
      $region35: #{tpu_custom_call.1} parent=5 // pred_region
        %s4065 = ssub.s32 %s13, 2
        // Predicated region
        $region37: #{tpu_custom_call.1} parent=35 // pred_check
          %p4066 = pneg %p84
        $region38: #{tpu_custom_call.1} parent=35 // pred_check_branch
          %4068 = sbr.rel (%p4066) target = $region40
        $region39: #{tpu_custom_call.1} parent=35 // pred_region
          %s4069 = sand.u32 %s69, 1
          %s4070 = scalar_lea.sflag [#allocation5], %s4069
          %s4071 = sand.u32 %s69, 1
          %s4072 = smul.addr %s4071, 8
          %s4073 = scalar_lea.vmem [#allocation6], %s4072
          %4074 = dma.done %s4070, 128
        $region40: #{tpu_custom_call.1} parent=35 // pred_fallthru
          _
      $region36: #{tpu_custom_call.1} parent=5 // pred_fallthru
        _
    $region6: #{tpu_custom_call.1} parent=1 // loop_footer
      %s17 = sadd.s32 1, %s13
    $region7: #{tpu_custom_call.1} parent=1 // loop_footer_branch
      %12 = sbr.rel target = $region3
    $region8: #{tpu_custom_call.1} parent=1 // loop_exit
      _
    %4075 = vsyncpa [#allocation4], 1
    %s4076 = scalar_lea.sflag [#allocation4], 1
    %4077 = vsyncpa %s4076, 1
    %4078 = vsyncpa [#allocation5], 1
    %s4079 = scalar_lea.sflag [#allocation5], 1
    %4080 = vsyncpa %s4079, 1

</llo_original>
